<compile_context>
chip_gen: v7x
topology: tpu7x:2x2x1
jax: 0.10.0
libtpu: 0.0.40
codegen_flags: <defaults>
</compile_context>

<pallas_src>
import math

import numpy as np
import jax
import jax.numpy as jnp
from jax import lax
from jax.experimental import pallas as pl
from jax.experimental.pallas import tpu as pltpu

# ---- module hyper-parameters implied by the forward pass (reshape to 8x8 -> T=64) ----
D_EMB = 16
N_HEADS = 4
SCALE = 0.02
B = 2
HGRID = 8
T = HGRID * HGRID
HDIM = D_EMB // N_HEADS

_PADL = 32            # left zero-pad (lanes) of the conv shift scratch
_PADW = T + 2 * _PADL  # 128-lane scratch row


def _make_kernel(D, H, T_):
    HD = D // H
    att_scale = 1.0 / math.sqrt(D // H)
    inv_t = 1.0 / (T_ - 1)      # unbiased std over T (torch.std_mean default)
    inv_hd = 1.0 / (HD - 1)     # unbiased std over head dim
    inv_hd_n = 1.0 / HD

    def _norm_rows(v, inv_nm1):
        # torch norm(): (x - mean) / (unbiased_std + 1e-5), per row over the lane axis.
        n = v.shape[-1]
        m = jnp.sum(v, axis=-1, keepdims=True) * (1.0 / n)
        d = v - m
        var = jnp.sum(d * d, axis=-1, keepdims=True) * inv_nm1
        return d * (1.0 / (jnp.sqrt(var) + 1e-5))     # exact reciprocal (correctness)

    def _leaky(v):
        return jnp.maximum(v, 0.2 * v)

    def kernel(x_ref, w1_ref, b1_ref, w2_ref, b2_ref, wqk_ref, wvt_ref,
               seg_ref, qmask_ref, vmask_ref, tap_ref, o_ref, pad_ref):
        xb = x_ref[0]                                     # (D, T) channel-major

        # zero the padded scratch once; only the center window is ever overwritten.
        pad_ref[...] = jnp.zeros((D, _PADW), jnp.float32)

        def conv3x3(inp, w_ref, b_ref):
            # write activation into the zero-padded scratch, read 8 shifted windows,
            # mask the 3x3 taps that fall outside the 8x8 grid, then ONE fused matmul.
            pad_ref[:, _PADL:_PADL + T_] = inp
            pieces = []
            for kh in range(3):
                for kw in range(3):
                    k = kh * 3 + kw
                    off = HGRID * (kh - 1) + (kw - 1)
                    if k == 4:                            # center tap: no shift/mask
                        pieces.append(inp)
                    else:
                        sh = pad_ref[:, _PADL + off:_PADL + off + T_]   # (D, T)
                        pieces.append(sh * tap_ref[k])                  # (1, T) mask
            ystack = jnp.concatenate(pieces, axis=0)      # (9D, T), 16-row aligned
            return jnp.dot(w_ref[...], ystack,
                           preferred_element_type=jnp.float32) + b_ref[...]

        # ---------------- conv branch ----------------
        y = _norm_rows(xb, inv_t)                         # norm over T (lanes)
        c = _leaky(conv3x3(y, w1_ref, b1_ref))
        c = _leaky(conv3x3(c, w2_ref, b2_ref))
        x1 = xb + _norm_rows(c, inv_t)                    # residual 1

        # ---------------- attention branch ----------------
        xa = _norm_rows(x1, inv_t)                        # (D, T)
        xat = xa.T                                        # (T, D) -- single transpose
        qk = jnp.dot(xat, wqk_ref[...],
                     preferred_element_type=jnp.float32)        # (T, 2D): [q | k]
        v_all = jnp.dot(wvt_ref[...], xa,
                        preferred_element_type=jnp.float32)     # (D, T), row = h*HD+e

        # fused per-head q/k norm: segmented (width-HD) stats via block-diag-ones matmul
        seg = seg_ref[...]                                # (2D, 2D)
        mu = jnp.dot(qk, seg, preferred_element_type=jnp.float32) * inv_hd_n
        dqk = qk - mu
        ssq = jnp.dot(dqk * dqk, seg, preferred_element_type=jnp.float32)
        qkn = dqk * (1.0 / (jnp.sqrt(ssq * inv_hd) + 1e-5))      # (T, 2D)

        qn = qkn[:, :D]                                   # (T, D)
        kn = qkn[:, D:]                                   # (T, D)

        y_att = jnp.zeros_like(xb)                        # (D, T)
        for h in range(H):
            # zero-masked head columns -> full-D contraction == q_h @ k_h^T
            qh = qn * qmask_ref[h]                        # (T, D)
            s = lax.dot_general(qh, kn, (((1,), (1,)), ((), ())),
                                preferred_element_type=jnp.float32) * att_scale  # (T,T)
            s = s - jnp.max(s, axis=-1, keepdims=True)
            e = jnp.exp(s)
            p = e * (1.0 / jnp.sum(e, axis=-1, keepdims=True))
            # pre-masked v rows: head outputs accumulate as plain matmul sums
            vh = v_all * vmask_ref[h]                     # (D, T)
            y_att = y_att + lax.dot_general(vh, p, (((1,), (1,)), ((), ())),
                                            preferred_element_type=jnp.float32)

        o_ref[0] = x1 + _norm_rows(y_att, inv_t)          # residual 2

    return kernel


def conv_transformer_block(x, w1, b1, w2, b2, qkv):
    B_, D, T_ = x.shape
    H = qkv.shape[1]
    HD = D // H
    assert T_ == HGRID * HGRID
    f32 = jnp.float32

    # conv weights (O, I, 3, 3) -> (O, 9*I), tap-major column blocks (k = kh*3 + kw)
    wcat1 = jnp.transpose(w1, (0, 2, 3, 1)).reshape(D, 9 * D).astype(f32)
    wcat2 = jnp.transpose(w2, (0, 2, 3, 1)).reshape(D, 9 * D).astype(f32)
    b1c = b1.reshape(D, 1).astype(f32)
    b2c = b2.reshape(D, 1).astype(f32)

    # fused q,k projection (D, 2D): column n*D + h*HD + e == qkv[n, h, :, e]
    wqk = jnp.transpose(qkv[:2], (2, 0, 1, 3)).reshape(D, 2 * D).astype(f32)
    # v projection, transposed (D, D): row h*HD + e == qkv[2, h, :, e]
    wvt = jnp.transpose(qkv[2], (0, 2, 1)).reshape(D, D).astype(f32)

    # block-diagonal ones (2D, 2D): segment sums over each width-HD head column block
    seg = jnp.asarray(np.kron(np.eye(2 * H, dtype=np.float32),
                              np.ones((HD, HD), np.float32)))

    # per-head column / row 0-1 masks (no in-kernel iota / scatter)
    qmask = np.zeros((H, 1, D), np.float32)
    vmask = np.zeros((H, D, 1), np.float32)
    for h in range(H):
        qmask[h, 0, h * HD:(h + 1) * HD] = 1.0
        vmask[h, h * HD:(h + 1) * HD, 0] = 1.0
    qmask = jnp.asarray(qmask)
    vmask = jnp.asarray(vmask)

    # 3x3 'same' conv boundary masks on the flattened 8x8 grid: tap k valid at t iff
    # (t//8 + dh, t%8 + dw) stays inside the grid.
    tapmask = np.zeros((9, 1, T_), np.float32)
    for kh in range(3):
        for kw in range(3):
            k = kh * 3 + kw
            dh, dw = kh - 1, kw - 1
            for t in range(T_):
                hh, ww = t // HGRID, t % HGRID
                if 0 <= hh + dh < HGRID and 0 <= ww + dw < HGRID:
                    tapmask[k, 0, t] = 1.0
    tapmask = jnp.asarray(tapmask)

    kernel = _make_kernel(D, H, T_)
    return pl.pallas_call(
        kernel,
        out_shape=jax.ShapeDtypeStruct((B_, D, T_), jnp.float32),
        grid=(B_,),
        in_specs=[
            pl.BlockSpec((1, D, T_), lambda b: (b, 0, 0)),       # x (per-batch block)
            pl.BlockSpec((D, 9 * D), lambda b: (0, 0)),          # conv1 fused weights
            pl.BlockSpec((D, 1), lambda b: (0, 0)),              # conv1 bias
            pl.BlockSpec((D, 9 * D), lambda b: (0, 0)),          # conv2 fused weights
            pl.BlockSpec((D, 1), lambda b: (0, 0)),              # conv2 bias
            pl.BlockSpec((D, 2 * D), lambda b: (0, 0)),          # fused q|k projection
            pl.BlockSpec((D, D), lambda b: (0, 0)),              # v projection (transposed)
            pl.BlockSpec((2 * D, 2 * D), lambda b: (0, 0)),      # head-segment ones
            pl.BlockSpec((H, 1, D), lambda b: (0, 0, 0)),        # per-head column masks
            pl.BlockSpec((H, D, 1), lambda b: (0, 0, 0)),        # per-head row masks
            pl.BlockSpec((9, 1, T_), lambda b: (0, 0, 0)),       # conv boundary masks
        ],
        out_specs=pl.BlockSpec((1, D, T_), lambda b: (b, 0, 0)),
        scratch_shapes=[pltpu.VMEM((D, _PADW), jnp.float32)],    # zero-padded shift row
        compiler_params=pltpu.CompilerParams(dimension_semantics=("parallel",)),
    )(x.astype(f32), wcat1, b1c, wcat2, b2c, wqk, wvt, seg, qmask, vmask, tapmask)


# ------------------------- pure-JAX reference (for validation) -------------------------
def _norm_ref(v):
    n = v.shape[-1]
    m = jnp.mean(v, axis=-1, keepdims=True)
    d = v - m
    s = jnp.sqrt(jnp.sum(d * d, axis=-1, keepdims=True) / (n - 1))
    return d / (s + 1e-5)


def forward_ref(x, w1, b1, w2, b2, qkv):
    B_, D, T_ = x.shape
    H = qkv.shape[1]
    hi = lax.Precision.HIGHEST
    y = _norm_ref(x).reshape(B_, D, HGRID, HGRID)
    for w, b in ((w1, b1), (w2, b2)):
        y = lax.conv_general_dilated(y, w, (1, 1), 'SAME',
                                     dimension_numbers=('NCHW', 'OIHW', 'NCHW'),
                                     precision=hi)
        y = y + b[None, :, None, None]
        y = jnp.where(y >= 0, y, 0.2 * y)
    y = _norm_ref(y.reshape(B_, D, T_))
    x = x + y
    y = _norm_ref(x)
    p = jnp.einsum('bdt,nhde->nbhte', y, qkv, precision=hi)
    q, k, v = p[0], p[1], p[2]
    q = _norm_ref(q)
    k = _norm_ref(k)
    a = jnp.einsum('bhte,bhse->bhts', q, k, precision=hi) / math.sqrt(D // H)
    a = jax.nn.softmax(a, axis=-1)
    o = jnp.einsum('bhts,bhse->bhet', a, v, precision=hi)
    y = _norm_ref(o.reshape(B_, D, T_))
    return x + y


if __name__ == "__main__":
    key = jax.random.PRNGKey(0)
    ks = jax.random.split(key, 6)
    x = jax.random.normal(ks[0], (B, D_EMB, T), jnp.float32)
    w1 = jax.random.normal(ks[1], (D_EMB, D_EMB, 3, 3), jnp.float32) * 0.1
    b1 = jax.random.normal(ks[2], (D_EMB,), jnp.float32) * 0.1
    w2 = jax.random.normal(ks[3], (D_EMB, D_EMB, 3, 3), jnp.float32) * 0.1
    b2 = jax.random.normal(ks[4], (D_EMB,), jnp.float32) * 0.1
    qkv = jax.random.normal(ks[5], (3, N_HEADS, D_EMB, HDIM), jnp.float32) * SCALE

    out = jax.block_until_ready(conv_transformer_block(x, w1, b1, w2, b2, qkv))
    ref = forward_ref(x, w1, b1, w2, b2, qkv)

    err = float(jnp.max(jnp.abs(out - ref)))
    if not (out.shape == ref.shape and err < 2e-2):
        raise AssertionError(f"kernel/reference mismatch, max abs err = {err}")
    print("KERNEL_OK")
</pallas_src>

<mosaic_0001>
module attributes {stable_mosaic.version = 11 : i64} {
  func.func @kernel(%arg0: i32, %arg1: memref<1x16x64xf32, #tpu.memory_space<vmem>>, %arg2: memref<16x144xf32, #tpu.memory_space<vmem>>, %arg3: memref<16x1xf32, #tpu.memory_space<vmem>>, %arg4: memref<16x144xf32, #tpu.memory_space<vmem>>, %arg5: memref<16x1xf32, #tpu.memory_space<vmem>>, %arg6: memref<16x32xf32, #tpu.memory_space<vmem>>, %arg7: memref<16x16xf32, #tpu.memory_space<vmem>>, %arg8: memref<32x32xf32, #tpu.memory_space<vmem>>, %arg9: memref<4x1x16xf32, #tpu.memory_space<vmem>>, %arg10: memref<4x16x1xf32, #tpu.memory_space<vmem>>, %arg11: memref<9x1x64xf32, #tpu.memory_space<vmem>>, %arg12: memref<1x16x64xf32, #tpu.memory_space<vmem>>, %arg13: memref<16x128xf32, #tpu.memory_space<vmem>>) attributes {dimension_semantics = [#tpu.dimension_semantics<parallel>], iteration_bounds = array<i64: 2>, scalar_prefetch = 0 : i64, scratch_operands = 1 : i64, tpu.core_type = #tpu.core_type<tc>, window_params = [{transform_indices = @transform_0, window_bounds = array<i64: 1, 16, 64>}, {pipeline_mode = #tpu.pipeline_mode<synchronous>, transform_indices = @transform_1, window_bounds = array<i64: 16, 144>}, {pipeline_mode = #tpu.pipeline_mode<synchronous>, transform_indices = @transform_2, window_bounds = array<i64: 16, 1>}, {pipeline_mode = #tpu.pipeline_mode<synchronous>, transform_indices = @transform_3, window_bounds = array<i64: 16, 144>}, {pipeline_mode = #tpu.pipeline_mode<synchronous>, transform_indices = @transform_4, window_bounds = array<i64: 16, 1>}, {pipeline_mode = #tpu.pipeline_mode<synchronous>, transform_indices = @transform_5, window_bounds = array<i64: 16, 32>}, {pipeline_mode = #tpu.pipeline_mode<synchronous>, transform_indices = @transform_6, window_bounds = array<i64: 16, 16>}, {pipeline_mode = #tpu.pipeline_mode<synchronous>, transform_indices = @transform_7, window_bounds = array<i64: 32, 32>}, {pipeline_mode = #tpu.pipeline_mode<synchronous>, transform_indices = @transform_8, window_bounds = array<i64: 4, 1, 16>}, {pipeline_mode = #tpu.pipeline_mode<synchronous>, transform_indices = @transform_9, window_bounds = array<i64: 4, 16, 1>}, {pipeline_mode = #tpu.pipeline_mode<synchronous>, transform_indices = @transform_10, window_bounds = array<i64: 9, 1, 64>}, {transform_indices = @transform_11, window_bounds = array<i64: 1, 16, 64>}]} {
    %c0 = arith.constant 0 : index
    %c0_0 = arith.constant 0 : index
    %c0_1 = arith.constant 0 : index
    %0 = vector.load %arg1[%c0, %c0_0, %c0_1] : memref<1x16x64xf32, #tpu.memory_space<vmem>>, vector<1x16x64xf32>
    %1 = vector.shape_cast %0 : vector<1x16x64xf32> to vector<16x64xf32>
    %cst = arith.constant 0.000000e+00 : f32
    %2 = vector.broadcast %cst : f32 to vector<16x128xf32>
    %c0_2 = arith.constant 0 : index
    %c0_3 = arith.constant 0 : index
    %3 = vector.load %arg13[%c0_2, %c0_3] : memref<16x128xf32, #tpu.memory_space<vmem>>, vector<16x128xf32>
    tpu.vector_store %arg13[%c0_2, %c0_3], %2 {strides = array<i32>} : memref<16x128xf32, #tpu.memory_space<vmem>>, vector<16x128xf32>,
    %cst_4 = arith.constant dense<0.000000e+00> : vector<16xf32>
    %4 = vector.multi_reduction <add>, %1, %cst_4 [1] : vector<16x64xf32> to vector<16xf32>
    %5 = vector.shape_cast %4 : vector<16xf32> to vector<16x1xf32>
    %cst_5 = arith.constant 1.562500e-02 : f32
    %6 = vector.broadcast %cst_5 : f32 to vector<16x1xf32>
    %7 = arith.mulf %5, %6 : vector<16x1xf32>
    %8 = vector.broadcast %7 : vector<16x1xf32> to vector<16x64xf32>
    %9 = arith.subf %1, %8 : vector<16x64xf32>
    %10 = arith.mulf %9, %9 : vector<16x64xf32>
    %cst_6 = arith.constant dense<0.000000e+00> : vector<16xf32>
    %11 = vector.multi_reduction <add>, %10, %cst_6 [1] : vector<16x64xf32> to vector<16xf32>
    %12 = vector.shape_cast %11 : vector<16xf32> to vector<16x1xf32>
    %cst_7 = arith.constant 0.0158730168 : f32
    %13 = vector.broadcast %cst_7 : f32 to vector<16x1xf32>
    %14 = arith.mulf %12, %13 : vector<16x1xf32>
    %15 = math.sqrt %14 : vector<16x1xf32>
    %cst_8 = arith.constant 9.99999974E-6 : f32
    %16 = vector.broadcast %cst_8 : f32 to vector<16x1xf32>
    %17 = arith.addf %15, %16 : vector<16x1xf32>
    %cst_9 = arith.constant 1.000000e+00 : f32
    %18 = vector.broadcast %cst_9 : f32 to vector<16x1xf32>
    %19 = arith.divf %18, %17 : vector<16x1xf32>
    %20 = vector.broadcast %19 : vector<16x1xf32> to vector<16x64xf32>
    %21 = arith.mulf %9, %20 : vector<16x64xf32>
    %c0_10 = arith.constant 0 : index
    %c32 = arith.constant 32 : index
    %22 = vector.load %arg13[%c0_10, %c32] : memref<16x128xf32, #tpu.memory_space<vmem>>, vector<16x64xf32>
    tpu.vector_store %arg13[%c0_10, %c32], %21 {strides = array<i32>} : memref<16x128xf32, #tpu.memory_space<vmem>>, vector<16x64xf32>,
    %c0_11 = arith.constant 0 : index
    %c23 = arith.constant 23 : index
    %23 = vector.load %arg13[%c0_11, %c23] : memref<16x128xf32, #tpu.memory_space<vmem>>, vector<16x64xf32>
    %c0_12 = arith.constant 0 : index
    %c0_13 = arith.constant 0 : index
    %c0_14 = arith.constant 0 : index
    %24 = vector.load %arg11[%c0_12, %c0_13, %c0_14] : memref<9x1x64xf32, #tpu.memory_space<vmem>>, vector<1x1x64xf32>
    %25 = vector.shape_cast %24 : vector<1x1x64xf32> to vector<1x64xf32>
    %26 = vector.broadcast %25 : vector<1x64xf32> to vector<16x64xf32>
    %27 = arith.mulf %23, %26 : vector<16x64xf32>
    %c0_15 = arith.constant 0 : index
    %c24 = arith.constant 24 : index
    %28 = vector.load %arg13[%c0_15, %c24] : memref<16x128xf32, #tpu.memory_space<vmem>>, vector<16x64xf32>
    %c1 = arith.constant 1 : index
    %c0_16 = arith.constant 0 : index
    %c0_17 = arith.constant 0 : index
    %29 = vector.load %arg11[%c1, %c0_16, %c0_17] : memref<9x1x64xf32, #tpu.memory_space<vmem>>, vector<1x1x64xf32>
    %30 = vector.shape_cast %29 : vector<1x1x64xf32> to vector<1x64xf32>
    %31 = vector.broadcast %30 : vector<1x64xf32> to vector<16x64xf32>
    %32 = arith.mulf %28, %31 : vector<16x64xf32>
    %c0_18 = arith.constant 0 : index
    %c25 = arith.constant 25 : index
    %33 = vector.load %arg13[%c0_18, %c25] : memref<16x128xf32, #tpu.memory_space<vmem>>, vector<16x64xf32>
    %c2 = arith.constant 2 : index
    %c0_19 = arith.constant 0 : index
    %c0_20 = arith.constant 0 : index
    %34 = vector.load %arg11[%c2, %c0_19, %c0_20] : memref<9x1x64xf32, #tpu.memory_space<vmem>>, vector<1x1x64xf32>
    %35 = vector.shape_cast %34 : vector<1x1x64xf32> to vector<1x64xf32>
    %36 = vector.broadcast %35 : vector<1x64xf32> to vector<16x64xf32>
    %37 = arith.mulf %33, %36 : vector<16x64xf32>
    %c0_21 = arith.constant 0 : index
    %c31 = arith.constant 31 : index
    %38 = vector.load %arg13[%c0_21, %c31] : memref<16x128xf32, #tpu.memory_space<vmem>>, vector<16x64xf32>
    %c3 = arith.constant 3 : index
    %c0_22 = arith.constant 0 : index
    %c0_23 = arith.constant 0 : index
    %39 = vector.load %arg11[%c3, %c0_22, %c0_23] : memref<9x1x64xf32, #tpu.memory_space<vmem>>, vector<1x1x64xf32>
    %40 = vector.shape_cast %39 : vector<1x1x64xf32> to vector<1x64xf32>
    %41 = vector.broadcast %40 : vector<1x64xf32> to vector<16x64xf32>
    %42 = arith.mulf %38, %41 : vector<16x64xf32>
    %c0_24 = arith.constant 0 : index
    %c33 = arith.constant 33 : index
    %43 = vector.load %arg13[%c0_24, %c33] : memref<16x128xf32, #tpu.memory_space<vmem>>, vector<16x64xf32>
    %c5 = arith.constant 5 : index
    %c0_25 = arith.constant 0 : index
    %c0_26 = arith.constant 0 : index
    %44 = vector.load %arg11[%c5, %c0_25, %c0_26] : memref<9x1x64xf32, #tpu.memory_space<vmem>>, vector<1x1x64xf32>
    %45 = vector.shape_cast %44 : vector<1x1x64xf32> to vector<1x64xf32>
    %46 = vector.broadcast %45 : vector<1x64xf32> to vector<16x64xf32>
    %47 = arith.mulf %43, %46 : vector<16x64xf32>
    %c0_27 = arith.constant 0 : index
    %c39 = arith.constant 39 : index
    %48 = vector.load %arg13[%c0_27, %c39] : memref<16x128xf32, #tpu.memory_space<vmem>>, vector<16x64xf32>
    %c6 = arith.constant 6 : index
    %c0_28 = arith.constant 0 : index
    %c0_29 = arith.constant 0 : index
    %49 = vector.load %arg11[%c6, %c0_28, %c0_29] : memref<9x1x64xf32, #tpu.memory_space<vmem>>, vector<1x1x64xf32>
    %50 = vector.shape_cast %49 : vector<1x1x64xf32> to vector<1x64xf32>
    %51 = vector.broadcast %50 : vector<1x64xf32> to vector<16x64xf32>
    %52 = arith.mulf %48, %51 : vector<16x64xf32>
    %c0_30 = arith.constant 0 : index
    %c40 = arith.constant 40 : index
    %53 = vector.load %arg13[%c0_30, %c40] : memref<16x128xf32, #tpu.memory_space<vmem>>, vector<16x64xf32>
    %c7 = arith.constant 7 : index
    %c0_31 = arith.constant 0 : index
    %c0_32 = arith.constant 0 : index
    %54 = vector.load %arg11[%c7, %c0_31, %c0_32] : memref<9x1x64xf32, #tpu.memory_space<vmem>>, vector<1x1x64xf32>
    %55 = vector.shape_cast %54 : vector<1x1x64xf32> to vector<1x64xf32>
    %56 = vector.broadcast %55 : vector<1x64xf32> to vector<16x64xf32>
    %57 = arith.mulf %53, %56 : vector<16x64xf32>
    %c0_33 = arith.constant 0 : index
    %c41 = arith.constant 41 : index
    %58 = vector.load %arg13[%c0_33, %c41] : memref<16x128xf32, #tpu.memory_space<vmem>>, vector<16x64xf32>
    %c8 = arith.constant 8 : index
    %c0_34 = arith.constant 0 : index
    %c0_35 = arith.constant 0 : index
    %59 = vector.load %arg11[%c8, %c0_34, %c0_35] : memref<9x1x64xf32, #tpu.memory_space<vmem>>, vector<1x1x64xf32>
    %60 = vector.shape_cast %59 : vector<1x1x64xf32> to vector<1x64xf32>
    %61 = vector.broadcast %60 : vector<1x64xf32> to vector<16x64xf32>
    %62 = arith.mulf %58, %61 : vector<16x64xf32>
    %63 = tpu.concatenate %27, %32, %37, %42, %21, %47, %52, %57, %62 in 0 : vector<16x64xf32>, vector<16x64xf32>, vector<16x64xf32>, vector<16x64xf32>, vector<16x64xf32>, vector<16x64xf32>, vector<16x64xf32>, vector<16x64xf32>, vector<16x64xf32> -> vector<144x64xf32>
    %c0_36 = arith.constant 0 : index
    %c0_37 = arith.constant 0 : index
    %64 = vector.load %arg2[%c0_36, %c0_37] : memref<16x144xf32, #tpu.memory_space<vmem>>, vector<16x144xf32>
    %cst_38 = arith.constant dense<0.000000e+00> : vector<16x64xf32>
    %65 = tpu.matmul %64, %63, %cst_38 {dimension_numbers = #tpu.dot_dimension_numbers<[1], [0], [0], [1], [0, 0, 1, 1], [], []>} : vector<16x144xf32>, vector<144x64xf32>, vector<16x64xf32> -> vector<16x64xf32>
    %c0_39 = arith.constant 0 : index
    %c0_40 = arith.constant 0 : index
    %66 = vector.load %arg3[%c0_39, %c0_40] : memref<16x1xf32, #tpu.memory_space<vmem>>, vector<16x1xf32>
    %67 = vector.broadcast %66 : vector<16x1xf32> to vector<16x64xf32>
    %68 = arith.addf %65, %67 : vector<16x64xf32>
    %cst_41 = arith.constant 2.000000e-01 : f32
    %69 = vector.broadcast %cst_41 : f32 to vector<16x64xf32>
    %70 = arith.mulf %69, %68 : vector<16x64xf32>
    %71 = arith.maximumf %68, %70 : vector<16x64xf32>
    %c0_42 = arith.constant 0 : index
    %c32_43 = arith.constant 32 : index
    %72 = vector.load %arg13[%c0_42, %c32_43] : memref<16x128xf32, #tpu.memory_space<vmem>>, vector<16x64xf32>
    tpu.vector_store %arg13[%c0_42, %c32_43], %71 {strides = array<i32>} : memref<16x128xf32, #tpu.memory_space<vmem>>, vector<16x64xf32>,
    %c0_44 = arith.constant 0 : index
    %c23_45 = arith.constant 23 : index
    %73 = vector.load %arg13[%c0_44, %c23_45] : memref<16x128xf32, #tpu.memory_space<vmem>>, vector<16x64xf32>
    %c0_46 = arith.constant 0 : index
    %c0_47 = arith.constant 0 : index
    %c0_48 = arith.constant 0 : index
    %74 = vector.load %arg11[%c0_46, %c0_47, %c0_48] : memref<9x1x64xf32, #tpu.memory_space<vmem>>, vector<1x1x64xf32>
    %75 = vector.shape_cast %74 : vector<1x1x64xf32> to vector<1x64xf32>
    %76 = vector.broadcast %75 : vector<1x64xf32> to vector<16x64xf32>
    %77 = arith.mulf %73, %76 : vector<16x64xf32>
    %c0_49 = arith.constant 0 : index
    %c24_50 = arith.constant 24 : index
    %78 = vector.load %arg13[%c0_49, %c24_50] : memref<16x128xf32, #tpu.memory_space<vmem>>, vector<16x64xf32>
    %c1_51 = arith.constant 1 : index
    %c0_52 = arith.constant 0 : index
    %c0_53 = arith.constant 0 : index
    %79 = vector.load %arg11[%c1_51, %c0_52, %c0_53] : memref<9x1x64xf32, #tpu.memory_space<vmem>>, vector<1x1x64xf32>
    %80 = vector.shape_cast %79 : vector<1x1x64xf32> to vector<1x64xf32>
    %81 = vector.broadcast %80 : vector<1x64xf32> to vector<16x64xf32>
    %82 = arith.mulf %78, %81 : vector<16x64xf32>
    %c0_54 = arith.constant 0 : index
    %c25_55 = arith.constant 25 : index
    %83 = vector.load %arg13[%c0_54, %c25_55] : memref<16x128xf32, #tpu.memory_space<vmem>>, vector<16x64xf32>
    %c2_56 = arith.constant 2 : index
    %c0_57 = arith.constant 0 : index
    %c0_58 = arith.constant 0 : index
    %84 = vector.load %arg11[%c2_56, %c0_57, %c0_58] : memref<9x1x64xf32, #tpu.memory_space<vmem>>, vector<1x1x64xf32>
    %85 = vector.shape_cast %84 : vector<1x1x64xf32> to vector<1x64xf32>
    %86 = vector.broadcast %85 : vector<1x64xf32> to vector<16x64xf32>
    %87 = arith.mulf %83, %86 : vector<16x64xf32>
    %c0_59 = arith.constant 0 : index
    %c31_60 = arith.constant 31 : index
    %88 = vector.load %arg13[%c0_59, %c31_60] : memref<16x128xf32, #tpu.memory_space<vmem>>, vector<16x64xf32>
    %c3_61 = arith.constant 3 : index
    %c0_62 = arith.constant 0 : index
    %c0_63 = arith.constant 0 : index
    %89 = vector.load %arg11[%c3_61, %c0_62, %c0_63] : memref<9x1x64xf32, #tpu.memory_space<vmem>>, vector<1x1x64xf32>
    %90 = vector.shape_cast %89 : vector<1x1x64xf32> to vector<1x64xf32>
    %91 = vector.broadcast %90 : vector<1x64xf32> to vector<16x64xf32>
    %92 = arith.mulf %88, %91 : vector<16x64xf32>
    %c0_64 = arith.constant 0 : index
    %c33_65 = arith.constant 33 : index
    %93 = vector.load %arg13[%c0_64, %c33_65] : memref<16x128xf32, #tpu.memory_space<vmem>>, vector<16x64xf32>
    %c5_66 = arith.constant 5 : index
    %c0_67 = arith.constant 0 : index
    %c0_68 = arith.constant 0 : index
    %94 = vector.load %arg11[%c5_66, %c0_67, %c0_68] : memref<9x1x64xf32, #tpu.memory_space<vmem>>, vector<1x1x64xf32>
    %95 = vector.shape_cast %94 : vector<1x1x64xf32> to vector<1x64xf32>
    %96 = vector.broadcast %95 : vector<1x64xf32> to vector<16x64xf32>
    %97 = arith.mulf %93, %96 : vector<16x64xf32>
    %c0_69 = arith.constant 0 : index
    %c39_70 = arith.constant 39 : index
    %98 = vector.load %arg13[%c0_69, %c39_70] : memref<16x128xf32, #tpu.memory_space<vmem>>, vector<16x64xf32>
    %c6_71 = arith.constant 6 : index
    %c0_72 = arith.constant 0 : index
    %c0_73 = arith.constant 0 : index
    %99 = vector.load %arg11[%c6_71, %c0_72, %c0_73] : memref<9x1x64xf32, #tpu.memory_space<vmem>>, vector<1x1x64xf32>
    %100 = vector.shape_cast %99 : vector<1x1x64xf32> to vector<1x64xf32>
    %101 = vector.broadcast %100 : vector<1x64xf32> to vector<16x64xf32>
    %102 = arith.mulf %98, %101 : vector<16x64xf32>
    %c0_74 = arith.constant 0 : index
    %c40_75 = arith.constant 40 : index
    %103 = vector.load %arg13[%c0_74, %c40_75] : memref<16x128xf32, #tpu.memory_space<vmem>>, vector<16x64xf32>
    %c7_76 = arith.constant 7 : index
    %c0_77 = arith.constant 0 : index
    %c0_78 = arith.constant 0 : index
    %104 = vector.load %arg11[%c7_76, %c0_77, %c0_78] : memref<9x1x64xf32, #tpu.memory_space<vmem>>, vector<1x1x64xf32>
    %105 = vector.shape_cast %104 : vector<1x1x64xf32> to vector<1x64xf32>
    %106 = vector.broadcast %105 : vector<1x64xf32> to vector<16x64xf32>
    %107 = arith.mulf %103, %106 : vector<16x64xf32>
    %c0_79 = arith.constant 0 : index
    %c41_80 = arith.constant 41 : index
    %108 = vector.load %arg13[%c0_79, %c41_80] : memref<16x128xf32, #tpu.memory_space<vmem>>, vector<16x64xf32>
    %c8_81 = arith.constant 8 : index
    %c0_82 = arith.constant 0 : index
    %c0_83 = arith.constant 0 : index
    %109 = vector.load %arg11[%c8_81, %c0_82, %c0_83] : memref<9x1x64xf32, #tpu.memory_space<vmem>>, vector<1x1x64xf32>
    %110 = vector.shape_cast %109 : vector<1x1x64xf32> to vector<1x64xf32>
    %111 = vector.broadcast %110 : vector<1x64xf32> to vector<16x64xf32>
    %112 = arith.mulf %108, %111 : vector<16x64xf32>
    %113 = tpu.concatenate %77, %82, %87, %92, %71, %97, %102, %107, %112 in 0 : vector<16x64xf32>, vector<16x64xf32>, vector<16x64xf32>, vector<16x64xf32>, vector<16x64xf32>, vector<16x64xf32>, vector<16x64xf32>, vector<16x64xf32>, vector<16x64xf32> -> vector<144x64xf32>
    %c0_84 = arith.constant 0 : index
    %c0_85 = arith.constant 0 : index
    %114 = vector.load %arg4[%c0_84, %c0_85] : memref<16x144xf32, #tpu.memory_space<vmem>>, vector<16x144xf32>
    %cst_86 = arith.constant dense<0.000000e+00> : vector<16x64xf32>
    %115 = tpu.matmul %114, %113, %cst_86 {dimension_numbers = #tpu.dot_dimension_numbers<[1], [0], [0], [1], [0, 0, 1, 1], [], []>} : vector<16x144xf32>, vector<144x64xf32>, vector<16x64xf32> -> vector<16x64xf32>
    %c0_87 = arith.constant 0 : index
    %c0_88 = arith.constant 0 : index
    %116 = vector.load %arg5[%c0_87, %c0_88] : memref<16x1xf32, #tpu.memory_space<vmem>>, vector<16x1xf32>
    %117 = vector.broadcast %116 : vector<16x1xf32> to vector<16x64xf32>
    %118 = arith.addf %115, %117 : vector<16x64xf32>
    %cst_89 = arith.constant 2.000000e-01 : f32
    %119 = vector.broadcast %cst_89 : f32 to vector<16x64xf32>
    %120 = arith.mulf %119, %118 : vector<16x64xf32>
    %121 = arith.maximumf %118, %120 : vector<16x64xf32>
    %cst_90 = arith.constant dense<0.000000e+00> : vector<16xf32>
    %122 = vector.multi_reduction <add>, %121, %cst_90 [1] : vector<16x64xf32> to vector<16xf32>
    %123 = vector.shape_cast %122 : vector<16xf32> to vector<16x1xf32>
    %cst_91 = arith.constant 1.562500e-02 : f32
    %124 = vector.broadcast %cst_91 : f32 to vector<16x1xf32>
    %125 = arith.mulf %123, %124 : vector<16x1xf32>
    %126 = vector.broadcast %125 : vector<16x1xf32> to vector<16x64xf32>
    %127 = arith.subf %121, %126 : vector<16x64xf32>
    %128 = arith.mulf %127, %127 : vector<16x64xf32>
    %cst_92 = arith.constant dense<0.000000e+00> : vector<16xf32>
    %129 = vector.multi_reduction <add>, %128, %cst_92 [1] : vector<16x64xf32> to vector<16xf32>
    %130 = vector.shape_cast %129 : vector<16xf32> to vector<16x1xf32>
    %cst_93 = arith.constant 0.0158730168 : f32
    %131 = vector.broadcast %cst_93 : f32 to vector<16x1xf32>
    %132 = arith.mulf %130, %131 : vector<16x1xf32>
    %133 = math.sqrt %132 : vector<16x1xf32>
    %cst_94 = arith.constant 9.99999974E-6 : f32
    %134 = vector.broadcast %cst_94 : f32 to vector<16x1xf32>
    %135 = arith.addf %133, %134 : vector<16x1xf32>
    %cst_95 = arith.constant 1.000000e+00 : f32
    %136 = vector.broadcast %cst_95 : f32 to vector<16x1xf32>
    %137 = arith.divf %136, %135 : vector<16x1xf32>
    %138 = vector.broadcast %137 : vector<16x1xf32> to vector<16x64xf32>
    %139 = arith.mulf %127, %138 : vector<16x64xf32>
    %140 = arith.addf %1, %139 : vector<16x64xf32>
    %cst_96 = arith.constant dense<0.000000e+00> : vector<16xf32>
    %141 = vector.multi_reduction <add>, %140, %cst_96 [1] : vector<16x64xf32> to vector<16xf32>
    %142 = vector.shape_cast %141 : vector<16xf32> to vector<16x1xf32>
    %cst_97 = arith.constant 1.562500e-02 : f32
    %143 = vector.broadcast %cst_97 : f32 to vector<16x1xf32>
    %144 = arith.mulf %142, %143 : vector<16x1xf32>
    %145 = vector.broadcast %144 : vector<16x1xf32> to vector<16x64xf32>
    %146 = arith.subf %140, %145 : vector<16x64xf32>
    %147 = arith.mulf %146, %146 : vector<16x64xf32>
    %cst_98 = arith.constant dense<0.000000e+00> : vector<16xf32>
    %148 = vector.multi_reduction <add>, %147, %cst_98 [1] : vector<16x64xf32> to vector<16xf32>
    %149 = vector.shape_cast %148 : vector<16xf32> to vector<16x1xf32>
    %cst_99 = arith.constant 0.0158730168 : f32
    %150 = vector.broadcast %cst_99 : f32 to vector<16x1xf32>
    %151 = arith.mulf %149, %150 : vector<16x1xf32>
    %152 = math.sqrt %151 : vector<16x1xf32>
    %cst_100 = arith.constant 9.99999974E-6 : f32
    %153 = vector.broadcast %cst_100 : f32 to vector<16x1xf32>
    %154 = arith.addf %152, %153 : vector<16x1xf32>
    %cst_101 = arith.constant 1.000000e+00 : f32
    %155 = vector.broadcast %cst_101 : f32 to vector<16x1xf32>
    %156 = arith.divf %155, %154 : vector<16x1xf32>
    %157 = vector.broadcast %156 : vector<16x1xf32> to vector<16x64xf32>
    %158 = arith.mulf %146, %157 : vector<16x64xf32>
    %159 = tpu.transpose %158, [1, 0] : vector<16x64xf32> -> vector<64x16xf32>
    %c0_102 = arith.constant 0 : index
    %c0_103 = arith.constant 0 : index
    %160 = vector.load %arg6[%c0_102, %c0_103] : memref<16x32xf32, #tpu.memory_space<vmem>>, vector<16x32xf32>
    %cst_104 = arith.constant dense<0.000000e+00> : vector<64x32xf32>
    %161 = tpu.matmul %159, %160, %cst_104 {dimension_numbers = #tpu.dot_dimension_numbers<[1], [0], [0], [1], [0, 0, 1, 1], [], []>} : vector<64x16xf32>, vector<16x32xf32>, vector<64x32xf32> -> vector<64x32xf32>
    %c0_105 = arith.constant 0 : index
    %c0_106 = arith.constant 0 : index
    %162 = vector.load %arg7[%c0_105, %c0_106] : memref<16x16xf32, #tpu.memory_space<vmem>>, vector<16x16xf32>
    %cst_107 = arith.constant dense<0.000000e+00> : vector<16x64xf32>
    %163 = tpu.matmul %162, %158, %cst_107 {dimension_numbers = #tpu.dot_dimension_numbers<[1], [0], [0], [1], [0, 0, 1, 1], [], []>} : vector<16x16xf32>, vector<16x64xf32>, vector<16x64xf32> -> vector<16x64xf32>
    %c0_108 = arith.constant 0 : index
    %c0_109 = arith.constant 0 : index
    %164 = vector.load %arg8[%c0_108, %c0_109] : memref<32x32xf32, #tpu.memory_space<vmem>>, vector<32x32xf32>
    %cst_110 = arith.constant dense<0.000000e+00> : vector<64x32xf32>
    %165 = tpu.matmul %161, %164, %cst_110 {dimension_numbers = #tpu.dot_dimension_numbers<[1], [0], [0], [1], [0, 0, 1, 1], [], []>} : vector<64x32xf32>, vector<32x32xf32>, vector<64x32xf32> -> vector<64x32xf32>
    %cst_111 = arith.constant 2.500000e-01 : f32
    %166 = vector.broadcast %cst_111 : f32 to vector<64x32xf32>
    %167 = arith.mulf %165, %166 : vector<64x32xf32>
    %168 = arith.subf %161, %167 : vector<64x32xf32>
    %169 = arith.mulf %168, %168 : vector<64x32xf32>
    %cst_112 = arith.constant dense<0.000000e+00> : vector<64x32xf32>
    %170 = tpu.matmul %169, %164, %cst_112 {dimension_numbers = #tpu.dot_dimension_numbers<[1], [0], [0], [1], [0, 0, 1, 1], [], []>} : vector<64x32xf32>, vector<32x32xf32>, vector<64x32xf32> -> vector<64x32xf32>
    %cst_113 = arith.constant 0.333333343 : f32
    %171 = vector.broadcast %cst_113 : f32 to vector<64x32xf32>
    %172 = arith.mulf %170, %171 : vector<64x32xf32>
    %173 = math.sqrt %172 : vector<64x32xf32>
    %cst_114 = arith.constant 9.99999974E-6 : f32
    %174 = vector.broadcast %cst_114 : f32 to vector<64x32xf32>
    %175 = arith.addf %173, %174 : vector<64x32xf32>
    %cst_115 = arith.constant 1.000000e+00 : f32
    %176 = vector.broadcast %cst_115 : f32 to vector<64x32xf32>
    %177 = arith.divf %176, %175 : vector<64x32xf32>
    %178 = arith.mulf %168, %177 : vector<64x32xf32>
    %179 = vector.extract_strided_slice %178 {offsets = [0, 0], sizes = [64, 16], strides = [1, 1]} : vector<64x32xf32> to vector<64x16xf32>
    %180 = vector.extract_strided_slice %178 {offsets = [0, 16], sizes = [64, 16], strides = [1, 1]} : vector<64x32xf32> to vector<64x16xf32>
    %cst_116 = arith.constant 0.000000e+00 : f32
    %181 = vector.broadcast %cst_116 : f32 to vector<16x64xf32>
    %c0_117 = arith.constant 0 : index
    %c0_118 = arith.constant 0 : index
    %c0_119 = arith.constant 0 : index
    %182 = vector.load %arg9[%c0_117, %c0_118, %c0_119] : memref<4x1x16xf32, #tpu.memory_space<vmem>>, vector<1x1x16xf32>
    %183 = vector.shape_cast %182 : vector<1x1x16xf32> to vector<1x16xf32>
    %184 = vector.broadcast %183 : vector<1x16xf32> to vector<64x16xf32>
    %185 = arith.mulf %179, %184 : vector<64x16xf32>
    %cst_120 = arith.constant dense<0.000000e+00> : vector<64x64xf32>
    %186 = tpu.matmul %185, %180, %cst_120 {dimension_numbers = #tpu.dot_dimension_numbers<[1], [1], [0], [0], [0, 0, 1, 0], [], []>} : vector<64x16xf32>, vector<64x16xf32>, vector<64x64xf32> -> vector<64x64xf32>
    %cst_121 = arith.constant 5.000000e-01 : f32
    %187 = vector.broadcast %cst_121 : f32 to vector<64x64xf32>
    %188 = arith.mulf %186, %187 : vector<64x64xf32>
    %cst_122 = arith.constant dense<0xFF800000> : vector<64xf32>
    %189 = vector.multi_reduction <maximumf>, %188, %cst_122 [1] : vector<64x64xf32> to vector<64xf32>
    %190 = vector.shape_cast %189 : vector<64xf32> to vector<64x1xf32>
    %191 = vector.broadcast %190 : vector<64x1xf32> to vector<64x64xf32>
    %192 = arith.subf %188, %191 : vector<64x64xf32>
    %193 = math.exp %192 : vector<64x64xf32>
    %cst_123 = arith.constant dense<0.000000e+00> : vector<64xf32>
    %194 = vector.multi_reduction <add>, %193, %cst_123 [1] : vector<64x64xf32> to vector<64xf32>
    %195 = vector.shape_cast %194 : vector<64xf32> to vector<64x1xf32>
    %cst_124 = arith.constant 1.000000e+00 : f32
    %196 = vector.broadcast %cst_124 : f32 to vector<64x1xf32>
    %197 = arith.divf %196, %195 : vector<64x1xf32>
    %198 = vector.broadcast %197 : vector<64x1xf32> to vector<64x64xf32>
    %199 = arith.mulf %193, %198 : vector<64x64xf32>
    %c0_125 = arith.constant 0 : index
    %c0_126 = arith.constant 0 : index
    %c0_127 = arith.constant 0 : index
    %200 = vector.load %arg10[%c0_125, %c0_126, %c0_127] : memref<4x16x1xf32, #tpu.memory_space<vmem>>, vector<1x16x1xf32>
    %201 = vector.shape_cast %200 : vector<1x16x1xf32> to vector<16x1xf32>
    %202 = vector.broadcast %201 : vector<16x1xf32> to vector<16x64xf32>
    %203 = arith.mulf %163, %202 : vector<16x64xf32>
    %cst_128 = arith.constant dense<0.000000e+00> : vector<16x64xf32>
    %204 = tpu.matmul %203, %199, %cst_128 {dimension_numbers = #tpu.dot_dimension_numbers<[1], [1], [0], [0], [0, 0, 1, 0], [], []>} : vector<16x64xf32>, vector<64x64xf32>, vector<16x64xf32> -> vector<16x64xf32>
    %205 = arith.addf %181, %204 : vector<16x64xf32>
    %c1_129 = arith.constant 1 : index
    %c0_130 = arith.constant 0 : index
    %c0_131 = arith.constant 0 : index
    %206 = vector.load %arg9[%c1_129, %c0_130, %c0_131] : memref<4x1x16xf32, #tpu.memory_space<vmem>>, vector<1x1x16xf32>
    %207 = vector.shape_cast %206 : vector<1x1x16xf32> to vector<1x16xf32>
    %208 = vector.broadcast %207 : vector<1x16xf32> to vector<64x16xf32>
    %209 = arith.mulf %179, %208 : vector<64x16xf32>
    %cst_132 = arith.constant dense<0.000000e+00> : vector<64x64xf32>
    %210 = tpu.matmul %209, %180, %cst_132 {dimension_numbers = #tpu.dot_dimension_numbers<[1], [1], [0], [0], [0, 0, 1, 0], [], []>} : vector<64x16xf32>, vector<64x16xf32>, vector<64x64xf32> -> vector<64x64xf32>
    %cst_133 = arith.constant 5.000000e-01 : f32
    %211 = vector.broadcast %cst_133 : f32 to vector<64x64xf32>
    %212 = arith.mulf %210, %211 : vector<64x64xf32>
    %cst_134 = arith.constant dense<0xFF800000> : vector<64xf32>
    %213 = vector.multi_reduction <maximumf>, %212, %cst_134 [1] : vector<64x64xf32> to vector<64xf32>
    %214 = vector.shape_cast %213 : vector<64xf32> to vector<64x1xf32>
    %215 = vector.broadcast %214 : vector<64x1xf32> to vector<64x64xf32>
    %216 = arith.subf %212, %215 : vector<64x64xf32>
    %217 = math.exp %216 : vector<64x64xf32>
    %cst_135 = arith.constant dense<0.000000e+00> : vector<64xf32>
    %218 = vector.multi_reduction <add>, %217, %cst_135 [1] : vector<64x64xf32> to vector<64xf32>
    %219 = vector.shape_cast %218 : vector<64xf32> to vector<64x1xf32>
    %cst_136 = arith.constant 1.000000e+00 : f32
    %220 = vector.broadcast %cst_136 : f32 to vector<64x1xf32>
    %221 = arith.divf %220, %219 : vector<64x1xf32>
    %222 = vector.broadcast %221 : vector<64x1xf32> to vector<64x64xf32>
    %223 = arith.mulf %217, %222 : vector<64x64xf32>
    %c1_137 = arith.constant 1 : index
    %c0_138 = arith.constant 0 : index
    %c0_139 = arith.constant 0 : index
    %224 = vector.load %arg10[%c1_137, %c0_138, %c0_139] : memref<4x16x1xf32, #tpu.memory_space<vmem>>, vector<1x16x1xf32>
    %225 = vector.shape_cast %224 : vector<1x16x1xf32> to vector<16x1xf32>
    %226 = vector.broadcast %225 : vector<16x1xf32> to vector<16x64xf32>
    %227 = arith.mulf %163, %226 : vector<16x64xf32>
    %cst_140 = arith.constant dense<0.000000e+00> : vector<16x64xf32>
    %228 = tpu.matmul %227, %223, %cst_140 {dimension_numbers = #tpu.dot_dimension_numbers<[1], [1], [0], [0], [0, 0, 1, 0], [], []>} : vector<16x64xf32>, vector<64x64xf32>, vector<16x64xf32> -> vector<16x64xf32>
    %229 = arith.addf %205, %228 : vector<16x64xf32>
    %c2_141 = arith.constant 2 : index
    %c0_142 = arith.constant 0 : index
    %c0_143 = arith.constant 0 : index
    %230 = vector.load %arg9[%c2_141, %c0_142, %c0_143] : memref<4x1x16xf32, #tpu.memory_space<vmem>>, vector<1x1x16xf32>
    %231 = vector.shape_cast %230 : vector<1x1x16xf32> to vector<1x16xf32>
    %232 = vector.broadcast %231 : vector<1x16xf32> to vector<64x16xf32>
    %233 = arith.mulf %179, %232 : vector<64x16xf32>
    %cst_144 = arith.constant dense<0.000000e+00> : vector<64x64xf32>
    %234 = tpu.matmul %233, %180, %cst_144 {dimension_numbers = #tpu.dot_dimension_numbers<[1], [1], [0], [0], [0, 0, 1, 0], [], []>} : vector<64x16xf32>, vector<64x16xf32>, vector<64x64xf32> -> vector<64x64xf32>
    %cst_145 = arith.constant 5.000000e-01 : f32
    %235 = vector.broadcast %cst_145 : f32 to vector<64x64xf32>
    %236 = arith.mulf %234, %235 : vector<64x64xf32>
    %cst_146 = arith.constant dense<0xFF800000> : vector<64xf32>
    %237 = vector.multi_reduction <maximumf>, %236, %cst_146 [1] : vector<64x64xf32> to vector<64xf32>
    %238 = vector.shape_cast %237 : vector<64xf32> to vector<64x1xf32>
    %239 = vector.broadcast %238 : vector<64x1xf32> to vector<64x64xf32>
    %240 = arith.subf %236, %239 : vector<64x64xf32>
    %241 = math.exp %240 : vector<64x64xf32>
    %cst_147 = arith.constant dense<0.000000e+00> : vector<64xf32>
    %242 = vector.multi_reduction <add>, %241, %cst_147 [1] : vector<64x64xf32> to vector<64xf32>
    %243 = vector.shape_cast %242 : vector<64xf32> to vector<64x1xf32>
    %cst_148 = arith.constant 1.000000e+00 : f32
    %244 = vector.broadcast %cst_148 : f32 to vector<64x1xf32>
    %245 = arith.divf %244, %243 : vector<64x1xf32>
    %246 = vector.broadcast %245 : vector<64x1xf32> to vector<64x64xf32>
    %247 = arith.mulf %241, %246 : vector<64x64xf32>
    %c2_149 = arith.constant 2 : index
    %c0_150 = arith.constant 0 : index
    %c0_151 = arith.constant 0 : index
    %248 = vector.load %arg10[%c2_149, %c0_150, %c0_151] : memref<4x16x1xf32, #tpu.memory_space<vmem>>, vector<1x16x1xf32>
    %249 = vector.shape_cast %248 : vector<1x16x1xf32> to vector<16x1xf32>
    %250 = vector.broadcast %249 : vector<16x1xf32> to vector<16x64xf32>
    %251 = arith.mulf %163, %250 : vector<16x64xf32>
    %cst_152 = arith.constant dense<0.000000e+00> : vector<16x64xf32>
    %252 = tpu.matmul %251, %247, %cst_152 {dimension_numbers = #tpu.dot_dimension_numbers<[1], [1], [0], [0], [0, 0, 1, 0], [], []>} : vector<16x64xf32>, vector<64x64xf32>, vector<16x64xf32> -> vector<16x64xf32>
    %253 = arith.addf %229, %252 : vector<16x64xf32>
    %c3_153 = arith.constant 3 : index
    %c0_154 = arith.constant 0 : index
    %c0_155 = arith.constant 0 : index
    %254 = vector.load %arg9[%c3_153, %c0_154, %c0_155] : memref<4x1x16xf32, #tpu.memory_space<vmem>>, vector<1x1x16xf32>
    %255 = vector.shape_cast %254 : vector<1x1x16xf32> to vector<1x16xf32>
    %256 = vector.broadcast %255 : vector<1x16xf32> to vector<64x16xf32>
    %257 = arith.mulf %179, %256 : vector<64x16xf32>
    %cst_156 = arith.constant dense<0.000000e+00> : vector<64x64xf32>
    %258 = tpu.matmul %257, %180, %cst_156 {dimension_numbers = #tpu.dot_dimension_numbers<[1], [1], [0], [0], [0, 0, 1, 0], [], []>} : vector<64x16xf32>, vector<64x16xf32>, vector<64x64xf32> -> vector<64x64xf32>
    %cst_157 = arith.constant 5.000000e-01 : f32
    %259 = vector.broadcast %cst_157 : f32 to vector<64x64xf32>
    %260 = arith.mulf %258, %259 : vector<64x64xf32>
    %cst_158 = arith.constant dense<0xFF800000> : vector<64xf32>
    %261 = vector.multi_reduction <maximumf>, %260, %cst_158 [1] : vector<64x64xf32> to vector<64xf32>
    %262 = vector.shape_cast %261 : vector<64xf32> to vector<64x1xf32>
    %263 = vector.broadcast %262 : vector<64x1xf32> to vector<64x64xf32>
    %264 = arith.subf %260, %263 : vector<64x64xf32>
    %265 = math.exp %264 : vector<64x64xf32>
    %cst_159 = arith.constant dense<0.000000e+00> : vector<64xf32>
    %266 = vector.multi_reduction <add>, %265, %cst_159 [1] : vector<64x64xf32> to vector<64xf32>
    %267 = vector.shape_cast %266 : vector<64xf32> to vector<64x1xf32>
    %cst_160 = arith.constant 1.000000e+00 : f32
    %268 = vector.broadcast %cst_160 : f32 to vector<64x1xf32>
    %269 = arith.divf %268, %267 : vector<64x1xf32>
    %270 = vector.broadcast %269 : vector<64x1xf32> to vector<64x64xf32>
    %271 = arith.mulf %265, %270 : vector<64x64xf32>
    %c3_161 = arith.constant 3 : index
    %c0_162 = arith.constant 0 : index
    %c0_163 = arith.constant 0 : index
    %272 = vector.load %arg10[%c3_161, %c0_162, %c0_163] : memref<4x16x1xf32, #tpu.memory_space<vmem>>, vector<1x16x1xf32>
    %273 = vector.shape_cast %272 : vector<1x16x1xf32> to vector<16x1xf32>
    %274 = vector.broadcast %273 : vector<16x1xf32> to vector<16x64xf32>
    %275 = arith.mulf %163, %274 : vector<16x64xf32>
    %cst_164 = arith.constant dense<0.000000e+00> : vector<16x64xf32>
    %276 = tpu.matmul %275, %271, %cst_164 {dimension_numbers = #tpu.dot_dimension_numbers<[1], [1], [0], [0], [0, 0, 1, 0], [], []>} : vector<16x64xf32>, vector<64x64xf32>, vector<16x64xf32> -> vector<16x64xf32>
    %277 = arith.addf %253, %276 : vector<16x64xf32>
    %cst_165 = arith.constant dense<0.000000e+00> : vector<16xf32>
    %278 = vector.multi_reduction <add>, %277, %cst_165 [1] : vector<16x64xf32> to vector<16xf32>
    %279 = vector.shape_cast %278 : vector<16xf32> to vector<16x1xf32>
    %cst_166 = arith.constant 1.562500e-02 : f32
    %280 = vector.broadcast %cst_166 : f32 to vector<16x1xf32>
    %281 = arith.mulf %279, %280 : vector<16x1xf32>
    %282 = vector.broadcast %281 : vector<16x1xf32> to vector<16x64xf32>
    %283 = arith.subf %277, %282 : vector<16x64xf32>
    %284 = arith.mulf %283, %283 : vector<16x64xf32>
    %cst_167 = arith.constant dense<0.000000e+00> : vector<16xf32>
    %285 = vector.multi_reduction <add>, %284, %cst_167 [1] : vector<16x64xf32> to vector<16xf32>
    %286 = vector.shape_cast %285 : vector<16xf32> to vector<16x1xf32>
    %cst_168 = arith.constant 0.0158730168 : f32
    %287 = vector.broadcast %cst_168 : f32 to vector<16x1xf32>
    %288 = arith.mulf %286, %287 : vector<16x1xf32>
    %289 = math.sqrt %288 : vector<16x1xf32>
    %cst_169 = arith.constant 9.99999974E-6 : f32
    %290 = vector.broadcast %cst_169 : f32 to vector<16x1xf32>
    %291 = arith.addf %289, %290 : vector<16x1xf32>
    %cst_170 = arith.constant 1.000000e+00 : f32
    %292 = vector.broadcast %cst_170 : f32 to vector<16x1xf32>
    %293 = arith.divf %292, %291 : vector<16x1xf32>
    %294 = vector.broadcast %293 : vector<16x1xf32> to vector<16x64xf32>
    %295 = arith.mulf %283, %294 : vector<16x64xf32>
    %296 = arith.addf %140, %295 : vector<16x64xf32>
    %c0_171 = arith.constant 0 : index
    %c0_172 = arith.constant 0 : index
    %c0_173 = arith.constant 0 : index
    %297 = vector.load %arg12[%c0_171, %c0_172, %c0_173] : memref<1x16x64xf32, #tpu.memory_space<vmem>>, vector<1x16x64xf32>
    %298 = vector.shape_cast %297 : vector<1x16x64xf32> to vector<16x64xf32>
    %299 = vector.shape_cast %296 : vector<16x64xf32> to vector<1x16x64xf32>
    tpu.vector_store %arg12[%c0_171, %c0_172, %c0_173], %299 {strides = array<i32>} : memref<1x16x64xf32, #tpu.memory_space<vmem>>, vector<1x16x64xf32>,
    return
  }
  func.func @transform_0(%arg0: i32) -> (i32, i32, i32) {
    %c0_i32 = arith.constant 0 : i32
    %c0_i32_0 = arith.constant 0 : i32
    %c0_i32_1 = arith.constant 0 : i32
    return %arg0, %c0_i32, %c0_i32_0 : i32, i32, i32
  }
  func.func @transform_1(%arg0: i32) -> (i32, i32) {
    %c0_i32 = arith.constant 0 : i32
    %c0_i32_0 = arith.constant 0 : i32
    %c0_i32_1 = arith.constant 0 : i32
    return %c0_i32, %c0_i32_0 : i32, i32
  }
  func.func @transform_2(%arg0: i32) -> (i32, i32) {
    %c0_i32 = arith.constant 0 : i32
    %c0_i32_0 = arith.constant 0 : i32
    %c0_i32_1 = arith.constant 0 : i32
    return %c0_i32, %c0_i32_0 : i32, i32
  }
  func.func @transform_3(%arg0: i32) -> (i32, i32) {
    %c0_i32 = arith.constant 0 : i32
    %c0_i32_0 = arith.constant 0 : i32
    %c0_i32_1 = arith.constant 0 : i32
    return %c0_i32, %c0_i32_0 : i32, i32
  }
  func.func @transform_4(%arg0: i32) -> (i32, i32) {
    %c0_i32 = arith.constant 0 : i32
    %c0_i32_0 = arith.constant 0 : i32
    %c0_i32_1 = arith.constant 0 : i32
    return %c0_i32, %c0_i32_0 : i32, i32
  }
  func.func @transform_5(%arg0: i32) -> (i32, i32) {
    %c0_i32 = arith.constant 0 : i32
    %c0_i32_0 = arith.constant 0 : i32
    %c0_i32_1 = arith.constant 0 : i32
    return %c0_i32, %c0_i32_0 : i32, i32
  }
  func.func @transform_6(%arg0: i32) -> (i32, i32) {
    %c0_i32 = arith.constant 0 : i32
    %c0_i32_0 = arith.constant 0 : i32
    %c0_i32_1 = arith.constant 0 : i32
    return %c0_i32, %c0_i32_0 : i32, i32
  }
  func.func @transform_7(%arg0: i32) -> (i32, i32) {
    %c0_i32 = arith.constant 0 : i32
    %c0_i32_0 = arith.constant 0 : i32
    %c0_i32_1 = arith.constant 0 : i32
    return %c0_i32, %c0_i32_0 : i32, i32
  }
  func.func @transform_8(%arg0: i32) -> (i32, i32, i32) {
    %c0_i32 = arith.constant 0 : i32
    %c0_i32_0 = arith.constant 0 : i32
    %c0_i32_1 = arith.constant 0 : i32
    %c0_i32_2 = arith.constant 0 : i32
    return %c0_i32, %c0_i32_0, %c0_i32_1 : i32, i32, i32
  }
  func.func @transform_9(%arg0: i32) -> (i32, i32, i32) {
    %c0_i32 = arith.constant 0 : i32
    %c0_i32_0 = arith.constant 0 : i32
    %c0_i32_1 = arith.constant 0 : i32
    %c0_i32_2 = arith.constant 0 : i32
    return %c0_i32, %c0_i32_0, %c0_i32_1 : i32, i32, i32
  }
  func.func @transform_10(%arg0: i32) -> (i32, i32, i32) {
    %c0_i32 = arith.constant 0 : i32
    %c0_i32_0 = arith.constant 0 : i32
    %c0_i32_1 = arith.constant 0 : i32
    %c0_i32_2 = arith.constant 0 : i32
    return %c0_i32, %c0_i32_0, %c0_i32_1 : i32, i32, i32
  }
  func.func @transform_11(%arg0: i32) -> (i32, i32, i32) {
    %c0_i32 = arith.constant 0 : i32
    %c0_i32_0 = arith.constant 0 : i32
    %c0_i32_1 = arith.constant 0 : i32
    return %arg0, %c0_i32, %c0_i32_0 : i32, i32, i32
  }
}

</mosaic_0001>

<llo_original>
// kernel: tpu_custom_call.1
$region0: #{tpu_custom_call.1}
  #allocation0 [shape = 'u32[]', space=smem, size = 0x4, offset = 0x4, fixed_abs, tag = 'smem constant byte address 0x4 - core index']
  #allocation1 [shape = 'u32[144,128]{1,0:T(1,128)}', space=vmem, size = 0x12000, scoped, tag = 'internal scratch']
  #allocation2 [shape = 'f32[16,128]{1,0:T(8,128)}', space=vmem, size = 0x2000, scoped, tag = 'scratch operand']
  %s0 = inlined_call_operand.vmem [shape: f32[2,16,64], index: 0, kind: input, shape index: {}]
  %s1 = inlined_call_operand.vmem [shape: f32[16,144], index: 1, kind: input, shape index: {}]
  %s2 = inlined_call_operand.vmem [shape: f32[16,1], index: 2, kind: input, shape index: {}]
  %s3 = inlined_call_operand.vmem [shape: f32[16,144], index: 3, kind: input, shape index: {}]
  %s4 = inlined_call_operand.vmem [shape: f32[16,1], index: 4, kind: input, shape index: {}]
  %s5 = inlined_call_operand.hbm [shape: f32[16,32], index: 5, kind: input, shape index: {}]
  %s6 = inlined_call_operand.hbm [shape: f32[16,16], index: 6, kind: input, shape index: {}]
  %s7 = inlined_call_operand.vmem [shape: f32[32,32], index: 7, kind: input, shape index: {}]
  %s8 = inlined_call_operand.hbm [shape: f32[4,1,16], index: 8, kind: input, shape index: {}]
  %s9 = inlined_call_operand.vmem [shape: f32[4,16,1], index: 9, kind: input, shape index: {}]
  %s10 = inlined_call_operand.vmem [shape: f32[9,1,64], index: 10, kind: input, shape index: {}]
  %s11 = inlined_call_operand.hbm [shape: f32[2,16,64], index: 11, kind: output, shape index: {}]
  %s12 = sld [smem:[#allocation0]]
  $region89: #{tpu_custom_call.1} parent=0
    _
  %s14 = ssub.s32 1, %s12
  %s15 = scalar_select 0, %s14, %s12
  $region1: #{tpu_custom_call.1} parent=0
    #allocation3 [shape = 'u8[8192]{0}', space=vmem, size = 0x2000, scoped, tag = 'input window, operand 5, single buffered']
    #allocation4 [shape = 's32[2]{0}', space=sflag, size = 0x8, scoped, tag = 'scoped memory for tpu_custom_call.1']
    #allocation5 [shape = 's32[2]{0}', space=sflag, size = 0x8, scoped, tag = 'scoped memory for tpu_custom_call.1']
    #allocation6 [shape = 'u8[8192]{0}', space=vmem, size = 0x2000, scoped, tag = 'input window, operand 6, single buffered']
    #allocation7 [shape = 's32[1]{0}', space=sflag, size = 0x4, scoped, tag = 'scoped memory for tpu_custom_call.1']
    #allocation8 [shape = 'u8[2048]{0}', space=vmem, size = 0x800, scoped, tag = 'input window, operand 8, single buffered']
    #allocation9 [shape = 'u8[16384]{0}', space=vmem, size = 0x4000, scoped, tag = 'output window, operand 0']
    %16 = vsyncpa [#allocation4], 0
    %17 = vsyncpa [#allocation7], 0
    %18 = vsyncpa [#allocation5], 0
    %s19 = scalar_lea.sflag [#allocation5], 1
    %20 = vsyncpa %s19, 0
    loop: start=0, step=1, limit=4
    $region2: #{tpu_custom_call.1} parent=1 // loop_pre_header
      _
    $region3: #{tpu_custom_call.1} parent=1 // loop_header
      %s22 = sphi 0, %s26
      %p23 = scmp.ge.s32.totalorder %s22, 4
      %s32 = sphi 0, %s34
      %s35 = sphi 0, %s32
      %s36 = sphi 0, %s35
      %s52 = sphi 0, %s36
      %s56 = sphi 0, %s56
      %s58 = sphi 0, %s56
      %s59 = sphi 0, %s58
      %s73 = sphi 0, %s59
      %s77 = sphi 0, %s77
      %s79 = sphi 0, %s77
      %s80 = sphi 0, %s79
      %s94 = sphi 0, %s80
      %s98 = sphi 0, %s98
      %s100 = sphi 0, %s98
      %s101 = sphi 0, %s100
      %s115 = sphi 0, %s101
      %s119 = sphi 0, %s119
      %s121 = sphi 0, %s119
      %s122 = sphi 0, %s121
      %s136 = sphi 0, %s122
      %s140 = sphi 0, %s140
      %s142 = sphi 0, %s140
      %s143 = sphi 0, %s142
      %s157 = sphi 0, %s143
      %s161 = sphi 0, %s161
      %s163 = sphi 0, %s161
      %s164 = sphi 0, %s163
      %s178 = sphi 0, %s164
      %s182 = sphi 0, %s182
      %s184 = sphi 0, %s182
      %s185 = sphi 0, %s184
      %s199 = sphi 0, %s185
      %s203 = sphi 0, %s203
      %s205 = sphi 0, %s203
      %s206 = sphi 0, %s205
      %s220 = sphi 0, %s206
      %s224 = sphi 0, %s224
      %s226 = sphi 0, %s224
      %s227 = sphi 0, %s226
      %s241 = sphi 0, %s227
      %s245 = sphi 0, %s245
      %s247 = sphi 0, %s245
      %s248 = sphi 0, %s247
      %s262 = sphi 0, %s248
      %s268 = sphi 0, %s270
      %s271 = sphi 0, %s268
      %s272 = sphi 0, %s271
      %s288 = sphi 0, %s272
    $region4: #{tpu_custom_call.1} parent=1 // loop_header_branch
      %25 = sbr.rel (%p23) target = $region8
    $region5: #{tpu_custom_call.1} parent=1 // loop_body
      %s27 = ssub.s32 %s22, 1
      %s28 = ssub.s32 %s22, 2
      %s29 = sadd.s32 %s22, 1
      %s30 = ssub.s32 %s22, %s29
      %p31 = scmp.eq.s32.totalorder %s30, 0
      %s33 = sadd.s32 %s32, 1
      %s34 = scalar_select %p31, %s32, %s33
      %p37 = pneg %p31
      %p38 = scmp.eq.s32.totalorder %s22, 1
      %p39 = por %p37, %p38
      %p40 = scmp.ne.s32.totalorder %s32, %s35
      %p41 = scmp.eq.s32.totalorder %s22, 0
      %p42 = por %p40, %p41
      %p43 = scmp.ne.s32.totalorder %s32, %s35
      %p44 = scmp.eq.s32.totalorder %s27, 1
      %p45 = por %p43, %p44
      %p46 = scmp.ne.s32.totalorder %s35, %s36
      %p47 = scmp.eq.s32.totalorder %s27, 0
      %p48 = por %p46, %p47
      %p49 = scmp.ne.s32.totalorder %s35, %s36
      %p50 = scmp.eq.s32.totalorder %s28, 1
      %p51 = por %p49, %p50
      %p53 = scmp.ne.s32.totalorder %s36, %s52
      %p54 = scmp.eq.s32.totalorder %s28, 0
      %p55 = por %p53, %p54
      %s57 = sadd.s32 %s56, 1
      %p60 = scmp.eq.s32.totalorder %s22, 1
      %p61 = scmp.ne.s32.totalorder %s56, %s58
      %p62 = scmp.eq.s32.totalorder %s22, 0
      %p63 = por %p61, %p62
      %p64 = scmp.ne.s32.totalorder %s56, %s58
      %p65 = scmp.eq.s32.totalorder %s27, 1
      %p66 = por %p64, %p65
      %p67 = scmp.ne.s32.totalorder %s58, %s59
      %p68 = scmp.eq.s32.totalorder %s27, 0
      %p69 = por %p67, %p68
      %p70 = scmp.ne.s32.totalorder %s58, %s59
      %p71 = scmp.eq.s32.totalorder %s28, 1
      %p72 = por %p70, %p71
      %p74 = scmp.ne.s32.totalorder %s59, %s73
      %p75 = scmp.eq.s32.totalorder %s28, 0
      %p76 = por %p74, %p75
      %s78 = sadd.s32 %s77, 1
      %p81 = scmp.eq.s32.totalorder %s22, 1
      %p82 = scmp.ne.s32.totalorder %s77, %s79
      %p83 = scmp.eq.s32.totalorder %s22, 0
      %p84 = por %p82, %p83
      %p85 = scmp.ne.s32.totalorder %s77, %s79
      %p86 = scmp.eq.s32.totalorder %s27, 1
      %p87 = por %p85, %p86
      %p88 = scmp.ne.s32.totalorder %s79, %s80
      %p89 = scmp.eq.s32.totalorder %s27, 0
      %p90 = por %p88, %p89
      %p91 = scmp.ne.s32.totalorder %s79, %s80
      %p92 = scmp.eq.s32.totalorder %s28, 1
      %p93 = por %p91, %p92
      %p95 = scmp.ne.s32.totalorder %s80, %s94
      %p96 = scmp.eq.s32.totalorder %s28, 0
      %p97 = por %p95, %p96
      %s99 = sadd.s32 %s98, 1
      %p102 = scmp.eq.s32.totalorder %s22, 1
      %p103 = scmp.ne.s32.totalorder %s98, %s100
      %p104 = scmp.eq.s32.totalorder %s22, 0
      %p105 = por %p103, %p104
      %p106 = scmp.ne.s32.totalorder %s98, %s100
      %p107 = scmp.eq.s32.totalorder %s27, 1
      %p108 = por %p106, %p107
      %p109 = scmp.ne.s32.totalorder %s100, %s101
      %p110 = scmp.eq.s32.totalorder %s27, 0
      %p111 = por %p109, %p110
      %p112 = scmp.ne.s32.totalorder %s100, %s101
      %p113 = scmp.eq.s32.totalorder %s28, 1
      %p114 = por %p112, %p113
      %p116 = scmp.ne.s32.totalorder %s101, %s115
      %p117 = scmp.eq.s32.totalorder %s28, 0
      %p118 = por %p116, %p117
      %s120 = sadd.s32 %s119, 1
      %p123 = scmp.eq.s32.totalorder %s22, 1
      %p124 = scmp.ne.s32.totalorder %s119, %s121
      %p125 = scmp.eq.s32.totalorder %s22, 0
      %p126 = por %p124, %p125
      %p127 = scmp.ne.s32.totalorder %s119, %s121
      %p128 = scmp.eq.s32.totalorder %s27, 1
      %p129 = por %p127, %p128
      %p130 = scmp.ne.s32.totalorder %s121, %s122
      %p131 = scmp.eq.s32.totalorder %s27, 0
      %p132 = por %p130, %p131
      %p133 = scmp.ne.s32.totalorder %s121, %s122
      %p134 = scmp.eq.s32.totalorder %s28, 1
      %p135 = por %p133, %p134
      %p137 = scmp.ne.s32.totalorder %s122, %s136
      %p138 = scmp.eq.s32.totalorder %s28, 0
      %p139 = por %p137, %p138
      %s141 = sadd.s32 %s140, 1
      %p144 = scmp.eq.s32.totalorder %s22, 1
      %p145 = scmp.ne.s32.totalorder %s140, %s142
      %p146 = scmp.eq.s32.totalorder %s22, 0
      %p147 = por %p145, %p146
      %p148 = scmp.ne.s32.totalorder %s140, %s142
      %p149 = scmp.eq.s32.totalorder %s27, 1
      %p150 = por %p148, %p149
      %p151 = scmp.ne.s32.totalorder %s142, %s143
      %p152 = scmp.eq.s32.totalorder %s27, 0
      %p153 = por %p151, %p152
      %p154 = scmp.ne.s32.totalorder %s142, %s143
      %p155 = scmp.eq.s32.totalorder %s28, 1
      %p156 = por %p154, %p155
      %p158 = scmp.ne.s32.totalorder %s143, %s157
      %p159 = scmp.eq.s32.totalorder %s28, 0
      %p160 = por %p158, %p159
      %s162 = sadd.s32 %s161, 1
      %p165 = scmp.eq.s32.totalorder %s22, 1
      %p166 = scmp.ne.s32.totalorder %s161, %s163
      %p167 = scmp.eq.s32.totalorder %s22, 0
      %p168 = por %p166, %p167
      %p169 = scmp.ne.s32.totalorder %s161, %s163
      %p170 = scmp.eq.s32.totalorder %s27, 1
      %p171 = por %p169, %p170
      %p172 = scmp.ne.s32.totalorder %s163, %s164
      %p173 = scmp.eq.s32.totalorder %s27, 0
      %p174 = por %p172, %p173
      %p175 = scmp.ne.s32.totalorder %s163, %s164
      %p176 = scmp.eq.s32.totalorder %s28, 1
      %p177 = por %p175, %p176
      %p179 = scmp.ne.s32.totalorder %s164, %s178
      %p180 = scmp.eq.s32.totalorder %s28, 0
      %p181 = por %p179, %p180
      %s183 = sadd.s32 %s182, 1
      %p186 = scmp.eq.s32.totalorder %s22, 1
      %p187 = scmp.ne.s32.totalorder %s182, %s184
      %p188 = scmp.eq.s32.totalorder %s22, 0
      %p189 = por %p187, %p188
      %p190 = scmp.ne.s32.totalorder %s182, %s184
      %p191 = scmp.eq.s32.totalorder %s27, 1
      %p192 = por %p190, %p191
      %p193 = scmp.ne.s32.totalorder %s184, %s185
      %p194 = scmp.eq.s32.totalorder %s27, 0
      %p195 = por %p193, %p194
      %p196 = scmp.ne.s32.totalorder %s184, %s185
      %p197 = scmp.eq.s32.totalorder %s28, 1
      %p198 = por %p196, %p197
      %p200 = scmp.ne.s32.totalorder %s185, %s199
      %p201 = scmp.eq.s32.totalorder %s28, 0
      %p202 = por %p200, %p201
      %s204 = sadd.s32 %s203, 1
      %p207 = scmp.eq.s32.totalorder %s22, 1
      %p208 = scmp.ne.s32.totalorder %s203, %s205
      %p209 = scmp.eq.s32.totalorder %s22, 0
      %p210 = por %p208, %p209
      %p211 = scmp.ne.s32.totalorder %s203, %s205
      %p212 = scmp.eq.s32.totalorder %s27, 1
      %p213 = por %p211, %p212
      %p214 = scmp.ne.s32.totalorder %s205, %s206
      %p215 = scmp.eq.s32.totalorder %s27, 0
      %p216 = por %p214, %p215
      %p217 = scmp.ne.s32.totalorder %s205, %s206
      %p218 = scmp.eq.s32.totalorder %s28, 1
      %p219 = por %p217, %p218
      %p221 = scmp.ne.s32.totalorder %s206, %s220
      %p222 = scmp.eq.s32.totalorder %s28, 0
      %p223 = por %p221, %p222
      %s225 = sadd.s32 %s224, 1
      %p228 = scmp.eq.s32.totalorder %s22, 1
      %p229 = scmp.ne.s32.totalorder %s224, %s226
      %p230 = scmp.eq.s32.totalorder %s22, 0
      %p231 = por %p229, %p230
      %p232 = scmp.ne.s32.totalorder %s224, %s226
      %p233 = scmp.eq.s32.totalorder %s27, 1
      %p234 = por %p232, %p233
      %p235 = scmp.ne.s32.totalorder %s226, %s227
      %p236 = scmp.eq.s32.totalorder %s27, 0
      %p237 = por %p235, %p236
      %p238 = scmp.ne.s32.totalorder %s226, %s227
      %p239 = scmp.eq.s32.totalorder %s28, 1
      %p240 = por %p238, %p239
      %p242 = scmp.ne.s32.totalorder %s227, %s241
      %p243 = scmp.eq.s32.totalorder %s28, 0
      %p244 = por %p242, %p243
      %s246 = sadd.s32 %s245, 1
      %p249 = scmp.eq.s32.totalorder %s22, 1
      %p250 = scmp.ne.s32.totalorder %s245, %s247
      %p251 = scmp.eq.s32.totalorder %s22, 0
      %p252 = por %p250, %p251
      %p253 = scmp.ne.s32.totalorder %s245, %s247
      %p254 = scmp.eq.s32.totalorder %s27, 1
      %p255 = por %p253, %p254
      %p256 = scmp.ne.s32.totalorder %s247, %s248
      %p257 = scmp.eq.s32.totalorder %s27, 0
      %p258 = por %p256, %p257
      %p259 = scmp.ne.s32.totalorder %s247, %s248
      %p260 = scmp.eq.s32.totalorder %s28, 1
      %p261 = por %p259, %p260
      %p263 = scmp.ne.s32.totalorder %s248, %s262
      %p264 = scmp.eq.s32.totalorder %s28, 0
      %p265 = por %p263, %p264
      %s266 = ssub.s32 %s22, %s29
      %p267 = scmp.eq.s32.totalorder %s266, 0
      %s269 = sadd.s32 %s268, 1
      %s270 = scalar_select %p267, %s268, %s269
      %p273 = pneg %p267
      %p274 = scmp.eq.s32.totalorder %s22, 1
      %p275 = por %p273, %p274
      %p276 = scmp.ne.s32.totalorder %s268, %s271
      %p277 = scmp.eq.s32.totalorder %s22, 0
      %p278 = por %p276, %p277
      %p279 = scmp.ne.s32.totalorder %s268, %s271
      %p280 = scmp.eq.s32.totalorder %s27, 1
      %p281 = por %p279, %p280
      %p282 = scmp.ne.s32.totalorder %s271, %s272
      %p283 = scmp.eq.s32.totalorder %s27, 0
      %p284 = por %p282, %p283
      %p285 = scmp.ne.s32.totalorder %s271, %s272
      %p286 = scmp.eq.s32.totalorder %s28, 1
      %p287 = por %p285, %p286
      %p289 = scmp.ne.s32.totalorder %s272, %s288
      %p290 = scmp.eq.s32.totalorder %s28, 0
      %p291 = por %p289, %p290
      %p292 = scmp.le.s32.totalorder 1, %s22
      %p293 = scmp.lt.s32.totalorder %s22, 3
      %p294 = pnand %p292, %p293
      %p295 = pneg %p294
      // Predicated region
      $region9: #{tpu_custom_call.1} parent=5 // pred_check
        _
      $region10: #{tpu_custom_call.1} parent=5 // pred_check_branch
        %297 = sbr.rel (%p294) target = $region12
      $region11: #{tpu_custom_call.1} parent=5 // pred_region
        %s298 = ssub.s32 %s22, 1
        // Predicated region
        $region13: #{tpu_custom_call.1} parent=11 // pred_check
          %p299 = pneg %p69
        $region14: #{tpu_custom_call.1} parent=11 // pred_check_branch
          %301 = sbr.rel (%p299) target = $region16
        $region15: #{tpu_custom_call.1} parent=11 // pred_region
          _
        $region16: #{tpu_custom_call.1} parent=11 // pred_fallthru
          _
        // Predicated region
        $region17: #{tpu_custom_call.1} parent=11 // pred_check
          %p302 = pneg %p90
        $region18: #{tpu_custom_call.1} parent=11 // pred_check_branch
          %304 = sbr.rel (%p302) target = $region20
        $region19: #{tpu_custom_call.1} parent=11 // pred_region
          _
        $region20: #{tpu_custom_call.1} parent=11 // pred_fallthru
          _
        // Predicated region
        $region21: #{tpu_custom_call.1} parent=11 // pred_check
          %p305 = pneg %p111
        $region22: #{tpu_custom_call.1} parent=11 // pred_check_branch
          %307 = sbr.rel (%p305) target = $region24
        $region23: #{tpu_custom_call.1} parent=11 // pred_region
          _
        $region24: #{tpu_custom_call.1} parent=11 // pred_fallthru
          _
        // Predicated region
        $region25: #{tpu_custom_call.1} parent=11 // pred_check
          %p308 = pneg %p132
        $region26: #{tpu_custom_call.1} parent=11 // pred_check_branch
          %310 = sbr.rel (%p308) target = $region28
        $region27: #{tpu_custom_call.1} parent=11 // pred_region
          _
        $region28: #{tpu_custom_call.1} parent=11 // pred_fallthru
          _
        // Predicated region
        $region29: #{tpu_custom_call.1} parent=11 // pred_check
          %p311 = pneg %p153
        $region30: #{tpu_custom_call.1} parent=11 // pred_check_branch
          %313 = sbr.rel (%p311) target = $region32
        $region31: #{tpu_custom_call.1} parent=11 // pred_region
          %s315 = ssub.s32 256, 256
          %316 = vsyncadd [#allocation4], %s315
          %s317 = sshll.u32 [#allocation3], 4
          %s318 = int_to_ptr.vmem [resolvable:$true] %s317
          %323 = dma.hbm_to_vmem [thread:$0]  %s5, 256, %s318, [#allocation4], 128, 128, 8
        $region32: #{tpu_custom_call.1} parent=11 // pred_fallthru
          _
        // Predicated region
        $region33: #{tpu_custom_call.1} parent=11 // pred_check
          %p324 = pneg %p174
        $region34: #{tpu_custom_call.1} parent=11 // pred_check_branch
          %326 = sbr.rel (%p324) target = $region36
        $region35: #{tpu_custom_call.1} parent=11 // pred_region
          %s328 = ssub.s32 256, 256
          %329 = vsyncadd [#allocation7], %s328
          %s330 = sshll.u32 [#allocation6], 4
          %s331 = int_to_ptr.vmem [resolvable:$true] %s330
          %336 = dma.hbm_to_vmem [thread:$0]  %s6, 256, %s331, [#allocation7], 128, 128, 8
        $region36: #{tpu_custom_call.1} parent=11 // pred_fallthru
          _
        // Predicated region
        $region37: #{tpu_custom_call.1} parent=11 // pred_check
          %p337 = pneg %p195
        $region38: #{tpu_custom_call.1} parent=11 // pred_check_branch
          %339 = sbr.rel (%p337) target = $region40
        $region39: #{tpu_custom_call.1} parent=11 // pred_region
          _
        $region40: #{tpu_custom_call.1} parent=11 // pred_fallthru
          _
        // Predicated region
        $region41: #{tpu_custom_call.1} parent=11 // pred_check
          %p340 = pneg %p216
        $region42: #{tpu_custom_call.1} parent=11 // pred_check_branch
          %342 = sbr.rel (%p340) target = $region44
        $region43: #{tpu_custom_call.1} parent=11 // pred_region
          %s344 = ssub.s32 64, 64
          %345 = vsyncadd [#allocation7], %s344
          %s346 = sshll.u32 [#allocation8], 4
          %s347 = int_to_ptr.vmem [resolvable:$true] %s346
          %352 = dma.hbm_to_vmem [thread:$0]  %s8, 64, %s347, [#allocation7], 16, 16, 1
        $region44: #{tpu_custom_call.1} parent=11 // pred_fallthru
          _
        // Predicated region
        $region45: #{tpu_custom_call.1} parent=11 // pred_check
          %p353 = pneg %p237
        $region46: #{tpu_custom_call.1} parent=11 // pred_check_branch
          %355 = sbr.rel (%p353) target = $region48
        $region47: #{tpu_custom_call.1} parent=11 // pred_region
          _
        $region48: #{tpu_custom_call.1} parent=11 // pred_fallthru
          _
        // Predicated region
        $region49: #{tpu_custom_call.1} parent=11 // pred_check
          %p356 = pneg %p258
        $region50: #{tpu_custom_call.1} parent=11 // pred_check_branch
          %358 = sbr.rel (%p356) target = $region52
        $region51: #{tpu_custom_call.1} parent=11 // pred_region
          _
        $region52: #{tpu_custom_call.1} parent=11 // pred_fallthru
          _
      $region12: #{tpu_custom_call.1} parent=5 // pred_fallthru
        _
      %p359 = scmp.lt.s32.totalorder %s22, 2
      // Predicated region
      $region53: #{tpu_custom_call.1} parent=5 // pred_check
        %p360 = pneg %p359
      $region54: #{tpu_custom_call.1} parent=5 // pred_check_branch
        %362 = sbr.rel (%p360) target = $region56
      $region55: #{tpu_custom_call.1} parent=5 // pred_region
        // Predicated region
        $region57: #{tpu_custom_call.1} parent=55 // pred_check
          %p363 = pneg %p42
        $region58: #{tpu_custom_call.1} parent=55 // pred_check_branch
          %365 = sbr.rel (%p363) target = $region60
        $region59: #{tpu_custom_call.1} parent=55 // pred_region
          %p366 = scmp.lt.s32.totalorder %s22, 1
          %s367 = scalar_select %p366, %s22, 1
          %s368 = smul.addr %s367, 2
          %s369 = smul.addr %s368, 8
          %s370 = scalar_lea.vmem %s0, %s369
        $region60: #{tpu_custom_call.1} parent=55 // pred_fallthru
          _
      $region56: #{tpu_custom_call.1} parent=5 // pred_fallthru
        _
      %p371 = scmp.le.s32.totalorder 1, %s22
      %p372 = scmp.lt.s32.totalorder %s22, 3
      %p373 = pnand %p371, %p372
      %p374 = pneg %p373
      // Predicated region
      $region61: #{tpu_custom_call.1} parent=5 // pred_check
        _
      $region62: #{tpu_custom_call.1} parent=5 // pred_check_branch
        %376 = sbr.rel (%p373) target = $region64
      $region63: #{tpu_custom_call.1} parent=5 // pred_region
        %s377 = ssub.s32 %s22, 1
        // Predicated region
        $region65: #{tpu_custom_call.1} parent=63 // pred_check
          %p378 = pneg %p153
        $region66: #{tpu_custom_call.1} parent=63 // pred_check_branch
          %380 = sbr.rel (%p378) target = $region68
        $region67: #{tpu_custom_call.1} parent=63 // pred_region
          %381 = dma.done [#allocation4], 256
        $region68: #{tpu_custom_call.1} parent=63 // pred_fallthru
          _
        // Predicated region
        $region69: #{tpu_custom_call.1} parent=63 // pred_check
          %p382 = pneg %p174
        $region70: #{tpu_custom_call.1} parent=63 // pred_check_branch
          %384 = sbr.rel (%p382) target = $region72
        $region71: #{tpu_custom_call.1} parent=63 // pred_region
          %385 = dma.done [#allocation7], 256
        $region72: #{tpu_custom_call.1} parent=63 // pred_fallthru
          _
        // Predicated region
        $region73: #{tpu_custom_call.1} parent=63 // pred_check
          %p386 = pneg %p216
        $region74: #{tpu_custom_call.1} parent=63 // pred_check_branch
          %388 = sbr.rel (%p386) target = $region76
        $region75: #{tpu_custom_call.1} parent=63 // pred_region
          %389 = dma.done [#allocation7], 64
        $region76: #{tpu_custom_call.1} parent=63 // pred_fallthru
          _
        %p390 = scmp.lt.s32.totalorder %s27, 1
        %s391 = scalar_select %p390, %s27, 1
        %s392 = smul.addr %s391, 2
        %s393 = smul.addr %s392, 8
        %s394 = scalar_lea.vmem %s0, %s393
        %p395 = pneg %p48
        %p396 = pneg %p45
        %p397 = pneg %p69
        %p398 = pneg %p66
        %p399 = pneg %p90
        %p400 = pneg %p87
        %p401 = pneg %p111
        %p402 = pneg %p108
        %p403 = pneg %p132
        %p404 = pneg %p129
        %p405 = pneg %p153
        %p406 = pneg %p150
        %p407 = pneg %p174
        %p408 = pneg %p171
        %p409 = pneg %p195
        %p410 = pneg %p192
        %p411 = pneg %p216
        %p412 = pneg %p213
        %p413 = pneg %p237
        %p414 = pneg %p234
        %p415 = pneg %p258
        %p416 = pneg %p255
        %p417 = pneg %p284
        %p418 = pneg %p281
        %s419 = sand.u32 %s271, 1
        %s420 = scalar_lea.sflag [#allocation5], %s419
        %s421 = sand.u32 %s271, 1
        %s422 = smul.addr %s421, 16
        %s423 = scalar_lea.vmem [#allocation9], %s422
        %p424 = scmp.lt.s32.totalorder %s27, 1
        %s425 = scalar_select %p424, %s27, 1
        %s426 = smul.addr %s425, 2
        %s427 = smul.addr %s426, 8
        %s428 = scalar_lea.vmem %s0, %s427
        %v429 = vld [vmem:[%s428] sm:$0xff]
        %v430 = vld [vmem:[%s428 + $0x8] sm:$0xff]
        %431 = vst [vmem:[#allocation2] sm:$0xff] 0.0
        %432 = vst [vmem:[#allocation2 + $0x8] sm:$0xff] 0.0
        %vm433 = vcmask 523264
        %v434 = vsel %vm433, %v429, 0.0
        %435 = vadd.xlane.f32.xlu0 %v434
        %v436 = vpop.xlane.xlu0 %435
        %v437 = vsel %vm433, %v430, 0.0
        %438 = vadd.xlane.f32.xlu0 %v437
        %v439 = vpop.xlane.xlu0 %438
        %v440 = vmul.f32 %v436, 0.015625
        %v441 = vmul.f32 %v439, 0.015625
        %v442 = vsub.f32 %v429, %v440
        %v443 = vsub.f32 %v430, %v441
        %v444 = vmul.f32 %v442, %v442
        %v445 = vmul.f32 %v443, %v443
        %v446 = vsel %vm433, %v444, 0.0
        %447 = vadd.xlane.f32.xlu0 %v446
        %v448 = vpop.xlane.xlu0 %447
        %v449 = vsel %vm433, %v445, 0.0
        %450 = vadd.xlane.f32.xlu0 %v449
        %v451 = vpop.xlane.xlu0 %450
        %v452 = vmul.f32 %v448, 0.015873017
        %v453 = vmul.f32 %v451, 0.015873017
        %v454 = vrsqrt.pop %v452
        %v455 = vmul.f32 %v452, %v454
        %vm456 = vcmp.eq.f32.partialorder %v452, inf
        %v457 = vsel %vm456, %v452, %v455
        %vm458 = vcmp.eq.f32.partialorder %v452, 0.0
        %v459 = vand.u32 %v452, 2147483648
        %v460 = vsel %vm458, %v459, %v457
        %v461 = vrsqrt.pop %v453
        %v462 = vmul.f32 %v453, %v461
        %vm463 = vcmp.eq.f32.partialorder %v453, inf
        %v464 = vsel %vm463, %v453, %v462
        %vm465 = vcmp.eq.f32.partialorder %v453, 0.0
        %v466 = vand.u32 %v453, 2147483648
        %v467 = vsel %vm465, %v466, %v464
        %v468 = vadd.f32 %v460, 1e-05
        %v469 = vadd.f32 %v467, 1e-05
        %v470 = vrcp.pop %v468
        %v471 = vmul.f32 1.0, %v470
        %v472 = vrcp.pop %v469
        %v473 = vmul.f32 1.0, %v472
        %v474 = vmul.f32 %v442, %v471
        %v475 = vmul.f32 %v443, %v473
        %478 = vrot.lane.b32.xlu0 %v474, 32
        %v479 = vpop.permute.xlu0 %478
        %480 = vrot.lane.b32.xlu0 %v475, 32
        %v481 = vpop.permute.xlu0 %480
        %vm484 = vcmask 785664
        %485 = vst.msk [vmem:[#allocation2] sm:$0xff] %vm484, %v479
        %486 = vst.msk [vmem:[#allocation2 + $0x8] sm:$0xff] %vm484, %v481
        %v487 = vld [vmem:[#allocation2] sm:$0xff]
        %v488 = vld [vmem:[#allocation2 + $0x8] sm:$0xff]
        %v489 = vld [vmem:[%s10] sm:$0x1]
        %v491 = vlaneseq
        %v492 = vshrl.u32 %v491, 7
        %v493 = vsub.s32 0, %v492
        %v494 = vrot.slane %v489, %v493
        %495 = vrot.lane.b32.xlu0 %v494, 23
        %v496 = vpop.permute.xlu0 %495
        %v498 = vmul.f32 %v487, %v496
        %v499 = vmul.f32 %v488, %v496
        %s500 = scalar_lea.vmem %s10, 1
        %v501 = vld [vmem:[%s500] sm:$0x1]
        %v503 = vlaneseq
        %v504 = vshrl.u32 %v503, 7
        %v505 = vsub.s32 0, %v504
        %v506 = vrot.slane %v501, %v505
        %507 = vrot.lane.b32.xlu0 %v506, 24
        %v508 = vpop.permute.xlu0 %507
        %v510 = vmul.f32 %v487, %v508
        %v511 = vmul.f32 %v488, %v508
        %s512 = scalar_lea.vmem %s10, 2
        %v513 = vld [vmem:[%s512] sm:$0x1]
        %v515 = vlaneseq
        %v516 = vshrl.u32 %v515, 7
        %v517 = vsub.s32 0, %v516
        %v518 = vrot.slane %v513, %v517
        %519 = vrot.lane.b32.xlu0 %v518, 25
        %v520 = vpop.permute.xlu0 %519
        %v522 = vmul.f32 %v487, %v520
        %v523 = vmul.f32 %v488, %v520
        %s524 = scalar_lea.vmem %s10, 3
        %v525 = vld [vmem:[%s524] sm:$0x1]
        %v527 = vlaneseq
        %v528 = vshrl.u32 %v527, 7
        %v529 = vsub.s32 0, %v528
        %v530 = vrot.slane %v525, %v529
        %531 = vrot.lane.b32.xlu0 %v530, 31
        %v532 = vpop.permute.xlu0 %531
        %v534 = vmul.f32 %v487, %v532
        %v535 = vmul.f32 %v488, %v532
        %s536 = scalar_lea.vmem %s10, 5
        %v537 = vld [vmem:[%s536] sm:$0x1]
        %v539 = vlaneseq
        %v540 = vshrl.u32 %v539, 7
        %v541 = vsub.s32 0, %v540
        %v542 = vrot.slane %v537, %v541
        %543 = vrot.lane.b32.xlu0 %v542, 33
        %v544 = vpop.permute.xlu0 %543
        %v546 = vmul.f32 %v487, %v544
        %v547 = vmul.f32 %v488, %v544
        %s548 = scalar_lea.vmem %s10, 6
        %v549 = vld [vmem:[%s548] sm:$0x1]
        %v551 = vlaneseq
        %v552 = vshrl.u32 %v551, 7
        %v553 = vsub.s32 0, %v552
        %v554 = vrot.slane %v549, %v553
        %555 = vrot.lane.b32.xlu0 %v554, 39
        %v556 = vpop.permute.xlu0 %555
        %v558 = vmul.f32 %v487, %v556
        %v559 = vmul.f32 %v488, %v556
        %s560 = scalar_lea.vmem %s10, 7
        %v561 = vld [vmem:[%s560] sm:$0x1]
        %v563 = vlaneseq
        %v564 = vshrl.u32 %v563, 7
        %v565 = vsub.s32 0, %v564
        %v566 = vrot.slane %v561, %v565
        %567 = vrot.lane.b32.xlu0 %v566, 40
        %v568 = vpop.permute.xlu0 %567
        %v570 = vmul.f32 %v487, %v568
        %v571 = vmul.f32 %v488, %v568
        %s572 = scalar_lea.vmem %s10, 8
        %v573 = vld [vmem:[%s572] sm:$0x1]
        %v575 = vlaneseq
        %v576 = vshrl.u32 %v575, 7
        %v577 = vsub.s32 0, %v576
        %v578 = vrot.slane %v573, %v577
        %579 = vrot.lane.b32.xlu0 %v578, 41
        %v580 = vpop.permute.xlu0 %579
        %v582 = vmul.f32 %v487, %v580
        %v583 = vmul.f32 %v488, %v580
        %586 = vrot.lane.b32.xlu0 %v510, 127
        %v587 = vpop.permute.xlu0 %586
        %588 = vrot.lane.b32.xlu0 %v511, 127
        %v589 = vpop.permute.xlu0 %588
        %592 = vrot.lane.b32.xlu0 %v522, 126
        %v593 = vpop.permute.xlu0 %592
        %594 = vrot.lane.b32.xlu0 %v523, 126
        %v595 = vpop.permute.xlu0 %594
        %598 = vrot.lane.b32.xlu0 %v534, 120
        %v599 = vpop.permute.xlu0 %598
        %600 = vrot.lane.b32.xlu0 %v535, 120
        %v601 = vpop.permute.xlu0 %600
        %602 = vrot.lane.b32.xlu0 %v474, 23
        %v603 = vpop.permute.xlu0 %602
        %604 = vrot.lane.b32.xlu0 %v475, 23
        %v605 = vpop.permute.xlu0 %604
        %608 = vrot.lane.b32.xlu0 %v546, 118
        %v609 = vpop.permute.xlu0 %608
        %610 = vrot.lane.b32.xlu0 %v547, 118
        %v611 = vpop.permute.xlu0 %610
        %614 = vrot.lane.b32.xlu0 %v558, 112
        %v615 = vpop.permute.xlu0 %614
        %616 = vrot.lane.b32.xlu0 %v559, 112
        %v617 = vpop.permute.xlu0 %616
        %620 = vrot.lane.b32.xlu0 %v570, 111
        %v621 = vpop.permute.xlu0 %620
        %622 = vrot.lane.b32.xlu0 %v571, 111
        %v623 = vpop.permute.xlu0 %622
        %626 = vrot.lane.b32.xlu0 %v582, 110
        %v627 = vpop.permute.xlu0 %626
        %628 = vrot.lane.b32.xlu0 %v583, 110
        %v629 = vpop.permute.xlu0 %628
        %v630 = vld [vmem:[%s1] sm:$0xff]
        %v631 = vld [vmem:[%s1 + $0x8] sm:$0xff]
        %v632 = vld [vmem:[%s1 + $0x10] sm:$0xff]
        %v633 = vld [vmem:[%s1 + $0x18] sm:$0xff]
        %v634 = vld [vmem:[%s2] sm:$0xff]
        %v635 = vld [vmem:[%s2 + $0x8] sm:$0xff]
        %637 = vset.pattern.permute.xlu0 0
        %638 = vperm.xlu0 %637, %v634
        %v639 = vpop.permute.xlu0 %638
        %642 = vset.pattern.permute.xlu0 0
        %643 = vperm.xlu0 %642, %v635
        %v644 = vpop.permute.xlu0 %643
        %648 = vrot.lane.b32.xlu0 %v498, 105
        %v649 = vpop.permute.xlu0 %648
        %650 = vrot.lane.b32.xlu0 %v499, 105
        %v651 = vpop.permute.xlu0 %650
        %652 = vrot.lane.b32.xlu0 %v587, 105
        %v653 = vpop.permute.xlu0 %652
        %654 = vrot.lane.b32.xlu0 %v589, 105
        %v655 = vpop.permute.xlu0 %654
        %656 = vrot.lane.b32.xlu0 %v593, 105
        %v657 = vpop.permute.xlu0 %656
        %658 = vrot.lane.b32.xlu0 %v595, 105
        %v659 = vpop.permute.xlu0 %658
        %660 = vrot.lane.b32.xlu0 %v599, 105
        %v661 = vpop.permute.xlu0 %660
        %662 = vrot.lane.b32.xlu0 %v601, 105
        %v663 = vpop.permute.xlu0 %662
        %664 = vrot.lane.b32.xlu0 %v603, 105
        %v665 = vpop.permute.xlu0 %664
        %666 = vrot.lane.b32.xlu0 %v605, 105
        %v667 = vpop.permute.xlu0 %666
        %668 = vrot.lane.b32.xlu0 %v609, 105
        %v669 = vpop.permute.xlu0 %668
        %670 = vrot.lane.b32.xlu0 %v611, 105
        %v671 = vpop.permute.xlu0 %670
        %672 = vrot.lane.b32.xlu0 %v615, 105
        %v673 = vpop.permute.xlu0 %672
        %674 = vrot.lane.b32.xlu0 %v617, 105
        %v675 = vpop.permute.xlu0 %674
        %676 = vrot.lane.b32.xlu0 %v621, 105
        %v677 = vpop.permute.xlu0 %676
        %678 = vrot.lane.b32.xlu0 %v623, 105
        %v679 = vpop.permute.xlu0 %678
        %680 = vrot.lane.b32.xlu0 %v627, 105
        %v681 = vpop.permute.xlu0 %680
        %682 = vrot.lane.b32.xlu0 %v629, 105
        %v683 = vpop.permute.xlu0 %682
        %vm702 = vcmask 130048
        %v704 = vsel %vm702, %v631, 0
        %v707 = vsel %vm702, %v633, 0
        %709 = vmatprep.subr.mxu0 0.0
        %710 = vmatpush1.msra.mxu0 %v649
        %711 = vmatprep.subr.mxu0 0.0
        %712 = vmatpush1.msra.mxu0 %v651
        %713 = vmatprep.subr.mxu0 0.0
        %714 = vmatpush1.msra.mxu0 %v653
        %715 = vmatprep.subr.mxu0 0.0
        %716 = vmatpush1.msra.mxu0 %v655
        %717 = vmatprep.subr.mxu0 0.0
        %718 = vmatpush1.msra.mxu0 %v657
        %719 = vmatprep.subr.mxu0 0.0
        %720 = vmatpush1.msra.mxu0 %v659
        %721 = vmatprep.subr.mxu0 0.0
        %722 = vmatpush1.msra.mxu0 %v661
        %723 = vmatprep.subr.mxu0 0.0
        %724 = vmatpush1.msra.mxu0 %v663
        %725 = vmatprep.subr.mxu0 0.0
        %726 = vmatpush1.msra.mxu0 %v665
        %727 = vmatprep.subr.mxu0 0.0
        %728 = vmatpush1.msra.mxu0 %v667
        %729 = vmatprep.subr.mxu0 0.0
        %730 = vmatpush1.msra.mxu0 %v669
        %731 = vmatprep.subr.mxu0 0.0
        %732 = vmatpush1.msra.mxu0 %v671
        %733 = vmatprep.subr.mxu0 0.0
        %734 = vmatpush1.msra.mxu0 %v673
        %735 = vmatprep.subr.mxu0 0.0
        %736 = vmatpush1.msra.mxu0 %v675
        %737 = vmatprep.subr.mxu0 0.0
        %738 = vmatpush1.msra.mxu0 %v677
        %739 = vmatprep.subr.mxu0 0.0
        %740 = vmatpush1.msra.mxu0 %v679
        %741 = vmatprep.subr.mxu0 0.0
        %742 = vmatpush1.msra.mxu0 %v681
        %743 = vmatprep.subr.mxu0 0.0
        %744 = vmatpush1.msra.mxu0 %v683
        %745 = vmatprep.subr.mxu0 0.0
        %746 = vmatpush1.msra.mxu0 0.0
        %747 = vmatprep.subr.mxu0 0.0
        %748 = vmatpush1.msra.mxu0 0.0
        %749 = vmatprep.subr.mxu0 0.0
        %750 = vmatpush1.msra.mxu0 0.0
        %751 = vmatprep.subr.mxu0 0.0
        %752 = vmatpush1.msra.mxu0 0.0
        %753 = vmatprep.subr.mxu0 0.0
        %754 = vmatpush1.msra.mxu0 0.0
        %755 = vmatprep.subr.mxu0 0.0
        %756 = vmatpush1.msra.mxu0 0.0
        %757 = vmatprep.subr.mxu0 0.0
        %758 = vmatpush1.msra.mxu0 0.0
        %759 = vmatprep.subr.mxu0 0.0
        %760 = vmatpush1.msra.mxu0 0.0
        %761 = vmatprep.subr.mxu0 0.0
        %762 = vmatpush1.msra.mxu0 0.0
        %763 = vmatprep.subr.mxu0 0.0
        %764 = vmatpush1.msra.mxu0 0.0
        %765 = vmatprep.subr.mxu0 0.0
        %766 = vmatpush1.msra.mxu0 0.0
        %767 = vmatprep.subr.mxu0 0.0
        %768 = vmatpush1.msra.mxu0 0.0
        %769 = vmatprep.subr.mxu0 0.0
        %770 = vmatpush1.msra.mxu0 0.0
        %771 = vmatprep.subr.mxu0 0.0
        %772 = vmatpush1.msra.mxu0 0.0
        %773 = vmatprep.mubr.f32.mxu0 %v704
        %774 = vmatmul.mubr.f32.gmra.mrb[0].mxu0 %v630
        %v775 = vpop.f32.mrb[0].mxu0
        %v776 = vadd.f32 %v639, %v775
        %v777 = vpop.f32.mrb[0].mxu0
        %778 = vmatprep.mubr.f32.mxu0 %v707
        %779 = vmatmul.mubr.f32.gmra.mrb[0].mxu0 %v632
        %v780 = vpop.f32.mrb[0].mxu0
        %v781 = vadd.f32 %v644, %v780
        %v782 = vpop.f32.mrb[0].mxu0
        %783 = vdwg.mxu0
        %v784 = vmul.f32 %v776, 0.2
        %v785 = vmul.f32 %v781, 0.2
        %v786 = vmax.f32 %v776, %v784
        %v787 = vmax.f32 %v781, %v785
        %790 = vrot.lane.b32.xlu0 %v786, 32
        %v791 = vpop.permute.xlu0 %790
        %792 = vrot.lane.b32.xlu0 %v787, 32
        %v793 = vpop.permute.xlu0 %792
        %796 = vst.msk [vmem:[#allocation2] sm:$0xff] %vm484, %v791
        %797 = vst.msk [vmem:[#allocation2 + $0x8] sm:$0xff] %vm484, %v793
        %v798 = vld [vmem:[#allocation2] sm:$0xff]
        %v799 = vld [vmem:[#allocation2 + $0x8] sm:$0xff]
        %v800 = vld [vmem:[%s10] sm:$0x1]
        %v802 = vlaneseq
        %v803 = vshrl.u32 %v802, 7
        %v804 = vsub.s32 0, %v803
        %v805 = vrot.slane %v800, %v804
        %806 = vrot.lane.b32.xlu0 %v805, 23
        %v807 = vpop.permute.xlu0 %806
        %v809 = vmul.f32 %v798, %v807
        %v810 = vmul.f32 %v799, %v807
        %v811 = vld [vmem:[%s500] sm:$0x1]
        %v813 = vlaneseq
        %v814 = vshrl.u32 %v813, 7
        %v815 = vsub.s32 0, %v814
        %v816 = vrot.slane %v811, %v815
        %817 = vrot.lane.b32.xlu0 %v816, 24
        %v818 = vpop.permute.xlu0 %817
        %v820 = vmul.f32 %v798, %v818
        %v821 = vmul.f32 %v799, %v818
        %v822 = vld [vmem:[%s512] sm:$0x1]
        %v824 = vlaneseq
        %v825 = vshrl.u32 %v824, 7
        %v826 = vsub.s32 0, %v825
        %v827 = vrot.slane %v822, %v826
        %828 = vrot.lane.b32.xlu0 %v827, 25
        %v829 = vpop.permute.xlu0 %828
        %v831 = vmul.f32 %v798, %v829
        %v832 = vmul.f32 %v799, %v829
        %v833 = vld [vmem:[%s524] sm:$0x1]
        %v835 = vlaneseq
        %v836 = vshrl.u32 %v835, 7
        %v837 = vsub.s32 0, %v836
        %v838 = vrot.slane %v833, %v837
        %839 = vrot.lane.b32.xlu0 %v838, 31
        %v840 = vpop.permute.xlu0 %839
        %v842 = vmul.f32 %v798, %v840
        %v843 = vmul.f32 %v799, %v840
        %v844 = vld [vmem:[%s536] sm:$0x1]
        %v846 = vlaneseq
        %v847 = vshrl.u32 %v846, 7
        %v848 = vsub.s32 0, %v847
        %v849 = vrot.slane %v844, %v848
        %850 = vrot.lane.b32.xlu0 %v849, 33
        %v851 = vpop.permute.xlu0 %850
        %v853 = vmul.f32 %v798, %v851
        %v854 = vmul.f32 %v799, %v851
        %v855 = vld [vmem:[%s548] sm:$0x1]
        %v857 = vlaneseq
        %v858 = vshrl.u32 %v857, 7
        %v859 = vsub.s32 0, %v858
        %v860 = vrot.slane %v855, %v859
        %861 = vrot.lane.b32.xlu0 %v860, 39
        %v862 = vpop.permute.xlu0 %861
        %v864 = vmul.f32 %v798, %v862
        %v865 = vmul.f32 %v799, %v862
        %v866 = vld [vmem:[%s560] sm:$0x1]
        %v868 = vlaneseq
        %v869 = vshrl.u32 %v868, 7
        %v870 = vsub.s32 0, %v869
        %v871 = vrot.slane %v866, %v870
        %872 = vrot.lane.b32.xlu0 %v871, 40
        %v873 = vpop.permute.xlu0 %872
        %v875 = vmul.f32 %v798, %v873
        %v876 = vmul.f32 %v799, %v873
        %v877 = vld [vmem:[%s572] sm:$0x1]
        %v879 = vlaneseq
        %v880 = vshrl.u32 %v879, 7
        %v881 = vsub.s32 0, %v880
        %v882 = vrot.slane %v877, %v881
        %883 = vrot.lane.b32.xlu0 %v882, 41
        %v884 = vpop.permute.xlu0 %883
        %v886 = vmul.f32 %v798, %v884
        %v887 = vmul.f32 %v799, %v884
        %890 = vrot.lane.b32.xlu0 %v820, 127
        %v891 = vpop.permute.xlu0 %890
        %892 = vrot.lane.b32.xlu0 %v821, 127
        %v893 = vpop.permute.xlu0 %892
        %896 = vrot.lane.b32.xlu0 %v831, 126
        %v897 = vpop.permute.xlu0 %896
        %898 = vrot.lane.b32.xlu0 %v832, 126
        %v899 = vpop.permute.xlu0 %898
        %902 = vrot.lane.b32.xlu0 %v842, 120
        %v903 = vpop.permute.xlu0 %902
        %904 = vrot.lane.b32.xlu0 %v843, 120
        %v905 = vpop.permute.xlu0 %904
        %906 = vrot.lane.b32.xlu0 %v786, 23
        %v907 = vpop.permute.xlu0 %906
        %908 = vrot.lane.b32.xlu0 %v787, 23
        %v909 = vpop.permute.xlu0 %908
        %912 = vrot.lane.b32.xlu0 %v853, 118
        %v913 = vpop.permute.xlu0 %912
        %914 = vrot.lane.b32.xlu0 %v854, 118
        %v915 = vpop.permute.xlu0 %914
        %918 = vrot.lane.b32.xlu0 %v864, 112
        %v919 = vpop.permute.xlu0 %918
        %920 = vrot.lane.b32.xlu0 %v865, 112
        %v921 = vpop.permute.xlu0 %920
        %924 = vrot.lane.b32.xlu0 %v875, 111
        %v925 = vpop.permute.xlu0 %924
        %926 = vrot.lane.b32.xlu0 %v876, 111
        %v927 = vpop.permute.xlu0 %926
        %930 = vrot.lane.b32.xlu0 %v886, 110
        %v931 = vpop.permute.xlu0 %930
        %932 = vrot.lane.b32.xlu0 %v887, 110
        %v933 = vpop.permute.xlu0 %932
        %v934 = vld [vmem:[%s3] sm:$0xff]
        %v935 = vld [vmem:[%s3 + $0x8] sm:$0xff]
        %v936 = vld [vmem:[%s3 + $0x10] sm:$0xff]
        %v937 = vld [vmem:[%s3 + $0x18] sm:$0xff]
        %v938 = vld [vmem:[%s4] sm:$0xff]
        %v939 = vld [vmem:[%s4 + $0x8] sm:$0xff]
        %941 = vset.pattern.permute.xlu0 0
        %942 = vperm.xlu0 %941, %v938
        %v943 = vpop.permute.xlu0 %942
        %946 = vset.pattern.permute.xlu0 0
        %947 = vperm.xlu0 %946, %v939
        %v948 = vpop.permute.xlu0 %947
        %952 = vrot.lane.b32.xlu0 %v809, 105
        %v953 = vpop.permute.xlu0 %952
        %954 = vrot.lane.b32.xlu0 %v810, 105
        %v955 = vpop.permute.xlu0 %954
        %956 = vrot.lane.b32.xlu0 %v891, 105
        %v957 = vpop.permute.xlu0 %956
        %958 = vrot.lane.b32.xlu0 %v893, 105
        %v959 = vpop.permute.xlu0 %958
        %960 = vrot.lane.b32.xlu0 %v897, 105
        %v961 = vpop.permute.xlu0 %960
        %962 = vrot.lane.b32.xlu0 %v899, 105
        %v963 = vpop.permute.xlu0 %962
        %964 = vrot.lane.b32.xlu0 %v903, 105
        %v965 = vpop.permute.xlu0 %964
        %966 = vrot.lane.b32.xlu0 %v905, 105
        %v967 = vpop.permute.xlu0 %966
        %968 = vrot.lane.b32.xlu0 %v907, 105
        %v969 = vpop.permute.xlu0 %968
        %970 = vrot.lane.b32.xlu0 %v909, 105
        %v971 = vpop.permute.xlu0 %970
        %972 = vrot.lane.b32.xlu0 %v913, 105
        %v973 = vpop.permute.xlu0 %972
        %974 = vrot.lane.b32.xlu0 %v915, 105
        %v975 = vpop.permute.xlu0 %974
        %976 = vrot.lane.b32.xlu0 %v919, 105
        %v977 = vpop.permute.xlu0 %976
        %978 = vrot.lane.b32.xlu0 %v921, 105
        %v979 = vpop.permute.xlu0 %978
        %980 = vrot.lane.b32.xlu0 %v925, 105
        %v981 = vpop.permute.xlu0 %980
        %982 = vrot.lane.b32.xlu0 %v927, 105
        %v983 = vpop.permute.xlu0 %982
        %984 = vrot.lane.b32.xlu0 %v931, 105
        %v985 = vpop.permute.xlu0 %984
        %986 = vrot.lane.b32.xlu0 %v933, 105
        %v987 = vpop.permute.xlu0 %986
        %v1007 = vsel %vm702, %v935, 0
        %v1010 = vsel %vm702, %v937, 0
        %1012 = vmatprep.subr.mxu0 0.0
        %1013 = vmatpush1.msra.mxu0 %v953
        %1014 = vmatprep.subr.mxu0 0.0
        %1015 = vmatpush1.msra.mxu0 %v955
        %1016 = vmatprep.subr.mxu0 0.0
        %1017 = vmatpush1.msra.mxu0 %v957
        %1018 = vmatprep.subr.mxu0 0.0
        %1019 = vmatpush1.msra.mxu0 %v959
        %1020 = vmatprep.subr.mxu0 0.0
        %1021 = vmatpush1.msra.mxu0 %v961
        %1022 = vmatprep.subr.mxu0 0.0
        %1023 = vmatpush1.msra.mxu0 %v963
        %1024 = vmatprep.subr.mxu0 0.0
        %1025 = vmatpush1.msra.mxu0 %v965
        %1026 = vmatprep.subr.mxu0 0.0
        %1027 = vmatpush1.msra.mxu0 %v967
        %1028 = vmatprep.subr.mxu0 0.0
        %1029 = vmatpush1.msra.mxu0 %v969
        %1030 = vmatprep.subr.mxu0 0.0
        %1031 = vmatpush1.msra.mxu0 %v971
        %1032 = vmatprep.subr.mxu0 0.0
        %1033 = vmatpush1.msra.mxu0 %v973
        %1034 = vmatprep.subr.mxu0 0.0
        %1035 = vmatpush1.msra.mxu0 %v975
        %1036 = vmatprep.subr.mxu0 0.0
        %1037 = vmatpush1.msra.mxu0 %v977
        %1038 = vmatprep.subr.mxu0 0.0
        %1039 = vmatpush1.msra.mxu0 %v979
        %1040 = vmatprep.subr.mxu0 0.0
        %1041 = vmatpush1.msra.mxu0 %v981
        %1042 = vmatprep.subr.mxu0 0.0
        %1043 = vmatpush1.msra.mxu0 %v983
        %1044 = vmatprep.subr.mxu0 0.0
        %1045 = vmatpush1.msra.mxu0 %v985
        %1046 = vmatprep.subr.mxu0 0.0
        %1047 = vmatpush1.msra.mxu0 %v987
        %1048 = vmatprep.subr.mxu0 0.0
        %1049 = vmatpush1.msra.mxu0 0.0
        %1050 = vmatprep.subr.mxu0 0.0
        %1051 = vmatpush1.msra.mxu0 0.0
        %1052 = vmatprep.subr.mxu0 0.0
        %1053 = vmatpush1.msra.mxu0 0.0
        %1054 = vmatprep.subr.mxu0 0.0
        %1055 = vmatpush1.msra.mxu0 0.0
        %1056 = vmatprep.subr.mxu0 0.0
        %1057 = vmatpush1.msra.mxu0 0.0
        %1058 = vmatprep.subr.mxu0 0.0
        %1059 = vmatpush1.msra.mxu0 0.0
        %1060 = vmatprep.subr.mxu0 0.0
        %1061 = vmatpush1.msra.mxu0 0.0
        %1062 = vmatprep.subr.mxu0 0.0
        %1063 = vmatpush1.msra.mxu0 0.0
        %1064 = vmatprep.subr.mxu0 0.0
        %1065 = vmatpush1.msra.mxu0 0.0
        %1066 = vmatprep.subr.mxu0 0.0
        %1067 = vmatpush1.msra.mxu0 0.0
        %1068 = vmatprep.subr.mxu0 0.0
        %1069 = vmatpush1.msra.mxu0 0.0
        %1070 = vmatprep.subr.mxu0 0.0
        %1071 = vmatpush1.msra.mxu0 0.0
        %1072 = vmatprep.subr.mxu0 0.0
        %1073 = vmatpush1.msra.mxu0 0.0
        %1074 = vmatprep.subr.mxu0 0.0
        %1075 = vmatpush1.msra.mxu0 0.0
        %1076 = vmatprep.mubr.f32.mxu0 %v1007
        %1077 = vmatmul.mubr.f32.gmra.mrb[0].mxu0 %v934
        %v1078 = vpop.f32.mrb[0].mxu0
        %v1079 = vadd.f32 %v943, %v1078
        %v1080 = vpop.f32.mrb[0].mxu0
        %1081 = vmatprep.mubr.f32.mxu0 %v1010
        %1082 = vmatmul.mubr.f32.gmra.mrb[0].mxu0 %v936
        %v1083 = vpop.f32.mrb[0].mxu0
        %v1084 = vadd.f32 %v948, %v1083
        %v1085 = vpop.f32.mrb[0].mxu0
        %1086 = vdwg.mxu0
        %v1087 = vmul.f32 %v1079, 0.2
        %v1088 = vmul.f32 %v1084, 0.2
        %v1089 = vmax.f32 %v1079, %v1087
        %v1090 = vmax.f32 %v1084, %v1088
        %v1091 = vsel %vm433, %v1089, 0.0
        %1092 = vadd.xlane.f32.xlu0 %v1091
        %v1093 = vpop.xlane.xlu0 %1092
        %v1094 = vsel %vm433, %v1090, 0.0
        %1095 = vadd.xlane.f32.xlu0 %v1094
        %v1096 = vpop.xlane.xlu0 %1095
        %v1097 = vmul.f32 %v1093, 0.015625
        %v1098 = vmul.f32 %v1096, 0.015625
        %v1099 = vsub.f32 %v1089, %v1097
        %v1100 = vsub.f32 %v1090, %v1098
        %v1101 = vmul.f32 %v1099, %v1099
        %v1102 = vmul.f32 %v1100, %v1100
        %v1103 = vsel %vm433, %v1101, 0.0
        %1104 = vadd.xlane.f32.xlu0 %v1103
        %v1105 = vpop.xlane.xlu0 %1104
        %v1106 = vsel %vm433, %v1102, 0.0
        %1107 = vadd.xlane.f32.xlu0 %v1106
        %v1108 = vpop.xlane.xlu0 %1107
        %v1109 = vmul.f32 %v1105, 0.015873017
        %v1110 = vmul.f32 %v1108, 0.015873017
        %v1111 = vrsqrt.pop %v1109
        %v1112 = vmul.f32 %v1109, %v1111
        %vm1113 = vcmp.eq.f32.partialorder %v1109, inf
        %v1114 = vsel %vm1113, %v1109, %v1112
        %vm1115 = vcmp.eq.f32.partialorder %v1109, 0.0
        %v1116 = vand.u32 %v1109, 2147483648
        %v1117 = vsel %vm1115, %v1116, %v1114
        %v1118 = vrsqrt.pop %v1110
        %v1119 = vmul.f32 %v1110, %v1118
        %vm1120 = vcmp.eq.f32.partialorder %v1110, inf
        %v1121 = vsel %vm1120, %v1110, %v1119
        %vm1122 = vcmp.eq.f32.partialorder %v1110, 0.0
        %v1123 = vand.u32 %v1110, 2147483648
        %v1124 = vsel %vm1122, %v1123, %v1121
        %v1125 = vadd.f32 %v1117, 1e-05
        %v1126 = vadd.f32 %v1124, 1e-05
        %v1127 = vrcp.pop %v1125
        %v1128 = vmul.f32 1.0, %v1127
        %v1129 = vrcp.pop %v1126
        %v1130 = vmul.f32 1.0, %v1129
        %v1131 = vmul.f32 %v1099, %v1128
        %v1132 = vmul.f32 %v1100, %v1130
        %v1133 = vadd.f32 %v429, %v1131
        %v1134 = vadd.f32 %v430, %v1132
        %v1135 = vsel %vm433, %v1133, 0.0
        %1136 = vadd.xlane.f32.xlu0 %v1135
        %v1137 = vpop.xlane.xlu0 %1136
        %v1138 = vsel %vm433, %v1134, 0.0
        %1139 = vadd.xlane.f32.xlu0 %v1138
        %v1140 = vpop.xlane.xlu0 %1139
        %v1141 = vmul.f32 %v1137, 0.015625
        %v1142 = vmul.f32 %v1140, 0.015625
        %v1143 = vsub.f32 %v1133, %v1141
        %v1144 = vsub.f32 %v1134, %v1142
        %v1145 = vmul.f32 %v1143, %v1143
        %v1146 = vmul.f32 %v1144, %v1144
        %v1147 = vsel %vm433, %v1145, 0.0
        %1148 = vadd.xlane.f32.xlu0 %v1147
        %v1149 = vpop.xlane.xlu0 %1148
        %v1150 = vsel %vm433, %v1146, 0.0
        %1151 = vadd.xlane.f32.xlu0 %v1150
        %v1152 = vpop.xlane.xlu0 %1151
        %v1153 = vmul.f32 %v1149, 0.015873017
        %v1154 = vmul.f32 %v1152, 0.015873017
        %v1155 = vrsqrt.pop %v1153
        %v1156 = vmul.f32 %v1153, %v1155
        %vm1157 = vcmp.eq.f32.partialorder %v1153, inf
        %v1158 = vsel %vm1157, %v1153, %v1156
        %vm1159 = vcmp.eq.f32.partialorder %v1153, 0.0
        %v1160 = vand.u32 %v1153, 2147483648
        %v1161 = vsel %vm1159, %v1160, %v1158
        %v1162 = vrsqrt.pop %v1154
        %v1163 = vmul.f32 %v1154, %v1162
        %vm1164 = vcmp.eq.f32.partialorder %v1154, inf
        %v1165 = vsel %vm1164, %v1154, %v1163
        %vm1166 = vcmp.eq.f32.partialorder %v1154, 0.0
        %v1167 = vand.u32 %v1154, 2147483648
        %v1168 = vsel %vm1166, %v1167, %v1165
        %v1169 = vadd.f32 %v1161, 1e-05
        %v1170 = vadd.f32 %v1168, 1e-05
        %v1171 = vrcp.pop %v1169
        %v1172 = vmul.f32 1.0, %v1171
        %v1173 = vrcp.pop %v1170
        %v1174 = vmul.f32 1.0, %v1173
        %v1175 = vmul.f32 %v1143, %v1172
        %v1176 = vmul.f32 %v1144, %v1174
        %1177 = vxpose.xlu0.b32.start [1/16] %v1175, 128
        %1178 = vxpose.xlu0.b32.cont [2/16] %v1176, 128
        %1179 = vxpose.xlu0.b32.cont [3/16] 0.0, 128
        %1180 = vxpose.xlu0.b32.cont [4/16] 0.0, 128
        %1181 = vxpose.xlu0.b32.cont [5/16] 0.0, 128
        %1182 = vxpose.xlu0.b32.cont [6/16] 0.0, 128
        %1183 = vxpose.xlu0.b32.cont [7/16] 0.0, 128
        %1184 = vxpose.xlu0.b32.cont [8/16] 0.0, 128
        %1185 = vxpose.xlu0.b32.cont [9/16] 0.0, 128
        %1186 = vxpose.xlu0.b32.cont [10/16] 0.0, 128
        %1187 = vxpose.xlu0.b32.cont [11/16] 0.0, 128
        %1188 = vxpose.xlu0.b32.cont [12/16] 0.0, 128
        %1189 = vxpose.xlu0.b32.cont [13/16] 0.0, 128
        %1190 = vxpose.xlu0.b32.cont [14/16] 0.0, 128
        %1191 = vxpose.xlu0.b32.cont [15/16] 0.0, 128
        %1192 = vxpose.xlu0.b32.end [16/16] 0.0, 128
        %v1193 = vpop.trf.xlu0
        %v1194 = vpop.trf.xlu0
        %v1195 = vpop.trf.xlu0
        %v1196 = vpop.trf.xlu0
        %v1197 = vpop.trf.xlu0
        %v1198 = vpop.trf.xlu0
        %v1199 = vpop.trf.xlu0
        %v1200 = vpop.trf.xlu0
        %v1201 = vpop.trf.xlu0
        %v1202 = vpop.trf.xlu0
        %v1203 = vpop.trf.xlu0
        %v1204 = vpop.trf.xlu0
        %v1205 = vpop.trf.xlu0
        %v1206 = vpop.trf.xlu0
        %v1207 = vpop.trf.xlu0
        %v1208 = vpop.trf.xlu0
        %v1209 = vld [vmem:[#allocation3] sm:$0xff]
        %v1210 = vld [vmem:[#allocation3 + $0x8] sm:$0xff]
        %v1212 = vsel %vm702, %v1193, 0
        %v1215 = vsel %vm702, %v1194, 0
        %v1218 = vsel %vm702, %v1195, 0
        %v1221 = vsel %vm702, %v1196, 0
        %v1224 = vsel %vm702, %v1197, 0
        %v1227 = vsel %vm702, %v1198, 0
        %v1230 = vsel %vm702, %v1199, 0
        %v1233 = vsel %vm702, %v1200, 0
        %1235 = vmatprep.subr.mxu0 0.0
        %1236 = vmatpush1.msra.mxu0 %v1209
        %1237 = vmatprep.subr.mxu0 0.0
        %1238 = vmatpush1.msra.mxu0 %v1210
        %1239 = vmatprep.subr.mxu0 0.0
        %1240 = vmatpush1.msra.mxu0 0.0
        %1241 = vmatprep.subr.mxu0 0.0
        %1242 = vmatpush1.msra.mxu0 0.0
        %1243 = vmatprep.subr.mxu0 0.0
        %1244 = vmatpush1.msra.mxu0 0.0
        %1245 = vmatprep.subr.mxu0 0.0
        %1246 = vmatpush1.msra.mxu0 0.0
        %1247 = vmatprep.subr.mxu0 0.0
        %1248 = vmatpush1.msra.mxu0 0.0
        %1249 = vmatprep.subr.mxu0 0.0
        %1250 = vmatpush1.msra.mxu0 0.0
        %1251 = vmatprep.subr.mxu0 0.0
        %1252 = vmatpush1.msra.mxu0 0.0
        %1253 = vmatprep.subr.mxu0 0.0
        %1254 = vmatpush1.msra.mxu0 0.0
        %1255 = vmatprep.subr.mxu0 0.0
        %1256 = vmatpush1.msra.mxu0 0.0
        %1257 = vmatprep.subr.mxu0 0.0
        %1258 = vmatpush1.msra.mxu0 0.0
        %1259 = vmatprep.subr.mxu0 0.0
        %1260 = vmatpush1.msra.mxu0 0.0
        %1261 = vmatprep.subr.mxu0 0.0
        %1262 = vmatpush1.msra.mxu0 0.0
        %1263 = vmatprep.subr.mxu0 0.0
        %1264 = vmatpush1.msra.mxu0 0.0
        %1265 = vmatprep.subr.mxu0 0.0
        %1266 = vmatpush1.msra.mxu0 0.0
        %1267 = vmatprep.subr.mxu0 0.0
        %1268 = vmatpush1.msra.mxu0 0.0
        %1269 = vmatprep.subr.mxu0 0.0
        %1270 = vmatpush1.msra.mxu0 0.0
        %1271 = vmatprep.subr.mxu0 0.0
        %1272 = vmatpush1.msra.mxu0 0.0
        %1273 = vmatprep.subr.mxu0 0.0
        %1274 = vmatpush1.msra.mxu0 0.0
        %1275 = vmatprep.subr.mxu0 0.0
        %1276 = vmatpush1.msra.mxu0 0.0
        %1277 = vmatprep.subr.mxu0 0.0
        %1278 = vmatpush1.msra.mxu0 0.0
        %1279 = vmatprep.subr.mxu0 0.0
        %1280 = vmatpush1.msra.mxu0 0.0
        %1281 = vmatprep.subr.mxu0 0.0
        %1282 = vmatpush1.msra.mxu0 0.0
        %1283 = vmatprep.subr.mxu0 0.0
        %1284 = vmatpush1.msra.mxu0 0.0
        %1285 = vmatprep.subr.mxu0 0.0
        %1286 = vmatpush1.msra.mxu0 0.0
        %1287 = vmatprep.subr.mxu0 0.0
        %1288 = vmatpush1.msra.mxu0 0.0
        %1289 = vmatprep.subr.mxu0 0.0
        %1290 = vmatpush1.msra.mxu0 0.0
        %1291 = vmatprep.subr.mxu0 0.0
        %1292 = vmatpush1.msra.mxu0 0.0
        %1293 = vmatprep.subr.mxu0 0.0
        %1294 = vmatpush1.msra.mxu0 0.0
        %1295 = vmatprep.subr.mxu0 0.0
        %1296 = vmatpush1.msra.mxu0 0.0
        %1297 = vmatprep.subr.mxu0 0.0
        %1298 = vmatpush1.msra.mxu0 0.0
        %1299 = vmatprep.mubr.f32.mxu0 0.0
        %1300 = vmatmul.mubr.f32.gmra.mrb[0].mxu0 %v1212
        %v1301 = vpop.f32.mrb[0].mxu0
        %v1302 = vadd.f32 0.0, %v1301
        %v1303 = vpop.f32.mrb[0].mxu0
        %1304 = vmatprep.mubr.f32.mxu0 0.0
        %1305 = vmatmul.mubr.f32.gmra.mrb[0].mxu0 %v1215
        %v1306 = vpop.f32.mrb[0].mxu0
        %v1307 = vadd.f32 0.0, %v1306
        %v1308 = vpop.f32.mrb[0].mxu0
        %1309 = vmatprep.mubr.f32.mxu0 0.0
        %1310 = vmatmul.mubr.f32.gmra.mrb[0].mxu0 %v1218
        %v1311 = vpop.f32.mrb[0].mxu0
        %v1312 = vadd.f32 0.0, %v1311
        %v1313 = vpop.f32.mrb[0].mxu0
        %1314 = vmatprep.mubr.f32.mxu0 0.0
        %1315 = vmatmul.mubr.f32.gmra.mrb[0].mxu0 %v1221
        %v1316 = vpop.f32.mrb[0].mxu0
        %v1317 = vadd.f32 0.0, %v1316
        %v1318 = vpop.f32.mrb[0].mxu0
        %1319 = vmatprep.mubr.f32.mxu0 0.0
        %1320 = vmatmul.mubr.f32.gmra.mrb[0].mxu0 %v1224
        %v1321 = vpop.f32.mrb[0].mxu0
        %v1322 = vadd.f32 0.0, %v1321
        %v1323 = vpop.f32.mrb[0].mxu0
        %1324 = vmatprep.mubr.f32.mxu0 0.0
        %1325 = vmatmul.mubr.f32.gmra.mrb[0].mxu0 %v1227
        %v1326 = vpop.f32.mrb[0].mxu0
        %v1327 = vadd.f32 0.0, %v1326
        %v1328 = vpop.f32.mrb[0].mxu0
        %1329 = vmatprep.mubr.f32.mxu0 0.0
        %1330 = vmatmul.mubr.f32.gmra.mrb[0].mxu0 %v1230
        %v1331 = vpop.f32.mrb[0].mxu0
        %v1332 = vadd.f32 0.0, %v1331
        %v1333 = vpop.f32.mrb[0].mxu0
        %1334 = vmatprep.mubr.f32.mxu0 0.0
        %1335 = vmatmul.mubr.f32.gmra.mrb[0].mxu0 %v1233
        %v1336 = vpop.f32.mrb[0].mxu0
        %v1337 = vadd.f32 0.0, %v1336
        %v1338 = vpop.f32.mrb[0].mxu0
        %1339 = vdwg.mxu0
        %v1340 = vld [vmem:[#allocation6] sm:$0xff]
        %v1341 = vld [vmem:[#allocation6 + $0x8] sm:$0xff]
        %v1343 = vsel %vm702, %v1340, 0
        %v1346 = vsel %vm702, %v1341, 0
        %1348 = vmatprep.subr.mxu0 0.0
        %1349 = vmatpush1.msra.mxu0 %v1175
        %1350 = vmatprep.subr.mxu0 0.0
        %1351 = vmatpush1.msra.mxu0 %v1176
        %1352 = vmatprep.subr.mxu0 0.0
        %1353 = vmatpush1.msra.mxu0 0.0
        %1354 = vmatprep.subr.mxu0 0.0
        %1355 = vmatpush1.msra.mxu0 0.0
        %1356 = vmatprep.subr.mxu0 0.0
        %1357 = vmatpush1.msra.mxu0 0.0
        %1358 = vmatprep.subr.mxu0 0.0
        %1359 = vmatpush1.msra.mxu0 0.0
        %1360 = vmatprep.subr.mxu0 0.0
        %1361 = vmatpush1.msra.mxu0 0.0
        %1362 = vmatprep.subr.mxu0 0.0
        %1363 = vmatpush1.msra.mxu0 0.0
        %1364 = vmatprep.subr.mxu0 0.0
        %1365 = vmatpush1.msra.mxu0 0.0
        %1366 = vmatprep.subr.mxu0 0.0
        %1367 = vmatpush1.msra.mxu0 0.0
        %1368 = vmatprep.subr.mxu0 0.0
        %1369 = vmatpush1.msra.mxu0 0.0
        %1370 = vmatprep.subr.mxu0 0.0
        %1371 = vmatpush1.msra.mxu0 0.0
        %1372 = vmatprep.subr.mxu0 0.0
        %1373 = vmatpush1.msra.mxu0 0.0
        %1374 = vmatprep.subr.mxu0 0.0
        %1375 = vmatpush1.msra.mxu0 0.0
        %1376 = vmatprep.subr.mxu0 0.0
        %1377 = vmatpush1.msra.mxu0 0.0
        %1378 = vmatprep.subr.mxu0 0.0
        %1379 = vmatpush1.msra.mxu0 0.0
        %1380 = vmatprep.subr.mxu0 0.0
        %1381 = vmatpush1.msra.mxu0 0.0
        %1382 = vmatprep.subr.mxu0 0.0
        %1383 = vmatpush1.msra.mxu0 0.0
        %1384 = vmatprep.subr.mxu0 0.0
        %1385 = vmatpush1.msra.mxu0 0.0
        %1386 = vmatprep.subr.mxu0 0.0
        %1387 = vmatpush1.msra.mxu0 0.0
        %1388 = vmatprep.subr.mxu0 0.0
        %1389 = vmatpush1.msra.mxu0 0.0
        %1390 = vmatprep.subr.mxu0 0.0
        %1391 = vmatpush1.msra.mxu0 0.0
        %1392 = vmatprep.subr.mxu0 0.0
        %1393 = vmatpush1.msra.mxu0 0.0
        %1394 = vmatprep.subr.mxu0 0.0
        %1395 = vmatpush1.msra.mxu0 0.0
        %1396 = vmatprep.subr.mxu0 0.0
        %1397 = vmatpush1.msra.mxu0 0.0
        %1398 = vmatprep.subr.mxu0 0.0
        %1399 = vmatpush1.msra.mxu0 0.0
        %1400 = vmatprep.subr.mxu0 0.0
        %1401 = vmatpush1.msra.mxu0 0.0
        %1402 = vmatprep.subr.mxu0 0.0
        %1403 = vmatpush1.msra.mxu0 0.0
        %1404 = vmatprep.subr.mxu0 0.0
        %1405 = vmatpush1.msra.mxu0 0.0
        %1406 = vmatprep.subr.mxu0 0.0
        %1407 = vmatpush1.msra.mxu0 0.0
        %1408 = vmatprep.subr.mxu0 0.0
        %1409 = vmatpush1.msra.mxu0 0.0
        %1410 = vmatprep.subr.mxu0 0.0
        %1411 = vmatpush1.msra.mxu0 0.0
        %1412 = vmatprep.mubr.f32.mxu0 0.0
        %1413 = vmatmul.mubr.f32.gmra.mrb[0].mxu0 %v1343
        %v1414 = vpop.f32.mrb[0].mxu0
        %v1415 = vadd.f32 0.0, %v1414
        %v1416 = vpop.f32.mrb[0].mxu0
        %1417 = vmatprep.mubr.f32.mxu0 0.0
        %1418 = vmatmul.mubr.f32.gmra.mrb[0].mxu0 %v1346
        %v1419 = vpop.f32.mrb[0].mxu0
        %v1420 = vadd.f32 0.0, %v1419
        %v1421 = vpop.f32.mrb[0].mxu0
        %1422 = vdwg.mxu0
        %v1423 = vld [vmem:[%s7] sm:$0xff]
        %v1424 = vld [vmem:[%s7 + $0x8] sm:$0xff]
        %v1425 = vld [vmem:[%s7 + $0x10] sm:$0xff]
        %v1426 = vld [vmem:[%s7 + $0x18] sm:$0xff]
        %vm1427 = vcmask 261120
        %v1429 = vsel %vm1427, %v1302, 0
        %v1432 = vsel %vm1427, %v1307, 0
        %v1435 = vsel %vm1427, %v1312, 0
        %v1438 = vsel %vm1427, %v1317, 0
        %v1441 = vsel %vm1427, %v1322, 0
        %v1444 = vsel %vm1427, %v1327, 0
        %v1447 = vsel %vm1427, %v1332, 0
        %v1450 = vsel %vm1427, %v1337, 0
        %1452 = vmatprep.subr.mxu0 0.0
        %1453 = vmatpush1.msra.mxu0 %v1423
        %1454 = vmatprep.subr.mxu0 0.0
        %1455 = vmatpush1.msra.mxu0 %v1424
        %1456 = vmatprep.subr.mxu0 0.0
        %1457 = vmatpush1.msra.mxu0 %v1425
        %1458 = vmatprep.subr.mxu0 0.0
        %1459 = vmatpush1.msra.mxu0 %v1426
        %1460 = vmatprep.subr.mxu0 0.0
        %1461 = vmatpush1.msra.mxu0 0.0
        %1462 = vmatprep.subr.mxu0 0.0
        %1463 = vmatpush1.msra.mxu0 0.0
        %1464 = vmatprep.subr.mxu0 0.0
        %1465 = vmatpush1.msra.mxu0 0.0
        %1466 = vmatprep.subr.mxu0 0.0
        %1467 = vmatpush1.msra.mxu0 0.0
        %1468 = vmatprep.subr.mxu0 0.0
        %1469 = vmatpush1.msra.mxu0 0.0
        %1470 = vmatprep.subr.mxu0 0.0
        %1471 = vmatpush1.msra.mxu0 0.0
        %1472 = vmatprep.subr.mxu0 0.0
        %1473 = vmatpush1.msra.mxu0 0.0
        %1474 = vmatprep.subr.mxu0 0.0
        %1475 = vmatpush1.msra.mxu0 0.0
        %1476 = vmatprep.subr.mxu0 0.0
        %1477 = vmatpush1.msra.mxu0 0.0
        %1478 = vmatprep.subr.mxu0 0.0
        %1479 = vmatpush1.msra.mxu0 0.0
        %1480 = vmatprep.subr.mxu0 0.0
        %1481 = vmatpush1.msra.mxu0 0.0
        %1482 = vmatprep.subr.mxu0 0.0
        %1483 = vmatpush1.msra.mxu0 0.0
        %1484 = vmatprep.subr.mxu0 0.0
        %1485 = vmatpush1.msra.mxu0 0.0
        %1486 = vmatprep.subr.mxu0 0.0
        %1487 = vmatpush1.msra.mxu0 0.0
        %1488 = vmatprep.subr.mxu0 0.0
        %1489 = vmatpush1.msra.mxu0 0.0
        %1490 = vmatprep.subr.mxu0 0.0
        %1491 = vmatpush1.msra.mxu0 0.0
        %1492 = vmatprep.subr.mxu0 0.0
        %1493 = vmatpush1.msra.mxu0 0.0
        %1494 = vmatprep.subr.mxu0 0.0
        %1495 = vmatpush1.msra.mxu0 0.0
        %1496 = vmatprep.subr.mxu0 0.0
        %1497 = vmatpush1.msra.mxu0 0.0
        %1498 = vmatprep.subr.mxu0 0.0
        %1499 = vmatpush1.msra.mxu0 0.0
        %1500 = vmatprep.subr.mxu0 0.0
        %1501 = vmatpush1.msra.mxu0 0.0
        %1502 = vmatprep.subr.mxu0 0.0
        %1503 = vmatpush1.msra.mxu0 0.0
        %1504 = vmatprep.subr.mxu0 0.0
        %1505 = vmatpush1.msra.mxu0 0.0
        %1506 = vmatprep.subr.mxu0 0.0
        %1507 = vmatpush1.msra.mxu0 0.0
        %1508 = vmatprep.subr.mxu0 0.0
        %1509 = vmatpush1.msra.mxu0 0.0
        %1510 = vmatprep.subr.mxu0 0.0
        %1511 = vmatpush1.msra.mxu0 0.0
        %1512 = vmatprep.subr.mxu0 0.0
        %1513 = vmatpush1.msra.mxu0 0.0
        %1514 = vmatprep.subr.mxu0 0.0
        %1515 = vmatpush1.msra.mxu0 0.0
        %1516 = vmatprep.mubr.f32.mxu0 0.0
        %1517 = vmatmul.mubr.f32.gmra.mrb[0].mxu0 %v1429
        %v1518 = vpop.f32.mrb[0].mxu0
        %v1519 = vadd.f32 0.0, %v1518
        %v1520 = vpop.f32.mrb[0].mxu0
        %1521 = vmatprep.mubr.f32.mxu0 0.0
        %1522 = vmatmul.mubr.f32.gmra.mrb[0].mxu0 %v1432
        %v1523 = vpop.f32.mrb[0].mxu0
        %v1524 = vadd.f32 0.0, %v1523
        %v1525 = vpop.f32.mrb[0].mxu0
        %1526 = vmatprep.mubr.f32.mxu0 0.0
        %1527 = vmatmul.mubr.f32.gmra.mrb[0].mxu0 %v1435
        %v1528 = vpop.f32.mrb[0].mxu0
        %v1529 = vadd.f32 0.0, %v1528
        %v1530 = vpop.f32.mrb[0].mxu0
        %1531 = vmatprep.mubr.f32.mxu0 0.0
        %1532 = vmatmul.mubr.f32.gmra.mrb[0].mxu0 %v1438
        %v1533 = vpop.f32.mrb[0].mxu0
        %v1534 = vadd.f32 0.0, %v1533
        %v1535 = vpop.f32.mrb[0].mxu0
        %1536 = vmatprep.mubr.f32.mxu0 0.0
        %1537 = vmatmul.mubr.f32.gmra.mrb[0].mxu0 %v1441
        %v1538 = vpop.f32.mrb[0].mxu0
        %v1539 = vadd.f32 0.0, %v1538
        %v1540 = vpop.f32.mrb[0].mxu0
        %1541 = vmatprep.mubr.f32.mxu0 0.0
        %1542 = vmatmul.mubr.f32.gmra.mrb[0].mxu0 %v1444
        %v1543 = vpop.f32.mrb[0].mxu0
        %v1544 = vadd.f32 0.0, %v1543
        %v1545 = vpop.f32.mrb[0].mxu0
        %1546 = vmatprep.mubr.f32.mxu0 0.0
        %1547 = vmatmul.mubr.f32.gmra.mrb[0].mxu0 %v1447
        %v1548 = vpop.f32.mrb[0].mxu0
        %v1549 = vadd.f32 0.0, %v1548
        %v1550 = vpop.f32.mrb[0].mxu0
        %1551 = vmatprep.mubr.f32.mxu0 0.0
        %1552 = vmatmul.mubr.f32.gmra.mrb[0].mxu0 %v1450
        %v1553 = vpop.f32.mrb[0].mxu0
        %v1554 = vadd.f32 0.0, %v1553
        %v1555 = vpop.f32.mrb[0].mxu0
        %1556 = vdwg.mxu0
        %v1557 = vmul.f32 %v1519, 0.25
        %v1558 = vmul.f32 %v1524, 0.25
        %v1559 = vmul.f32 %v1529, 0.25
        %v1560 = vmul.f32 %v1534, 0.25
        %v1561 = vmul.f32 %v1539, 0.25
        %v1562 = vmul.f32 %v1544, 0.25
        %v1563 = vmul.f32 %v1549, 0.25
        %v1564 = vmul.f32 %v1554, 0.25
        %v1565 = vsub.f32 %v1302, %v1557
        %v1566 = vsub.f32 %v1307, %v1558
        %v1567 = vsub.f32 %v1312, %v1559
        %v1568 = vsub.f32 %v1317, %v1560
        %v1569 = vsub.f32 %v1322, %v1561
        %v1570 = vsub.f32 %v1327, %v1562
        %v1571 = vsub.f32 %v1332, %v1563
        %v1572 = vsub.f32 %v1337, %v1564
        %v1573 = vmul.f32 %v1565, %v1565
        %v1574 = vmul.f32 %v1566, %v1566
        %v1575 = vmul.f32 %v1567, %v1567
        %v1576 = vmul.f32 %v1568, %v1568
        %v1577 = vmul.f32 %v1569, %v1569
        %v1578 = vmul.f32 %v1570, %v1570
        %v1579 = vmul.f32 %v1571, %v1571
        %v1580 = vmul.f32 %v1572, %v1572
        %v1582 = vsel %vm1427, %v1573, 0
        %v1585 = vsel %vm1427, %v1574, 0
        %v1588 = vsel %vm1427, %v1575, 0
        %v1591 = vsel %vm1427, %v1576, 0
        %v1594 = vsel %vm1427, %v1577, 0
        %v1597 = vsel %vm1427, %v1578, 0
        %v1600 = vsel %vm1427, %v1579, 0
        %v1603 = vsel %vm1427, %v1580, 0
        %1605 = vmatprep.subr.mxu0 0.0
        %1606 = vmatpush1.msra.mxu0 %v1423
        %1607 = vmatprep.subr.mxu0 0.0
        %1608 = vmatpush1.msra.mxu0 %v1424
        %1609 = vmatprep.subr.mxu0 0.0
        %1610 = vmatpush1.msra.mxu0 %v1425
        %1611 = vmatprep.subr.mxu0 0.0
        %1612 = vmatpush1.msra.mxu0 %v1426
        %1613 = vmatprep.subr.mxu0 0.0
        %1614 = vmatpush1.msra.mxu0 0.0
        %1615 = vmatprep.subr.mxu0 0.0
        %1616 = vmatpush1.msra.mxu0 0.0
        %1617 = vmatprep.subr.mxu0 0.0
        %1618 = vmatpush1.msra.mxu0 0.0
        %1619 = vmatprep.subr.mxu0 0.0
        %1620 = vmatpush1.msra.mxu0 0.0
        %1621 = vmatprep.subr.mxu0 0.0
        %1622 = vmatpush1.msra.mxu0 0.0
        %1623 = vmatprep.subr.mxu0 0.0
        %1624 = vmatpush1.msra.mxu0 0.0
        %1625 = vmatprep.subr.mxu0 0.0
        %1626 = vmatpush1.msra.mxu0 0.0
        %1627 = vmatprep.subr.mxu0 0.0
        %1628 = vmatpush1.msra.mxu0 0.0
        %1629 = vmatprep.subr.mxu0 0.0
        %1630 = vmatpush1.msra.mxu0 0.0
        %1631 = vmatprep.subr.mxu0 0.0
        %1632 = vmatpush1.msra.mxu0 0.0
        %1633 = vmatprep.subr.mxu0 0.0
        %1634 = vmatpush1.msra.mxu0 0.0
        %1635 = vmatprep.subr.mxu0 0.0
        %1636 = vmatpush1.msra.mxu0 0.0
        %1637 = vmatprep.subr.mxu0 0.0
        %1638 = vmatpush1.msra.mxu0 0.0
        %1639 = vmatprep.subr.mxu0 0.0
        %1640 = vmatpush1.msra.mxu0 0.0
        %1641 = vmatprep.subr.mxu0 0.0
        %1642 = vmatpush1.msra.mxu0 0.0
        %1643 = vmatprep.subr.mxu0 0.0
        %1644 = vmatpush1.msra.mxu0 0.0
        %1645 = vmatprep.subr.mxu0 0.0
        %1646 = vmatpush1.msra.mxu0 0.0
        %1647 = vmatprep.subr.mxu0 0.0
        %1648 = vmatpush1.msra.mxu0 0.0
        %1649 = vmatprep.subr.mxu0 0.0
        %1650 = vmatpush1.msra.mxu0 0.0
        %1651 = vmatprep.subr.mxu0 0.0
        %1652 = vmatpush1.msra.mxu0 0.0
        %1653 = vmatprep.subr.mxu0 0.0
        %1654 = vmatpush1.msra.mxu0 0.0
        %1655 = vmatprep.subr.mxu0 0.0
        %1656 = vmatpush1.msra.mxu0 0.0
        %1657 = vmatprep.subr.mxu0 0.0
        %1658 = vmatpush1.msra.mxu0 0.0
        %1659 = vmatprep.subr.mxu0 0.0
        %1660 = vmatpush1.msra.mxu0 0.0
        %1661 = vmatprep.subr.mxu0 0.0
        %1662 = vmatpush1.msra.mxu0 0.0
        %1663 = vmatprep.subr.mxu0 0.0
        %1664 = vmatpush1.msra.mxu0 0.0
        %1665 = vmatprep.subr.mxu0 0.0
        %1666 = vmatpush1.msra.mxu0 0.0
        %1667 = vmatprep.subr.mxu0 0.0
        %1668 = vmatpush1.msra.mxu0 0.0
        %1669 = vmatprep.mubr.f32.mxu0 0.0
        %1670 = vmatmul.mubr.f32.gmra.mrb[0].mxu0 %v1582
        %v1671 = vpop.f32.mrb[0].mxu0
        %v1672 = vadd.f32 0.0, %v1671
        %v1673 = vpop.f32.mrb[0].mxu0
        %1674 = vmatprep.mubr.f32.mxu0 0.0
        %1675 = vmatmul.mubr.f32.gmra.mrb[0].mxu0 %v1585
        %v1676 = vpop.f32.mrb[0].mxu0
        %v1677 = vadd.f32 0.0, %v1676
        %v1678 = vpop.f32.mrb[0].mxu0
        %1679 = vmatprep.mubr.f32.mxu0 0.0
        %1680 = vmatmul.mubr.f32.gmra.mrb[0].mxu0 %v1588
        %v1681 = vpop.f32.mrb[0].mxu0
        %v1682 = vadd.f32 0.0, %v1681
        %v1683 = vpop.f32.mrb[0].mxu0
        %1684 = vmatprep.mubr.f32.mxu0 0.0
        %1685 = vmatmul.mubr.f32.gmra.mrb[0].mxu0 %v1591
        %v1686 = vpop.f32.mrb[0].mxu0
        %v1687 = vadd.f32 0.0, %v1686
        %v1688 = vpop.f32.mrb[0].mxu0
        %1689 = vmatprep.mubr.f32.mxu0 0.0
        %1690 = vmatmul.mubr.f32.gmra.mrb[0].mxu0 %v1594
        %v1691 = vpop.f32.mrb[0].mxu0
        %v1692 = vadd.f32 0.0, %v1691
        %v1693 = vpop.f32.mrb[0].mxu0
        %1694 = vmatprep.mubr.f32.mxu0 0.0
        %1695 = vmatmul.mubr.f32.gmra.mrb[0].mxu0 %v1597
        %v1696 = vpop.f32.mrb[0].mxu0
        %v1697 = vadd.f32 0.0, %v1696
        %v1698 = vpop.f32.mrb[0].mxu0
        %1699 = vmatprep.mubr.f32.mxu0 0.0
        %1700 = vmatmul.mubr.f32.gmra.mrb[0].mxu0 %v1600
        %v1701 = vpop.f32.mrb[0].mxu0
        %v1702 = vadd.f32 0.0, %v1701
        %v1703 = vpop.f32.mrb[0].mxu0
        %1704 = vmatprep.mubr.f32.mxu0 0.0
        %1705 = vmatmul.mubr.f32.gmra.mrb[0].mxu0 %v1603
        %v1706 = vpop.f32.mrb[0].mxu0
        %v1707 = vadd.f32 0.0, %v1706
        %v1708 = vpop.f32.mrb[0].mxu0
        %1709 = vdwg.mxu0
        %v1710 = vmul.f32 %v1672, 0.33333334
        %v1711 = vmul.f32 %v1677, 0.33333334
        %v1712 = vmul.f32 %v1682, 0.33333334
        %v1713 = vmul.f32 %v1687, 0.33333334
        %v1714 = vmul.f32 %v1692, 0.33333334
        %v1715 = vmul.f32 %v1697, 0.33333334
        %v1716 = vmul.f32 %v1702, 0.33333334
        %v1717 = vmul.f32 %v1707, 0.33333334
        %v1718 = vrsqrt.pop %v1710
        %v1719 = vmul.f32 %v1710, %v1718
        %vm1720 = vcmp.eq.f32.partialorder %v1710, inf
        %v1721 = vsel %vm1720, %v1710, %v1719
        %vm1722 = vcmp.eq.f32.partialorder %v1710, 0.0
        %v1723 = vand.u32 %v1710, 2147483648
        %v1724 = vsel %vm1722, %v1723, %v1721
        %v1725 = vrsqrt.pop %v1711
        %v1726 = vmul.f32 %v1711, %v1725
        %vm1727 = vcmp.eq.f32.partialorder %v1711, inf
        %v1728 = vsel %vm1727, %v1711, %v1726
        %vm1729 = vcmp.eq.f32.partialorder %v1711, 0.0
        %v1730 = vand.u32 %v1711, 2147483648
        %v1731 = vsel %vm1729, %v1730, %v1728
        %v1732 = vrsqrt.pop %v1712
        %v1733 = vmul.f32 %v1712, %v1732
        %vm1734 = vcmp.eq.f32.partialorder %v1712, inf
        %v1735 = vsel %vm1734, %v1712, %v1733
        %vm1736 = vcmp.eq.f32.partialorder %v1712, 0.0
        %v1737 = vand.u32 %v1712, 2147483648
        %v1738 = vsel %vm1736, %v1737, %v1735
        %v1739 = vrsqrt.pop %v1713
        %v1740 = vmul.f32 %v1713, %v1739
        %vm1741 = vcmp.eq.f32.partialorder %v1713, inf
        %v1742 = vsel %vm1741, %v1713, %v1740
        %vm1743 = vcmp.eq.f32.partialorder %v1713, 0.0
        %v1744 = vand.u32 %v1713, 2147483648
        %v1745 = vsel %vm1743, %v1744, %v1742
        %v1746 = vrsqrt.pop %v1714
        %v1747 = vmul.f32 %v1714, %v1746
        %vm1748 = vcmp.eq.f32.partialorder %v1714, inf
        %v1749 = vsel %vm1748, %v1714, %v1747
        %vm1750 = vcmp.eq.f32.partialorder %v1714, 0.0
        %v1751 = vand.u32 %v1714, 2147483648
        %v1752 = vsel %vm1750, %v1751, %v1749
        %v1753 = vrsqrt.pop %v1715
        %v1754 = vmul.f32 %v1715, %v1753
        %vm1755 = vcmp.eq.f32.partialorder %v1715, inf
        %v1756 = vsel %vm1755, %v1715, %v1754
        %vm1757 = vcmp.eq.f32.partialorder %v1715, 0.0
        %v1758 = vand.u32 %v1715, 2147483648
        %v1759 = vsel %vm1757, %v1758, %v1756
        %v1760 = vrsqrt.pop %v1716
        %v1761 = vmul.f32 %v1716, %v1760
        %vm1762 = vcmp.eq.f32.partialorder %v1716, inf
        %v1763 = vsel %vm1762, %v1716, %v1761
        %vm1764 = vcmp.eq.f32.partialorder %v1716, 0.0
        %v1765 = vand.u32 %v1716, 2147483648
        %v1766 = vsel %vm1764, %v1765, %v1763
        %v1767 = vrsqrt.pop %v1717
        %v1768 = vmul.f32 %v1717, %v1767
        %vm1769 = vcmp.eq.f32.partialorder %v1717, inf
        %v1770 = vsel %vm1769, %v1717, %v1768
        %vm1771 = vcmp.eq.f32.partialorder %v1717, 0.0
        %v1772 = vand.u32 %v1717, 2147483648
        %v1773 = vsel %vm1771, %v1772, %v1770
        %v1774 = vadd.f32 %v1724, 1e-05
        %v1775 = vadd.f32 %v1731, 1e-05
        %v1776 = vadd.f32 %v1738, 1e-05
        %v1777 = vadd.f32 %v1745, 1e-05
        %v1778 = vadd.f32 %v1752, 1e-05
        %v1779 = vadd.f32 %v1759, 1e-05
        %v1780 = vadd.f32 %v1766, 1e-05
        %v1781 = vadd.f32 %v1773, 1e-05
        %v1782 = vrcp.pop %v1774
        %v1783 = vmul.f32 1.0, %v1782
        %v1784 = vrcp.pop %v1775
        %v1785 = vmul.f32 1.0, %v1784
        %v1786 = vrcp.pop %v1776
        %v1787 = vmul.f32 1.0, %v1786
        %v1788 = vrcp.pop %v1777
        %v1789 = vmul.f32 1.0, %v1788
        %v1790 = vrcp.pop %v1778
        %v1791 = vmul.f32 1.0, %v1790
        %v1792 = vrcp.pop %v1779
        %v1793 = vmul.f32 1.0, %v1792
        %v1794 = vrcp.pop %v1780
        %v1795 = vmul.f32 1.0, %v1794
        %v1796 = vrcp.pop %v1781
        %v1797 = vmul.f32 1.0, %v1796
        %v1798 = vmul.f32 %v1565, %v1783
        %v1799 = vmul.f32 %v1566, %v1785
        %v1800 = vmul.f32 %v1567, %v1787
        %v1801 = vmul.f32 %v1568, %v1789
        %v1802 = vmul.f32 %v1569, %v1791
        %v1803 = vmul.f32 %v1570, %v1793
        %v1804 = vmul.f32 %v1571, %v1795
        %v1805 = vmul.f32 %v1572, %v1797
        %v1806 = vld [vmem:[#allocation8] sm:$0x1]
        %v1808 = vlaneseq
        %v1809 = vshrl.u32 %v1808, 7
        %v1810 = vsub.s32 0, %v1809
        %v1811 = vrot.slane %v1806, %v1810
        %v1813 = vmul.f32 %v1798, %v1811
        %v1814 = vmul.f32 %v1799, %v1811
        %v1815 = vmul.f32 %v1800, %v1811
        %v1816 = vmul.f32 %v1801, %v1811
        %v1817 = vmul.f32 %v1802, %v1811
        %v1818 = vmul.f32 %v1803, %v1811
        %v1819 = vmul.f32 %v1804, %v1811
        %v1820 = vmul.f32 %v1805, %v1811
        %1829 = vrot.lane.b32.xlu0 %v1798, 112
        %v1830 = vpop.permute.xlu0 %1829
        %1831 = vrot.lane.b32.xlu0 %v1799, 112
        %v1832 = vpop.permute.xlu0 %1831
        %1833 = vrot.lane.b32.xlu0 %v1800, 112
        %v1834 = vpop.permute.xlu0 %1833
        %1835 = vrot.lane.b32.xlu0 %v1801, 112
        %v1836 = vpop.permute.xlu0 %1835
        %1837 = vrot.lane.b32.xlu0 %v1802, 112
        %v1838 = vpop.permute.xlu0 %1837
        %1839 = vrot.lane.b32.xlu0 %v1803, 112
        %v1840 = vpop.permute.xlu0 %1839
        %1841 = vrot.lane.b32.xlu0 %v1804, 112
        %v1842 = vpop.permute.xlu0 %1841
        %1843 = vrot.lane.b32.xlu0 %v1805, 112
        %v1844 = vpop.permute.xlu0 %1843
        %v1846 = vsel %vm702, %v1813, 0
        %v1849 = vsel %vm702, %v1814, 0
        %v1852 = vsel %vm702, %v1815, 0
        %v1855 = vsel %vm702, %v1816, 0
        %v1858 = vsel %vm702, %v1817, 0
        %v1861 = vsel %vm702, %v1818, 0
        %v1864 = vsel %vm702, %v1819, 0
        %v1867 = vsel %vm702, %v1820, 0
        %v1869 = vsel %vm702, %v1830, 0
        %v1871 = vsel %vm702, %v1832, 0
        %v1873 = vsel %vm702, %v1834, 0
        %v1875 = vsel %vm702, %v1836, 0
        %v1877 = vsel %vm702, %v1838, 0
        %v1879 = vsel %vm702, %v1840, 0
        %v1881 = vsel %vm702, %v1842, 0
        %v1883 = vsel %vm702, %v1844, 0
        %1885 = vmatprep.subr.mxu0 0.0
        %1886 = vmatpush1.xpose.msra.mxu0 %v1869
        %1887 = vmatprep.subr.mxu0 0.0
        %1888 = vmatpush1.xpose.msra.mxu0 %v1871
        %1889 = vmatprep.subr.mxu0 0.0
        %1890 = vmatpush1.xpose.msra.mxu0 %v1873
        %1891 = vmatprep.subr.mxu0 0.0
        %1892 = vmatpush1.xpose.msra.mxu0 %v1875
        %1893 = vmatprep.subr.mxu0 0.0
        %1894 = vmatpush1.xpose.msra.mxu0 %v1877
        %1895 = vmatprep.subr.mxu0 0.0
        %1896 = vmatpush1.xpose.msra.mxu0 %v1879
        %1897 = vmatprep.subr.mxu0 0.0
        %1898 = vmatpush1.xpose.msra.mxu0 %v1881
        %1899 = vmatprep.subr.mxu0 0.0
        %1900 = vmatpush1.xpose.msra.mxu0 %v1883
        %1901 = vmatprep.subr.mxu0 0.0
        %1902 = vmatpush1.xpose.msra.mxu0 0.0
        %1903 = vmatprep.subr.mxu0 0.0
        %1904 = vmatpush1.xpose.msra.mxu0 0.0
        %1905 = vmatprep.subr.mxu0 0.0
        %1906 = vmatpush1.xpose.msra.mxu0 0.0
        %1907 = vmatprep.subr.mxu0 0.0
        %1908 = vmatpush1.xpose.msra.mxu0 0.0
        %1909 = vmatprep.subr.mxu0 0.0
        %1910 = vmatpush1.xpose.msra.mxu0 0.0
        %1911 = vmatprep.subr.mxu0 0.0
        %1912 = vmatpush1.xpose.msra.mxu0 0.0
        %1913 = vmatprep.subr.mxu0 0.0
        %1914 = vmatpush1.xpose.msra.mxu0 0.0
        %1915 = vmatprep.subr.mxu0 0.0
        %1916 = vmatpush1.xpose.msra.mxu0 0.0
        %1917 = vmatprep.subr.mxu0 0.0
        %1918 = vmatpush1.xpose.msra.mxu0 0.0
        %1919 = vmatprep.subr.mxu0 0.0
        %1920 = vmatpush1.xpose.msra.mxu0 0.0
        %1921 = vmatprep.subr.mxu0 0.0
        %1922 = vmatpush1.xpose.msra.mxu0 0.0
        %1923 = vmatprep.subr.mxu0 0.0
        %1924 = vmatpush1.xpose.msra.mxu0 0.0
        %1925 = vmatprep.subr.mxu0 0.0
        %1926 = vmatpush1.xpose.msra.mxu0 0.0
        %1927 = vmatprep.subr.mxu0 0.0
        %1928 = vmatpush1.xpose.msra.mxu0 0.0
        %1929 = vmatprep.subr.mxu0 0.0
        %1930 = vmatpush1.xpose.msra.mxu0 0.0
        %1931 = vmatprep.subr.mxu0 0.0
        %1932 = vmatpush1.xpose.msra.mxu0 0.0
        %1933 = vmatprep.subr.mxu0 0.0
        %1934 = vmatpush1.xpose.msra.mxu0 0.0
        %1935 = vmatprep.subr.mxu0 0.0
        %1936 = vmatpush1.xpose.msra.mxu0 0.0
        %1937 = vmatprep.subr.mxu0 0.0
        %1938 = vmatpush1.xpose.msra.mxu0 0.0
        %1939 = vmatprep.subr.mxu0 0.0
        %1940 = vmatpush1.xpose.msra.mxu0 0.0
        %1941 = vmatprep.subr.mxu0 0.0
        %1942 = vmatpush1.xpose.msra.mxu0 0.0
        %1943 = vmatprep.subr.mxu0 0.0
        %1944 = vmatpush1.xpose.msra.mxu0 0.0
        %1945 = vmatprep.subr.mxu0 0.0
        %1946 = vmatpush1.xpose.msra.mxu0 0.0
        %1947 = vmatprep.subr.mxu0 0.0
        %1948 = vmatpush1.xpose.msra.mxu0 0.0
        %1949 = vmatprep.mubr.f32.mxu0 0.0
        %1950 = vmatmul.mubr.f32.gmra.mrb[0].mxu0 %v1846
        %v1951 = vpop.f32.mrb[0].mxu0
        %v1952 = vadd.f32 0.0, %v1951
        %v1953 = vpop.f32.mrb[0].mxu0
        %1954 = vmatprep.mubr.f32.mxu0 0.0
        %1955 = vmatmul.mubr.f32.gmra.mrb[0].mxu0 %v1849
        %v1956 = vpop.f32.mrb[0].mxu0
        %v1957 = vadd.f32 0.0, %v1956
        %v1958 = vpop.f32.mrb[0].mxu0
        %1959 = vmatprep.mubr.f32.mxu0 0.0
        %1960 = vmatmul.mubr.f32.gmra.mrb[0].mxu0 %v1852
        %v1961 = vpop.f32.mrb[0].mxu0
        %v1962 = vadd.f32 0.0, %v1961
        %v1963 = vpop.f32.mrb[0].mxu0
        %1964 = vmatprep.mubr.f32.mxu0 0.0
        %1965 = vmatmul.mubr.f32.gmra.mrb[0].mxu0 %v1855
        %v1966 = vpop.f32.mrb[0].mxu0
        %v1967 = vadd.f32 0.0, %v1966
        %v1968 = vpop.f32.mrb[0].mxu0
        %1969 = vmatprep.mubr.f32.mxu0 0.0
        %1970 = vmatmul.mubr.f32.gmra.mrb[0].mxu0 %v1858
        %v1971 = vpop.f32.mrb[0].mxu0
        %v1972 = vadd.f32 0.0, %v1971
        %v1973 = vpop.f32.mrb[0].mxu0
        %1974 = vmatprep.mubr.f32.mxu0 0.0
        %1975 = vmatmul.mubr.f32.gmra.mrb[0].mxu0 %v1861
        %v1976 = vpop.f32.mrb[0].mxu0
        %v1977 = vadd.f32 0.0, %v1976
        %v1978 = vpop.f32.mrb[0].mxu0
        %1979 = vmatprep.mubr.f32.mxu0 0.0
        %1980 = vmatmul.mubr.f32.gmra.mrb[0].mxu0 %v1864
        %v1981 = vpop.f32.mrb[0].mxu0
        %v1982 = vadd.f32 0.0, %v1981
        %v1983 = vpop.f32.mrb[0].mxu0
        %1984 = vmatprep.mubr.f32.mxu0 0.0
        %1985 = vmatmul.mubr.f32.gmra.mrb[0].mxu0 %v1867
        %v1986 = vpop.f32.mrb[0].mxu0
        %v1987 = vadd.f32 0.0, %v1986
        %v1988 = vpop.f32.mrb[0].mxu0
        %1989 = vdwg.mxu0
        %v1990 = vmul.f32 %v1952, 0.5
        %v1991 = vmul.f32 %v1957, 0.5
        %v1992 = vmul.f32 %v1962, 0.5
        %v1993 = vmul.f32 %v1967, 0.5
        %v1994 = vmul.f32 %v1972, 0.5
        %v1995 = vmul.f32 %v1977, 0.5
        %v1996 = vmul.f32 %v1982, 0.5
        %v1997 = vmul.f32 %v1987, 0.5
        %v1998 = vsel %vm433, %v1990, -inf
        %1999 = vmax.xlane.f32.xlu0 %v1998
        %v2000 = vpop.xlane.xlu0 %1999
        %v2001 = vsel %vm433, %v1991, -inf
        %2002 = vmax.xlane.f32.xlu0 %v2001
        %v2003 = vpop.xlane.xlu0 %2002
        %v2004 = vsel %vm433, %v1992, -inf
        %2005 = vmax.xlane.f32.xlu0 %v2004
        %v2006 = vpop.xlane.xlu0 %2005
        %v2007 = vsel %vm433, %v1993, -inf
        %2008 = vmax.xlane.f32.xlu0 %v2007
        %v2009 = vpop.xlane.xlu0 %2008
        %v2010 = vsel %vm433, %v1994, -inf
        %2011 = vmax.xlane.f32.xlu0 %v2010
        %v2012 = vpop.xlane.xlu0 %2011
        %v2013 = vsel %vm433, %v1995, -inf
        %2014 = vmax.xlane.f32.xlu0 %v2013
        %v2015 = vpop.xlane.xlu0 %2014
        %v2016 = vsel %vm433, %v1996, -inf
        %2017 = vmax.xlane.f32.xlu0 %v2016
        %v2018 = vpop.xlane.xlu0 %2017
        %v2019 = vsel %vm433, %v1997, -inf
        %2020 = vmax.xlane.f32.xlu0 %v2019
        %v2021 = vpop.xlane.xlu0 %2020
        %v2022 = vsub.f32 %v1990, %v2000
        %v2023 = vsub.f32 %v1991, %v2003
        %v2024 = vsub.f32 %v1992, %v2006
        %v2025 = vsub.f32 %v1993, %v2009
        %v2026 = vsub.f32 %v1994, %v2012
        %v2027 = vsub.f32 %v1995, %v2015
        %v2028 = vsub.f32 %v1996, %v2018
        %v2029 = vsub.f32 %v1997, %v2021
        %v2030 = vmul.f32 %v2022, 1.442695
        %v2031 = vpow.pop %v2030
        %v2032 = vmul.f32 %v2023, 1.442695
        %v2033 = vpow.pop %v2032
        %v2034 = vmul.f32 %v2024, 1.442695
        %v2035 = vpow.pop %v2034
        %v2036 = vmul.f32 %v2025, 1.442695
        %v2037 = vpow.pop %v2036
        %v2038 = vmul.f32 %v2026, 1.442695
        %v2039 = vpow.pop %v2038
        %v2040 = vmul.f32 %v2027, 1.442695
        %v2041 = vpow.pop %v2040
        %v2042 = vmul.f32 %v2028, 1.442695
        %v2043 = vpow.pop %v2042
        %v2044 = vmul.f32 %v2029, 1.442695
        %v2045 = vpow.pop %v2044
        %v2046 = vsel %vm433, %v2031, 0.0
        %2047 = vadd.xlane.f32.xlu0 %v2046
        %v2048 = vpop.xlane.xlu0 %2047
        %v2049 = vsel %vm433, %v2033, 0.0
        %2050 = vadd.xlane.f32.xlu0 %v2049
        %v2051 = vpop.xlane.xlu0 %2050
        %v2052 = vsel %vm433, %v2035, 0.0
        %2053 = vadd.xlane.f32.xlu0 %v2052
        %v2054 = vpop.xlane.xlu0 %2053
        %v2055 = vsel %vm433, %v2037, 0.0
        %2056 = vadd.xlane.f32.xlu0 %v2055
        %v2057 = vpop.xlane.xlu0 %2056
        %v2058 = vsel %vm433, %v2039, 0.0
        %2059 = vadd.xlane.f32.xlu0 %v2058
        %v2060 = vpop.xlane.xlu0 %2059
        %v2061 = vsel %vm433, %v2041, 0.0
        %2062 = vadd.xlane.f32.xlu0 %v2061
        %v2063 = vpop.xlane.xlu0 %2062
        %v2064 = vsel %vm433, %v2043, 0.0
        %2065 = vadd.xlane.f32.xlu0 %v2064
        %v2066 = vpop.xlane.xlu0 %2065
        %v2067 = vsel %vm433, %v2045, 0.0
        %2068 = vadd.xlane.f32.xlu0 %v2067
        %v2069 = vpop.xlane.xlu0 %2068
        %v2070 = vrcp.pop %v2048
        %v2071 = vmul.f32 1.0, %v2070
        %v2072 = vrcp.pop %v2051
        %v2073 = vmul.f32 1.0, %v2072
        %v2074 = vrcp.pop %v2054
        %v2075 = vmul.f32 1.0, %v2074
        %v2076 = vrcp.pop %v2057
        %v2077 = vmul.f32 1.0, %v2076
        %v2078 = vrcp.pop %v2060
        %v2079 = vmul.f32 1.0, %v2078
        %v2080 = vrcp.pop %v2063
        %v2081 = vmul.f32 1.0, %v2080
        %v2082 = vrcp.pop %v2066
        %v2083 = vmul.f32 1.0, %v2082
        %v2084 = vrcp.pop %v2069
        %v2085 = vmul.f32 1.0, %v2084
        %v2086 = vmul.f32 %v2031, %v2071
        %v2087 = vmul.f32 %v2033, %v2073
        %v2088 = vmul.f32 %v2035, %v2075
        %v2089 = vmul.f32 %v2037, %v2077
        %v2090 = vmul.f32 %v2039, %v2079
        %v2091 = vmul.f32 %v2041, %v2081
        %v2092 = vmul.f32 %v2043, %v2083
        %v2093 = vmul.f32 %v2045, %v2085
        %v2094 = vld [vmem:[%s9] sm:$0xff]
        %v2095 = vld [vmem:[%s9 + $0x8] sm:$0xff]
        %2097 = vset.pattern.permute.xlu0 0
        %2098 = vperm.xlu0 %2097, %v2094
        %v2099 = vpop.permute.xlu0 %2098
        %2102 = vset.pattern.permute.xlu0 0
        %2103 = vperm.xlu0 %2102, %v2095
        %v2104 = vpop.permute.xlu0 %2103
        %v2106 = vmul.f32 %v1415, %v2099
        %v2107 = vmul.f32 %v1420, %v2104
        %s2108 = scalar_lea.vmem [#allocation8], 1
        %v2109 = vld [vmem:[%s2108] sm:$0x1]
        %v2111 = vlaneseq
        %v2112 = vshrl.u32 %v2111, 7
        %v2113 = vsub.s32 0, %v2112
        %v2114 = vrot.slane %v2109, %v2113
        %v2116 = vmul.f32 %v1798, %v2114
        %v2117 = vmul.f32 %v1799, %v2114
        %v2118 = vmul.f32 %v1800, %v2114
        %v2119 = vmul.f32 %v1801, %v2114
        %v2120 = vmul.f32 %v1802, %v2114
        %v2121 = vmul.f32 %v1803, %v2114
        %v2122 = vmul.f32 %v1804, %v2114
        %v2123 = vmul.f32 %v1805, %v2114
        %v2125 = vsel %vm702, %v2116, 0
        %v2128 = vsel %vm702, %v2117, 0
        %v2131 = vsel %vm702, %v2118, 0
        %v2134 = vsel %vm702, %v2119, 0
        %v2137 = vsel %vm702, %v2120, 0
        %v2140 = vsel %vm702, %v2121, 0
        %v2143 = vsel %vm702, %v2122, 0
        %v2146 = vsel %vm702, %v2123, 0
        %2148 = vmatprep.subr.mxu0 0.0
        %2149 = vmatpush1.xpose.msra.mxu0 %v1869
        %2150 = vmatprep.subr.mxu0 0.0
        %2151 = vmatpush1.xpose.msra.mxu0 %v1871
        %2152 = vmatprep.subr.mxu0 0.0
        %2153 = vmatpush1.xpose.msra.mxu0 %v1873
        %2154 = vmatprep.subr.mxu0 0.0
        %2155 = vmatpush1.xpose.msra.mxu0 %v1875
        %2156 = vmatprep.subr.mxu0 0.0
        %2157 = vmatpush1.xpose.msra.mxu0 %v1877
        %2158 = vmatprep.subr.mxu0 0.0
        %2159 = vmatpush1.xpose.msra.mxu0 %v1879
        %2160 = vmatprep.subr.mxu0 0.0
        %2161 = vmatpush1.xpose.msra.mxu0 %v1881
        %2162 = vmatprep.subr.mxu0 0.0
        %2163 = vmatpush1.xpose.msra.mxu0 %v1883
        %2164 = vmatprep.subr.mxu0 0.0
        %2165 = vmatpush1.xpose.msra.mxu0 0.0
        %2166 = vmatprep.subr.mxu0 0.0
        %2167 = vmatpush1.xpose.msra.mxu0 0.0
        %2168 = vmatprep.subr.mxu0 0.0
        %2169 = vmatpush1.xpose.msra.mxu0 0.0
        %2170 = vmatprep.subr.mxu0 0.0
        %2171 = vmatpush1.xpose.msra.mxu0 0.0
        %2172 = vmatprep.subr.mxu0 0.0
        %2173 = vmatpush1.xpose.msra.mxu0 0.0
        %2174 = vmatprep.subr.mxu0 0.0
        %2175 = vmatpush1.xpose.msra.mxu0 0.0
        %2176 = vmatprep.subr.mxu0 0.0
        %2177 = vmatpush1.xpose.msra.mxu0 0.0
        %2178 = vmatprep.subr.mxu0 0.0
        %2179 = vmatpush1.xpose.msra.mxu0 0.0
        %2180 = vmatprep.subr.mxu0 0.0
        %2181 = vmatpush1.xpose.msra.mxu0 0.0
        %2182 = vmatprep.subr.mxu0 0.0
        %2183 = vmatpush1.xpose.msra.mxu0 0.0
        %2184 = vmatprep.subr.mxu0 0.0
        %2185 = vmatpush1.xpose.msra.mxu0 0.0
        %2186 = vmatprep.subr.mxu0 0.0
        %2187 = vmatpush1.xpose.msra.mxu0 0.0
        %2188 = vmatprep.subr.mxu0 0.0
        %2189 = vmatpush1.xpose.msra.mxu0 0.0
        %2190 = vmatprep.subr.mxu0 0.0
        %2191 = vmatpush1.xpose.msra.mxu0 0.0
        %2192 = vmatprep.subr.mxu0 0.0
        %2193 = vmatpush1.xpose.msra.mxu0 0.0
        %2194 = vmatprep.subr.mxu0 0.0
        %2195 = vmatpush1.xpose.msra.mxu0 0.0
        %2196 = vmatprep.subr.mxu0 0.0
        %2197 = vmatpush1.xpose.msra.mxu0 0.0
        %2198 = vmatprep.subr.mxu0 0.0
        %2199 = vmatpush1.xpose.msra.mxu0 0.0
        %2200 = vmatprep.subr.mxu0 0.0
        %2201 = vmatpush1.xpose.msra.mxu0 0.0
        %2202 = vmatprep.subr.mxu0 0.0
        %2203 = vmatpush1.xpose.msra.mxu0 0.0
        %2204 = vmatprep.subr.mxu0 0.0
        %2205 = vmatpush1.xpose.msra.mxu0 0.0
        %2206 = vmatprep.subr.mxu0 0.0
        %2207 = vmatpush1.xpose.msra.mxu0 0.0
        %2208 = vmatprep.subr.mxu0 0.0
        %2209 = vmatpush1.xpose.msra.mxu0 0.0
        %2210 = vmatprep.subr.mxu0 0.0
        %2211 = vmatpush1.xpose.msra.mxu0 0.0
        %2212 = vmatprep.mubr.f32.mxu0 0.0
        %2213 = vmatmul.mubr.f32.gmra.mrb[0].mxu0 %v2125
        %v2214 = vpop.f32.mrb[0].mxu0
        %v2215 = vadd.f32 0.0, %v2214
        %v2216 = vpop.f32.mrb[0].mxu0
        %2217 = vmatprep.mubr.f32.mxu0 0.0
        %2218 = vmatmul.mubr.f32.gmra.mrb[0].mxu0 %v2128
        %v2219 = vpop.f32.mrb[0].mxu0
        %v2220 = vadd.f32 0.0, %v2219
        %v2221 = vpop.f32.mrb[0].mxu0
        %2222 = vmatprep.mubr.f32.mxu0 0.0
        %2223 = vmatmul.mubr.f32.gmra.mrb[0].mxu0 %v2131
        %v2224 = vpop.f32.mrb[0].mxu0
        %v2225 = vadd.f32 0.0, %v2224
        %v2226 = vpop.f32.mrb[0].mxu0
        %2227 = vmatprep.mubr.f32.mxu0 0.0
        %2228 = vmatmul.mubr.f32.gmra.mrb[0].mxu0 %v2134
        %v2229 = vpop.f32.mrb[0].mxu0
        %v2230 = vadd.f32 0.0, %v2229
        %v2231 = vpop.f32.mrb[0].mxu0
        %2232 = vmatprep.mubr.f32.mxu0 0.0
        %2233 = vmatmul.mubr.f32.gmra.mrb[0].mxu0 %v2137
        %v2234 = vpop.f32.mrb[0].mxu0
        %v2235 = vadd.f32 0.0, %v2234
        %v2236 = vpop.f32.mrb[0].mxu0
        %2237 = vmatprep.mubr.f32.mxu0 0.0
        %2238 = vmatmul.mubr.f32.gmra.mrb[0].mxu0 %v2140
        %v2239 = vpop.f32.mrb[0].mxu0
        %v2240 = vadd.f32 0.0, %v2239
        %v2241 = vpop.f32.mrb[0].mxu0
        %2242 = vmatprep.mubr.f32.mxu0 0.0
        %2243 = vmatmul.mubr.f32.gmra.mrb[0].mxu0 %v2143
        %v2244 = vpop.f32.mrb[0].mxu0
        %v2245 = vadd.f32 0.0, %v2244
        %v2246 = vpop.f32.mrb[0].mxu0
        %2247 = vmatprep.mubr.f32.mxu0 0.0
        %2248 = vmatmul.mubr.f32.gmra.mrb[0].mxu0 %v2146
        %v2249 = vpop.f32.mrb[0].mxu0
        %v2250 = vadd.f32 0.0, %v2249
        %v2251 = vpop.f32.mrb[0].mxu0
        %2252 = vdwg.mxu0
        %v2253 = vmul.f32 %v2215, 0.5
        %v2254 = vmul.f32 %v2220, 0.5
        %v2255 = vmul.f32 %v2225, 0.5
        %v2256 = vmul.f32 %v2230, 0.5
        %v2257 = vmul.f32 %v2235, 0.5
        %v2258 = vmul.f32 %v2240, 0.5
        %v2259 = vmul.f32 %v2245, 0.5
        %v2260 = vmul.f32 %v2250, 0.5
        %v2261 = vsel %vm433, %v2253, -inf
        %2262 = vmax.xlane.f32.xlu0 %v2261
        %v2263 = vpop.xlane.xlu0 %2262
        %v2264 = vsel %vm433, %v2254, -inf
        %2265 = vmax.xlane.f32.xlu0 %v2264
        %v2266 = vpop.xlane.xlu0 %2265
        %v2267 = vsel %vm433, %v2255, -inf
        %2268 = vmax.xlane.f32.xlu0 %v2267
        %v2269 = vpop.xlane.xlu0 %2268
        %v2270 = vsel %vm433, %v2256, -inf
        %2271 = vmax.xlane.f32.xlu0 %v2270
        %v2272 = vpop.xlane.xlu0 %2271
        %v2273 = vsel %vm433, %v2257, -inf
        %2274 = vmax.xlane.f32.xlu0 %v2273
        %v2275 = vpop.xlane.xlu0 %2274
        %v2276 = vsel %vm433, %v2258, -inf
        %2277 = vmax.xlane.f32.xlu0 %v2276
        %v2278 = vpop.xlane.xlu0 %2277
        %v2279 = vsel %vm433, %v2259, -inf
        %2280 = vmax.xlane.f32.xlu0 %v2279
        %v2281 = vpop.xlane.xlu0 %2280
        %v2282 = vsel %vm433, %v2260, -inf
        %2283 = vmax.xlane.f32.xlu0 %v2282
        %v2284 = vpop.xlane.xlu0 %2283
        %v2285 = vsub.f32 %v2253, %v2263
        %v2286 = vsub.f32 %v2254, %v2266
        %v2287 = vsub.f32 %v2255, %v2269
        %v2288 = vsub.f32 %v2256, %v2272
        %v2289 = vsub.f32 %v2257, %v2275
        %v2290 = vsub.f32 %v2258, %v2278
        %v2291 = vsub.f32 %v2259, %v2281
        %v2292 = vsub.f32 %v2260, %v2284
        %v2293 = vmul.f32 %v2285, 1.442695
        %v2294 = vpow.pop %v2293
        %v2295 = vmul.f32 %v2286, 1.442695
        %v2296 = vpow.pop %v2295
        %v2297 = vmul.f32 %v2287, 1.442695
        %v2298 = vpow.pop %v2297
        %v2299 = vmul.f32 %v2288, 1.442695
        %v2300 = vpow.pop %v2299
        %v2301 = vmul.f32 %v2289, 1.442695
        %v2302 = vpow.pop %v2301
        %v2303 = vmul.f32 %v2290, 1.442695
        %v2304 = vpow.pop %v2303
        %v2305 = vmul.f32 %v2291, 1.442695
        %v2306 = vpow.pop %v2305
        %v2307 = vmul.f32 %v2292, 1.442695
        %v2308 = vpow.pop %v2307
        %v2309 = vsel %vm433, %v2294, 0.0
        %2310 = vadd.xlane.f32.xlu0 %v2309
        %v2311 = vpop.xlane.xlu0 %2310
        %v2312 = vsel %vm433, %v2296, 0.0
        %2313 = vadd.xlane.f32.xlu0 %v2312
        %v2314 = vpop.xlane.xlu0 %2313
        %v2315 = vsel %vm433, %v2298, 0.0
        %2316 = vadd.xlane.f32.xlu0 %v2315
        %v2317 = vpop.xlane.xlu0 %2316
        %v2318 = vsel %vm433, %v2300, 0.0
        %2319 = vadd.xlane.f32.xlu0 %v2318
        %v2320 = vpop.xlane.xlu0 %2319
        %v2321 = vsel %vm433, %v2302, 0.0
        %2322 = vadd.xlane.f32.xlu0 %v2321
        %v2323 = vpop.xlane.xlu0 %2322
        %v2324 = vsel %vm433, %v2304, 0.0
        %2325 = vadd.xlane.f32.xlu0 %v2324
        %v2326 = vpop.xlane.xlu0 %2325
        %v2327 = vsel %vm433, %v2306, 0.0
        %2328 = vadd.xlane.f32.xlu0 %v2327
        %v2329 = vpop.xlane.xlu0 %2328
        %v2330 = vsel %vm433, %v2308, 0.0
        %2331 = vadd.xlane.f32.xlu0 %v2330
        %v2332 = vpop.xlane.xlu0 %2331
        %v2333 = vrcp.pop %v2311
        %v2334 = vmul.f32 1.0, %v2333
        %v2335 = vrcp.pop %v2314
        %v2336 = vmul.f32 1.0, %v2335
        %v2337 = vrcp.pop %v2317
        %v2338 = vmul.f32 1.0, %v2337
        %v2339 = vrcp.pop %v2320
        %v2340 = vmul.f32 1.0, %v2339
        %v2341 = vrcp.pop %v2323
        %v2342 = vmul.f32 1.0, %v2341
        %v2343 = vrcp.pop %v2326
        %v2344 = vmul.f32 1.0, %v2343
        %v2345 = vrcp.pop %v2329
        %v2346 = vmul.f32 1.0, %v2345
        %v2347 = vrcp.pop %v2332
        %v2348 = vmul.f32 1.0, %v2347
        %v2349 = vmul.f32 %v2294, %v2334
        %v2350 = vmul.f32 %v2296, %v2336
        %v2351 = vmul.f32 %v2298, %v2338
        %v2352 = vmul.f32 %v2300, %v2340
        %v2353 = vmul.f32 %v2302, %v2342
        %v2354 = vmul.f32 %v2304, %v2344
        %v2355 = vmul.f32 %v2306, %v2346
        %v2356 = vmul.f32 %v2308, %v2348
        %s2357 = scalar_lea.vmem %s9, 16
        %v2358 = vld [vmem:[%s2357] sm:$0xff]
        %v2359 = vld [vmem:[%s2357 + $0x8] sm:$0xff]
        %2361 = vset.pattern.permute.xlu0 0
        %2362 = vperm.xlu0 %2361, %v2358
        %v2363 = vpop.permute.xlu0 %2362
        %2366 = vset.pattern.permute.xlu0 0
        %2367 = vperm.xlu0 %2366, %v2359
        %v2368 = vpop.permute.xlu0 %2367
        %v2370 = vmul.f32 %v1415, %v2363
        %v2371 = vmul.f32 %v1420, %v2368
        %v2373 = vsel %vm433, %v2370, 0
        %v2376 = vsel %vm433, %v2371, 0
        %v2379 = vsel %vm433, %v2349, 0
        %v2382 = vsel %vm433, %v2350, 0
        %v2385 = vsel %vm433, %v2351, 0
        %v2388 = vsel %vm433, %v2352, 0
        %v2391 = vsel %vm433, %v2353, 0
        %v2394 = vsel %vm433, %v2354, 0
        %v2397 = vsel %vm433, %v2355, 0
        %v2400 = vsel %vm433, %v2356, 0
        %2402 = vmatprep.subr.mxu0 0.0
        %2403 = vmatpush1.xpose.msra.mxu0 %v2379
        %2404 = vmatprep.subr.mxu0 0.0
        %2405 = vmatpush1.xpose.msra.mxu0 %v2382
        %2406 = vmatprep.subr.mxu0 0.0
        %2407 = vmatpush1.xpose.msra.mxu0 %v2385
        %2408 = vmatprep.subr.mxu0 0.0
        %2409 = vmatpush1.xpose.msra.mxu0 %v2388
        %2410 = vmatprep.subr.mxu0 0.0
        %2411 = vmatpush1.xpose.msra.mxu0 %v2391
        %2412 = vmatprep.subr.mxu0 0.0
        %2413 = vmatpush1.xpose.msra.mxu0 %v2394
        %2414 = vmatprep.subr.mxu0 0.0
        %2415 = vmatpush1.xpose.msra.mxu0 %v2397
        %2416 = vmatprep.subr.mxu0 0.0
        %2417 = vmatpush1.xpose.msra.mxu0 %v2400
        %2418 = vmatprep.subr.mxu0 0.0
        %2419 = vmatpush1.xpose.msra.mxu0 0.0
        %2420 = vmatprep.subr.mxu0 0.0
        %2421 = vmatpush1.xpose.msra.mxu0 0.0
        %2422 = vmatprep.subr.mxu0 0.0
        %2423 = vmatpush1.xpose.msra.mxu0 0.0
        %2424 = vmatprep.subr.mxu0 0.0
        %2425 = vmatpush1.xpose.msra.mxu0 0.0
        %2426 = vmatprep.subr.mxu0 0.0
        %2427 = vmatpush1.xpose.msra.mxu0 0.0
        %2428 = vmatprep.subr.mxu0 0.0
        %2429 = vmatpush1.xpose.msra.mxu0 0.0
        %2430 = vmatprep.subr.mxu0 0.0
        %2431 = vmatpush1.xpose.msra.mxu0 0.0
        %2432 = vmatprep.subr.mxu0 0.0
        %2433 = vmatpush1.xpose.msra.mxu0 0.0
        %2434 = vmatprep.subr.mxu0 0.0
        %2435 = vmatpush1.xpose.msra.mxu0 0.0
        %2436 = vmatprep.subr.mxu0 0.0
        %2437 = vmatpush1.xpose.msra.mxu0 0.0
        %2438 = vmatprep.subr.mxu0 0.0
        %2439 = vmatpush1.xpose.msra.mxu0 0.0
        %2440 = vmatprep.subr.mxu0 0.0
        %2441 = vmatpush1.xpose.msra.mxu0 0.0
        %2442 = vmatprep.subr.mxu0 0.0
        %2443 = vmatpush1.xpose.msra.mxu0 0.0
        %2444 = vmatprep.subr.mxu0 0.0
        %2445 = vmatpush1.xpose.msra.mxu0 0.0
        %2446 = vmatprep.subr.mxu0 0.0
        %2447 = vmatpush1.xpose.msra.mxu0 0.0
        %2448 = vmatprep.subr.mxu0 0.0
        %2449 = vmatpush1.xpose.msra.mxu0 0.0
        %2450 = vmatprep.subr.mxu0 0.0
        %2451 = vmatpush1.xpose.msra.mxu0 0.0
        %2452 = vmatprep.subr.mxu0 0.0
        %2453 = vmatpush1.xpose.msra.mxu0 0.0
        %2454 = vmatprep.subr.mxu0 0.0
        %2455 = vmatpush1.xpose.msra.mxu0 0.0
        %2456 = vmatprep.subr.mxu0 0.0
        %2457 = vmatpush1.xpose.msra.mxu0 0.0
        %2458 = vmatprep.subr.mxu0 0.0
        %2459 = vmatpush1.xpose.msra.mxu0 0.0
        %2460 = vmatprep.subr.mxu0 0.0
        %2461 = vmatpush1.xpose.msra.mxu0 0.0
        %2462 = vmatprep.subr.mxu0 0.0
        %2463 = vmatpush1.xpose.msra.mxu0 0.0
        %2464 = vmatprep.subr.mxu0 0.0
        %2465 = vmatpush1.xpose.msra.mxu0 0.0
        %2466 = vmatprep.mubr.f32.mxu0 0.0
        %2467 = vmatmul.mubr.f32.gmra.mrb[0].mxu0 %v2373
        %v2468 = vpop.f32.mrb[0].mxu0
        %v2469 = vadd.f32 0.0, %v2468
        %v2470 = vpop.f32.mrb[0].mxu0
        %2471 = vmatprep.mubr.f32.mxu0 0.0
        %2472 = vmatmul.mubr.f32.gmra.mrb[0].mxu0 %v2376
        %v2473 = vpop.f32.mrb[0].mxu0
        %v2474 = vadd.f32 0.0, %v2473
        %v2475 = vpop.f32.mrb[0].mxu0
        %2476 = vdwg.mxu0
        %v2478 = vsel %vm433, %v2106, 0
        %v2481 = vsel %vm433, %v2107, 0
        %v2484 = vsel %vm433, %v2086, 0
        %v2487 = vsel %vm433, %v2087, 0
        %v2490 = vsel %vm433, %v2088, 0
        %v2493 = vsel %vm433, %v2089, 0
        %v2496 = vsel %vm433, %v2090, 0
        %v2499 = vsel %vm433, %v2091, 0
        %v2502 = vsel %vm433, %v2092, 0
        %v2505 = vsel %vm433, %v2093, 0
        %2507 = vmatprep.subr.mxu0 0.0
        %2508 = vmatpush1.xpose.msra.mxu0 %v2484
        %2509 = vmatprep.subr.mxu0 0.0
        %2510 = vmatpush1.xpose.msra.mxu0 %v2487
        %2511 = vmatprep.subr.mxu0 0.0
        %2512 = vmatpush1.xpose.msra.mxu0 %v2490
        %2513 = vmatprep.subr.mxu0 0.0
        %2514 = vmatpush1.xpose.msra.mxu0 %v2493
        %2515 = vmatprep.subr.mxu0 0.0
        %2516 = vmatpush1.xpose.msra.mxu0 %v2496
        %2517 = vmatprep.subr.mxu0 0.0
        %2518 = vmatpush1.xpose.msra.mxu0 %v2499
        %2519 = vmatprep.subr.mxu0 0.0
        %2520 = vmatpush1.xpose.msra.mxu0 %v2502
        %2521 = vmatprep.subr.mxu0 0.0
        %2522 = vmatpush1.xpose.msra.mxu0 %v2505
        %2523 = vmatprep.subr.mxu0 0.0
        %2524 = vmatpush1.xpose.msra.mxu0 0.0
        %2525 = vmatprep.subr.mxu0 0.0
        %2526 = vmatpush1.xpose.msra.mxu0 0.0
        %2527 = vmatprep.subr.mxu0 0.0
        %2528 = vmatpush1.xpose.msra.mxu0 0.0
        %2529 = vmatprep.subr.mxu0 0.0
        %2530 = vmatpush1.xpose.msra.mxu0 0.0
        %2531 = vmatprep.subr.mxu0 0.0
        %2532 = vmatpush1.xpose.msra.mxu0 0.0
        %2533 = vmatprep.subr.mxu0 0.0
        %2534 = vmatpush1.xpose.msra.mxu0 0.0
        %2535 = vmatprep.subr.mxu0 0.0
        %2536 = vmatpush1.xpose.msra.mxu0 0.0
        %2537 = vmatprep.subr.mxu0 0.0
        %2538 = vmatpush1.xpose.msra.mxu0 0.0
        %2539 = vmatprep.subr.mxu0 0.0
        %2540 = vmatpush1.xpose.msra.mxu0 0.0
        %2541 = vmatprep.subr.mxu0 0.0
        %2542 = vmatpush1.xpose.msra.mxu0 0.0
        %2543 = vmatprep.subr.mxu0 0.0
        %2544 = vmatpush1.xpose.msra.mxu0 0.0
        %2545 = vmatprep.subr.mxu0 0.0
        %2546 = vmatpush1.xpose.msra.mxu0 0.0
        %2547 = vmatprep.subr.mxu0 0.0
        %2548 = vmatpush1.xpose.msra.mxu0 0.0
        %2549 = vmatprep.subr.mxu0 0.0
        %2550 = vmatpush1.xpose.msra.mxu0 0.0
        %2551 = vmatprep.subr.mxu0 0.0
        %2552 = vmatpush1.xpose.msra.mxu0 0.0
        %2553 = vmatprep.subr.mxu0 0.0
        %2554 = vmatpush1.xpose.msra.mxu0 0.0
        %2555 = vmatprep.subr.mxu0 0.0
        %2556 = vmatpush1.xpose.msra.mxu0 0.0
        %2557 = vmatprep.subr.mxu0 0.0
        %2558 = vmatpush1.xpose.msra.mxu0 0.0
        %2559 = vmatprep.subr.mxu0 0.0
        %2560 = vmatpush1.xpose.msra.mxu0 0.0
        %2561 = vmatprep.subr.mxu0 0.0
        %2562 = vmatpush1.xpose.msra.mxu0 0.0
        %2563 = vmatprep.subr.mxu0 0.0
        %2564 = vmatpush1.xpose.msra.mxu0 0.0
        %2565 = vmatprep.subr.mxu0 0.0
        %2566 = vmatpush1.xpose.msra.mxu0 0.0
        %2567 = vmatprep.subr.mxu0 0.0
        %2568 = vmatpush1.xpose.msra.mxu0 0.0
        %2569 = vmatprep.subr.mxu0 0.0
        %2570 = vmatpush1.xpose.msra.mxu0 0.0
        %2571 = vmatprep.mubr.f32.mxu0 0.0
        %2572 = vmatmul.mubr.f32.gmra.mrb[0].mxu0 %v2478
        %v2573 = vpop.f32.mrb[0].mxu0
        %v2574 = vadd.f32 %v2469, %v2573
        %v2575 = vpop.f32.mrb[0].mxu0
        %2576 = vmatprep.mubr.f32.mxu0 0.0
        %2577 = vmatmul.mubr.f32.gmra.mrb[0].mxu0 %v2481
        %v2578 = vpop.f32.mrb[0].mxu0
        %v2579 = vadd.f32 %v2474, %v2578
        %v2580 = vpop.f32.mrb[0].mxu0
        %2581 = vdwg.mxu0
        %s2582 = scalar_lea.vmem [#allocation8], 2
        %v2583 = vld [vmem:[%s2582] sm:$0x1]
        %v2585 = vlaneseq
        %v2586 = vshrl.u32 %v2585, 7
        %v2587 = vsub.s32 0, %v2586
        %v2588 = vrot.slane %v2583, %v2587
        %v2590 = vmul.f32 %v1798, %v2588
        %v2591 = vmul.f32 %v1799, %v2588
        %v2592 = vmul.f32 %v1800, %v2588
        %v2593 = vmul.f32 %v1801, %v2588
        %v2594 = vmul.f32 %v1802, %v2588
        %v2595 = vmul.f32 %v1803, %v2588
        %v2596 = vmul.f32 %v1804, %v2588
        %v2597 = vmul.f32 %v1805, %v2588
        %v2599 = vsel %vm702, %v2590, 0
        %v2602 = vsel %vm702, %v2591, 0
        %v2605 = vsel %vm702, %v2592, 0
        %v2608 = vsel %vm702, %v2593, 0
        %v2611 = vsel %vm702, %v2594, 0
        %v2614 = vsel %vm702, %v2595, 0
        %v2617 = vsel %vm702, %v2596, 0
        %v2620 = vsel %vm702, %v2597, 0
        %2622 = vmatprep.subr.mxu0 0.0
        %2623 = vmatpush1.xpose.msra.mxu0 %v1869
        %2624 = vmatprep.subr.mxu0 0.0
        %2625 = vmatpush1.xpose.msra.mxu0 %v1871
        %2626 = vmatprep.subr.mxu0 0.0
        %2627 = vmatpush1.xpose.msra.mxu0 %v1873
        %2628 = vmatprep.subr.mxu0 0.0
        %2629 = vmatpush1.xpose.msra.mxu0 %v1875
        %2630 = vmatprep.subr.mxu0 0.0
        %2631 = vmatpush1.xpose.msra.mxu0 %v1877
        %2632 = vmatprep.subr.mxu0 0.0
        %2633 = vmatpush1.xpose.msra.mxu0 %v1879
        %2634 = vmatprep.subr.mxu0 0.0
        %2635 = vmatpush1.xpose.msra.mxu0 %v1881
        %2636 = vmatprep.subr.mxu0 0.0
        %2637 = vmatpush1.xpose.msra.mxu0 %v1883
        %2638 = vmatprep.subr.mxu0 0.0
        %2639 = vmatpush1.xpose.msra.mxu0 0.0
        %2640 = vmatprep.subr.mxu0 0.0
        %2641 = vmatpush1.xpose.msra.mxu0 0.0
        %2642 = vmatprep.subr.mxu0 0.0
        %2643 = vmatpush1.xpose.msra.mxu0 0.0
        %2644 = vmatprep.subr.mxu0 0.0
        %2645 = vmatpush1.xpose.msra.mxu0 0.0
        %2646 = vmatprep.subr.mxu0 0.0
        %2647 = vmatpush1.xpose.msra.mxu0 0.0
        %2648 = vmatprep.subr.mxu0 0.0
        %2649 = vmatpush1.xpose.msra.mxu0 0.0
        %2650 = vmatprep.subr.mxu0 0.0
        %2651 = vmatpush1.xpose.msra.mxu0 0.0
        %2652 = vmatprep.subr.mxu0 0.0
        %2653 = vmatpush1.xpose.msra.mxu0 0.0
        %2654 = vmatprep.subr.mxu0 0.0
        %2655 = vmatpush1.xpose.msra.mxu0 0.0
        %2656 = vmatprep.subr.mxu0 0.0
        %2657 = vmatpush1.xpose.msra.mxu0 0.0
        %2658 = vmatprep.subr.mxu0 0.0
        %2659 = vmatpush1.xpose.msra.mxu0 0.0
        %2660 = vmatprep.subr.mxu0 0.0
        %2661 = vmatpush1.xpose.msra.mxu0 0.0
        %2662 = vmatprep.subr.mxu0 0.0
        %2663 = vmatpush1.xpose.msra.mxu0 0.0
        %2664 = vmatprep.subr.mxu0 0.0
        %2665 = vmatpush1.xpose.msra.mxu0 0.0
        %2666 = vmatprep.subr.mxu0 0.0
        %2667 = vmatpush1.xpose.msra.mxu0 0.0
        %2668 = vmatprep.subr.mxu0 0.0
        %2669 = vmatpush1.xpose.msra.mxu0 0.0
        %2670 = vmatprep.subr.mxu0 0.0
        %2671 = vmatpush1.xpose.msra.mxu0 0.0
        %2672 = vmatprep.subr.mxu0 0.0
        %2673 = vmatpush1.xpose.msra.mxu0 0.0
        %2674 = vmatprep.subr.mxu0 0.0
        %2675 = vmatpush1.xpose.msra.mxu0 0.0
        %2676 = vmatprep.subr.mxu0 0.0
        %2677 = vmatpush1.xpose.msra.mxu0 0.0
        %2678 = vmatprep.subr.mxu0 0.0
        %2679 = vmatpush1.xpose.msra.mxu0 0.0
        %2680 = vmatprep.subr.mxu0 0.0
        %2681 = vmatpush1.xpose.msra.mxu0 0.0
        %2682 = vmatprep.subr.mxu0 0.0
        %2683 = vmatpush1.xpose.msra.mxu0 0.0
        %2684 = vmatprep.subr.mxu0 0.0
        %2685 = vmatpush1.xpose.msra.mxu0 0.0
        %2686 = vmatprep.mubr.f32.mxu0 0.0
        %2687 = vmatmul.mubr.f32.gmra.mrb[0].mxu0 %v2599
        %v2688 = vpop.f32.mrb[0].mxu0
        %v2689 = vadd.f32 0.0, %v2688
        %v2690 = vpop.f32.mrb[0].mxu0
        %2691 = vmatprep.mubr.f32.mxu0 0.0
        %2692 = vmatmul.mubr.f32.gmra.mrb[0].mxu0 %v2602
        %v2693 = vpop.f32.mrb[0].mxu0
        %v2694 = vadd.f32 0.0, %v2693
        %v2695 = vpop.f32.mrb[0].mxu0
        %2696 = vmatprep.mubr.f32.mxu0 0.0
        %2697 = vmatmul.mubr.f32.gmra.mrb[0].mxu0 %v2605
        %v2698 = vpop.f32.mrb[0].mxu0
        %v2699 = vadd.f32 0.0, %v2698
        %v2700 = vpop.f32.mrb[0].mxu0
        %2701 = vmatprep.mubr.f32.mxu0 0.0
        %2702 = vmatmul.mubr.f32.gmra.mrb[0].mxu0 %v2608
        %v2703 = vpop.f32.mrb[0].mxu0
        %v2704 = vadd.f32 0.0, %v2703
        %v2705 = vpop.f32.mrb[0].mxu0
        %2706 = vmatprep.mubr.f32.mxu0 0.0
        %2707 = vmatmul.mubr.f32.gmra.mrb[0].mxu0 %v2611
        %v2708 = vpop.f32.mrb[0].mxu0
        %v2709 = vadd.f32 0.0, %v2708
        %v2710 = vpop.f32.mrb[0].mxu0
        %2711 = vmatprep.mubr.f32.mxu0 0.0
        %2712 = vmatmul.mubr.f32.gmra.mrb[0].mxu0 %v2614
        %v2713 = vpop.f32.mrb[0].mxu0
        %v2714 = vadd.f32 0.0, %v2713
        %v2715 = vpop.f32.mrb[0].mxu0
        %2716 = vmatprep.mubr.f32.mxu0 0.0
        %2717 = vmatmul.mubr.f32.gmra.mrb[0].mxu0 %v2617
        %v2718 = vpop.f32.mrb[0].mxu0
        %v2719 = vadd.f32 0.0, %v2718
        %v2720 = vpop.f32.mrb[0].mxu0
        %2721 = vmatprep.mubr.f32.mxu0 0.0
        %2722 = vmatmul.mubr.f32.gmra.mrb[0].mxu0 %v2620
        %v2723 = vpop.f32.mrb[0].mxu0
        %v2724 = vadd.f32 0.0, %v2723
        %v2725 = vpop.f32.mrb[0].mxu0
        %2726 = vdwg.mxu0
        %v2727 = vmul.f32 %v2689, 0.5
        %v2728 = vmul.f32 %v2694, 0.5
        %v2729 = vmul.f32 %v2699, 0.5
        %v2730 = vmul.f32 %v2704, 0.5
        %v2731 = vmul.f32 %v2709, 0.5
        %v2732 = vmul.f32 %v2714, 0.5
        %v2733 = vmul.f32 %v2719, 0.5
        %v2734 = vmul.f32 %v2724, 0.5
        %v2735 = vsel %vm433, %v2727, -inf
        %2736 = vmax.xlane.f32.xlu0 %v2735
        %v2737 = vpop.xlane.xlu0 %2736
        %v2738 = vsel %vm433, %v2728, -inf
        %2739 = vmax.xlane.f32.xlu0 %v2738
        %v2740 = vpop.xlane.xlu0 %2739
        %v2741 = vsel %vm433, %v2729, -inf
        %2742 = vmax.xlane.f32.xlu0 %v2741
        %v2743 = vpop.xlane.xlu0 %2742
        %v2744 = vsel %vm433, %v2730, -inf
        %2745 = vmax.xlane.f32.xlu0 %v2744
        %v2746 = vpop.xlane.xlu0 %2745
        %v2747 = vsel %vm433, %v2731, -inf
        %2748 = vmax.xlane.f32.xlu0 %v2747
        %v2749 = vpop.xlane.xlu0 %2748
        %v2750 = vsel %vm433, %v2732, -inf
        %2751 = vmax.xlane.f32.xlu0 %v2750
        %v2752 = vpop.xlane.xlu0 %2751
        %v2753 = vsel %vm433, %v2733, -inf
        %2754 = vmax.xlane.f32.xlu0 %v2753
        %v2755 = vpop.xlane.xlu0 %2754
        %v2756 = vsel %vm433, %v2734, -inf
        %2757 = vmax.xlane.f32.xlu0 %v2756
        %v2758 = vpop.xlane.xlu0 %2757
        %v2759 = vsub.f32 %v2727, %v2737
        %v2760 = vsub.f32 %v2728, %v2740
        %v2761 = vsub.f32 %v2729, %v2743
        %v2762 = vsub.f32 %v2730, %v2746
        %v2763 = vsub.f32 %v2731, %v2749
        %v2764 = vsub.f32 %v2732, %v2752
        %v2765 = vsub.f32 %v2733, %v2755
        %v2766 = vsub.f32 %v2734, %v2758
        %v2767 = vmul.f32 %v2759, 1.442695
        %v2768 = vpow.pop %v2767
        %v2769 = vmul.f32 %v2760, 1.442695
        %v2770 = vpow.pop %v2769
        %v2771 = vmul.f32 %v2761, 1.442695
        %v2772 = vpow.pop %v2771
        %v2773 = vmul.f32 %v2762, 1.442695
        %v2774 = vpow.pop %v2773
        %v2775 = vmul.f32 %v2763, 1.442695
        %v2776 = vpow.pop %v2775
        %v2777 = vmul.f32 %v2764, 1.442695
        %v2778 = vpow.pop %v2777
        %v2779 = vmul.f32 %v2765, 1.442695
        %v2780 = vpow.pop %v2779
        %v2781 = vmul.f32 %v2766, 1.442695
        %v2782 = vpow.pop %v2781
        %v2783 = vsel %vm433, %v2768, 0.0
        %2784 = vadd.xlane.f32.xlu0 %v2783
        %v2785 = vpop.xlane.xlu0 %2784
        %v2786 = vsel %vm433, %v2770, 0.0
        %2787 = vadd.xlane.f32.xlu0 %v2786
        %v2788 = vpop.xlane.xlu0 %2787
        %v2789 = vsel %vm433, %v2772, 0.0
        %2790 = vadd.xlane.f32.xlu0 %v2789
        %v2791 = vpop.xlane.xlu0 %2790
        %v2792 = vsel %vm433, %v2774, 0.0
        %2793 = vadd.xlane.f32.xlu0 %v2792
        %v2794 = vpop.xlane.xlu0 %2793
        %v2795 = vsel %vm433, %v2776, 0.0
        %2796 = vadd.xlane.f32.xlu0 %v2795
        %v2797 = vpop.xlane.xlu0 %2796
        %v2798 = vsel %vm433, %v2778, 0.0
        %2799 = vadd.xlane.f32.xlu0 %v2798
        %v2800 = vpop.xlane.xlu0 %2799
        %v2801 = vsel %vm433, %v2780, 0.0
        %2802 = vadd.xlane.f32.xlu0 %v2801
        %v2803 = vpop.xlane.xlu0 %2802
        %v2804 = vsel %vm433, %v2782, 0.0
        %2805 = vadd.xlane.f32.xlu0 %v2804
        %v2806 = vpop.xlane.xlu0 %2805
        %v2807 = vrcp.pop %v2785
        %v2808 = vmul.f32 1.0, %v2807
        %v2809 = vrcp.pop %v2788
        %v2810 = vmul.f32 1.0, %v2809
        %v2811 = vrcp.pop %v2791
        %v2812 = vmul.f32 1.0, %v2811
        %v2813 = vrcp.pop %v2794
        %v2814 = vmul.f32 1.0, %v2813
        %v2815 = vrcp.pop %v2797
        %v2816 = vmul.f32 1.0, %v2815
        %v2817 = vrcp.pop %v2800
        %v2818 = vmul.f32 1.0, %v2817
        %v2819 = vrcp.pop %v2803
        %v2820 = vmul.f32 1.0, %v2819
        %v2821 = vrcp.pop %v2806
        %v2822 = vmul.f32 1.0, %v2821
        %v2823 = vmul.f32 %v2768, %v2808
        %v2824 = vmul.f32 %v2770, %v2810
        %v2825 = vmul.f32 %v2772, %v2812
        %v2826 = vmul.f32 %v2774, %v2814
        %v2827 = vmul.f32 %v2776, %v2816
        %v2828 = vmul.f32 %v2778, %v2818
        %v2829 = vmul.f32 %v2780, %v2820
        %v2830 = vmul.f32 %v2782, %v2822
        %s2831 = scalar_lea.vmem %s9, 32
        %v2832 = vld [vmem:[%s2831] sm:$0xff]
        %v2833 = vld [vmem:[%s2831 + $0x8] sm:$0xff]
        %2835 = vset.pattern.permute.xlu0 0
        %2836 = vperm.xlu0 %2835, %v2832
        %v2837 = vpop.permute.xlu0 %2836
        %2840 = vset.pattern.permute.xlu0 0
        %2841 = vperm.xlu0 %2840, %v2833
        %v2842 = vpop.permute.xlu0 %2841
        %v2844 = vmul.f32 %v1415, %v2837
        %v2845 = vmul.f32 %v1420, %v2842
        %v2847 = vsel %vm433, %v2844, 0
        %v2850 = vsel %vm433, %v2845, 0
        %v2853 = vsel %vm433, %v2823, 0
        %v2856 = vsel %vm433, %v2824, 0
        %v2859 = vsel %vm433, %v2825, 0
        %v2862 = vsel %vm433, %v2826, 0
        %v2865 = vsel %vm433, %v2827, 0
        %v2868 = vsel %vm433, %v2828, 0
        %v2871 = vsel %vm433, %v2829, 0
        %v2874 = vsel %vm433, %v2830, 0
        %2876 = vmatprep.subr.mxu0 0.0
        %2877 = vmatpush1.xpose.msra.mxu0 %v2853
        %2878 = vmatprep.subr.mxu0 0.0
        %2879 = vmatpush1.xpose.msra.mxu0 %v2856
        %2880 = vmatprep.subr.mxu0 0.0
        %2881 = vmatpush1.xpose.msra.mxu0 %v2859
        %2882 = vmatprep.subr.mxu0 0.0
        %2883 = vmatpush1.xpose.msra.mxu0 %v2862
        %2884 = vmatprep.subr.mxu0 0.0
        %2885 = vmatpush1.xpose.msra.mxu0 %v2865
        %2886 = vmatprep.subr.mxu0 0.0
        %2887 = vmatpush1.xpose.msra.mxu0 %v2868
        %2888 = vmatprep.subr.mxu0 0.0
        %2889 = vmatpush1.xpose.msra.mxu0 %v2871
        %2890 = vmatprep.subr.mxu0 0.0
        %2891 = vmatpush1.xpose.msra.mxu0 %v2874
        %2892 = vmatprep.subr.mxu0 0.0
        %2893 = vmatpush1.xpose.msra.mxu0 0.0
        %2894 = vmatprep.subr.mxu0 0.0
        %2895 = vmatpush1.xpose.msra.mxu0 0.0
        %2896 = vmatprep.subr.mxu0 0.0
        %2897 = vmatpush1.xpose.msra.mxu0 0.0
        %2898 = vmatprep.subr.mxu0 0.0
        %2899 = vmatpush1.xpose.msra.mxu0 0.0
        %2900 = vmatprep.subr.mxu0 0.0
        %2901 = vmatpush1.xpose.msra.mxu0 0.0
        %2902 = vmatprep.subr.mxu0 0.0
        %2903 = vmatpush1.xpose.msra.mxu0 0.0
        %2904 = vmatprep.subr.mxu0 0.0
        %2905 = vmatpush1.xpose.msra.mxu0 0.0
        %2906 = vmatprep.subr.mxu0 0.0
        %2907 = vmatpush1.xpose.msra.mxu0 0.0
        %2908 = vmatprep.subr.mxu0 0.0
        %2909 = vmatpush1.xpose.msra.mxu0 0.0
        %2910 = vmatprep.subr.mxu0 0.0
        %2911 = vmatpush1.xpose.msra.mxu0 0.0
        %2912 = vmatprep.subr.mxu0 0.0
        %2913 = vmatpush1.xpose.msra.mxu0 0.0
        %2914 = vmatprep.subr.mxu0 0.0
        %2915 = vmatpush1.xpose.msra.mxu0 0.0
        %2916 = vmatprep.subr.mxu0 0.0
        %2917 = vmatpush1.xpose.msra.mxu0 0.0
        %2918 = vmatprep.subr.mxu0 0.0
        %2919 = vmatpush1.xpose.msra.mxu0 0.0
        %2920 = vmatprep.subr.mxu0 0.0
        %2921 = vmatpush1.xpose.msra.mxu0 0.0
        %2922 = vmatprep.subr.mxu0 0.0
        %2923 = vmatpush1.xpose.msra.mxu0 0.0
        %2924 = vmatprep.subr.mxu0 0.0
        %2925 = vmatpush1.xpose.msra.mxu0 0.0
        %2926 = vmatprep.subr.mxu0 0.0
        %2927 = vmatpush1.xpose.msra.mxu0 0.0
        %2928 = vmatprep.subr.mxu0 0.0
        %2929 = vmatpush1.xpose.msra.mxu0 0.0
        %2930 = vmatprep.subr.mxu0 0.0
        %2931 = vmatpush1.xpose.msra.mxu0 0.0
        %2932 = vmatprep.subr.mxu0 0.0
        %2933 = vmatpush1.xpose.msra.mxu0 0.0
        %2934 = vmatprep.subr.mxu0 0.0
        %2935 = vmatpush1.xpose.msra.mxu0 0.0
        %2936 = vmatprep.subr.mxu0 0.0
        %2937 = vmatpush1.xpose.msra.mxu0 0.0
        %2938 = vmatprep.subr.mxu0 0.0
        %2939 = vmatpush1.xpose.msra.mxu0 0.0
        %2940 = vmatprep.mubr.f32.mxu0 0.0
        %2941 = vmatmul.mubr.f32.gmra.mrb[0].mxu0 %v2847
        %v2942 = vpop.f32.mrb[0].mxu0
        %v2943 = vadd.f32 0.0, %v2942
        %v2944 = vpop.f32.mrb[0].mxu0
        %2945 = vmatprep.mubr.f32.mxu0 0.0
        %2946 = vmatmul.mubr.f32.gmra.mrb[0].mxu0 %v2850
        %v2947 = vpop.f32.mrb[0].mxu0
        %v2948 = vadd.f32 0.0, %v2947
        %v2949 = vpop.f32.mrb[0].mxu0
        %2950 = vdwg.mxu0
        %v2951 = vadd.f32 %v2574, %v2943
        %v2952 = vadd.f32 %v2579, %v2948
        %s2953 = scalar_lea.vmem [#allocation8], 3
        %v2954 = vld [vmem:[%s2953] sm:$0x1]
        %v2956 = vlaneseq
        %v2957 = vshrl.u32 %v2956, 7
        %v2958 = vsub.s32 0, %v2957
        %v2959 = vrot.slane %v2954, %v2958
        %v2961 = vmul.f32 %v1798, %v2959
        %v2962 = vmul.f32 %v1799, %v2959
        %v2963 = vmul.f32 %v1800, %v2959
        %v2964 = vmul.f32 %v1801, %v2959
        %v2965 = vmul.f32 %v1802, %v2959
        %v2966 = vmul.f32 %v1803, %v2959
        %v2967 = vmul.f32 %v1804, %v2959
        %v2968 = vmul.f32 %v1805, %v2959
        %v2970 = vsel %vm702, %v2961, 0
        %v2973 = vsel %vm702, %v2962, 0
        %v2976 = vsel %vm702, %v2963, 0
        %v2979 = vsel %vm702, %v2964, 0
        %v2982 = vsel %vm702, %v2965, 0
        %v2985 = vsel %vm702, %v2966, 0
        %v2988 = vsel %vm702, %v2967, 0
        %v2991 = vsel %vm702, %v2968, 0
        %2993 = vmatprep.subr.mxu0 0.0
        %2994 = vmatpush1.xpose.msra.mxu0 %v1869
        %2995 = vmatprep.subr.mxu0 0.0
        %2996 = vmatpush1.xpose.msra.mxu0 %v1871
        %2997 = vmatprep.subr.mxu0 0.0
        %2998 = vmatpush1.xpose.msra.mxu0 %v1873
        %2999 = vmatprep.subr.mxu0 0.0
        %3000 = vmatpush1.xpose.msra.mxu0 %v1875
        %3001 = vmatprep.subr.mxu0 0.0
        %3002 = vmatpush1.xpose.msra.mxu0 %v1877
        %3003 = vmatprep.subr.mxu0 0.0
        %3004 = vmatpush1.xpose.msra.mxu0 %v1879
        %3005 = vmatprep.subr.mxu0 0.0
        %3006 = vmatpush1.xpose.msra.mxu0 %v1881
        %3007 = vmatprep.subr.mxu0 0.0
        %3008 = vmatpush1.xpose.msra.mxu0 %v1883
        %3009 = vmatprep.subr.mxu0 0.0
        %3010 = vmatpush1.xpose.msra.mxu0 0.0
        %3011 = vmatprep.subr.mxu0 0.0
        %3012 = vmatpush1.xpose.msra.mxu0 0.0
        %3013 = vmatprep.subr.mxu0 0.0
        %3014 = vmatpush1.xpose.msra.mxu0 0.0
        %3015 = vmatprep.subr.mxu0 0.0
        %3016 = vmatpush1.xpose.msra.mxu0 0.0
        %3017 = vmatprep.subr.mxu0 0.0
        %3018 = vmatpush1.xpose.msra.mxu0 0.0
        %3019 = vmatprep.subr.mxu0 0.0
        %3020 = vmatpush1.xpose.msra.mxu0 0.0
        %3021 = vmatprep.subr.mxu0 0.0
        %3022 = vmatpush1.xpose.msra.mxu0 0.0
        %3023 = vmatprep.subr.mxu0 0.0
        %3024 = vmatpush1.xpose.msra.mxu0 0.0
        %3025 = vmatprep.subr.mxu0 0.0
        %3026 = vmatpush1.xpose.msra.mxu0 0.0
        %3027 = vmatprep.subr.mxu0 0.0
        %3028 = vmatpush1.xpose.msra.mxu0 0.0
        %3029 = vmatprep.subr.mxu0 0.0
        %3030 = vmatpush1.xpose.msra.mxu0 0.0
        %3031 = vmatprep.subr.mxu0 0.0
        %3032 = vmatpush1.xpose.msra.mxu0 0.0
        %3033 = vmatprep.subr.mxu0 0.0
        %3034 = vmatpush1.xpose.msra.mxu0 0.0
        %3035 = vmatprep.subr.mxu0 0.0
        %3036 = vmatpush1.xpose.msra.mxu0 0.0
        %3037 = vmatprep.subr.mxu0 0.0
        %3038 = vmatpush1.xpose.msra.mxu0 0.0
        %3039 = vmatprep.subr.mxu0 0.0
        %3040 = vmatpush1.xpose.msra.mxu0 0.0
        %3041 = vmatprep.subr.mxu0 0.0
        %3042 = vmatpush1.xpose.msra.mxu0 0.0
        %3043 = vmatprep.subr.mxu0 0.0
        %3044 = vmatpush1.xpose.msra.mxu0 0.0
        %3045 = vmatprep.subr.mxu0 0.0
        %3046 = vmatpush1.xpose.msra.mxu0 0.0
        %3047 = vmatprep.subr.mxu0 0.0
        %3048 = vmatpush1.xpose.msra.mxu0 0.0
        %3049 = vmatprep.subr.mxu0 0.0
        %3050 = vmatpush1.xpose.msra.mxu0 0.0
        %3051 = vmatprep.subr.mxu0 0.0
        %3052 = vmatpush1.xpose.msra.mxu0 0.0
        %3053 = vmatprep.subr.mxu0 0.0
        %3054 = vmatpush1.xpose.msra.mxu0 0.0
        %3055 = vmatprep.subr.mxu0 0.0
        %3056 = vmatpush1.xpose.msra.mxu0 0.0
        %3057 = vmatprep.mubr.f32.mxu0 0.0
        %3058 = vmatmul.mubr.f32.gmra.mrb[0].mxu0 %v2970
        %v3059 = vpop.f32.mrb[0].mxu0
        %v3060 = vadd.f32 0.0, %v3059
        %v3061 = vpop.f32.mrb[0].mxu0
        %3062 = vmatprep.mubr.f32.mxu0 0.0
        %3063 = vmatmul.mubr.f32.gmra.mrb[0].mxu0 %v2973
        %v3064 = vpop.f32.mrb[0].mxu0
        %v3065 = vadd.f32 0.0, %v3064
        %v3066 = vpop.f32.mrb[0].mxu0
        %3067 = vmatprep.mubr.f32.mxu0 0.0
        %3068 = vmatmul.mubr.f32.gmra.mrb[0].mxu0 %v2976
        %v3069 = vpop.f32.mrb[0].mxu0
        %v3070 = vadd.f32 0.0, %v3069
        %v3071 = vpop.f32.mrb[0].mxu0
        %3072 = vmatprep.mubr.f32.mxu0 0.0
        %3073 = vmatmul.mubr.f32.gmra.mrb[0].mxu0 %v2979
        %v3074 = vpop.f32.mrb[0].mxu0
        %v3075 = vadd.f32 0.0, %v3074
        %v3076 = vpop.f32.mrb[0].mxu0
        %3077 = vmatprep.mubr.f32.mxu0 0.0
        %3078 = vmatmul.mubr.f32.gmra.mrb[0].mxu0 %v2982
        %v3079 = vpop.f32.mrb[0].mxu0
        %v3080 = vadd.f32 0.0, %v3079
        %v3081 = vpop.f32.mrb[0].mxu0
        %3082 = vmatprep.mubr.f32.mxu0 0.0
        %3083 = vmatmul.mubr.f32.gmra.mrb[0].mxu0 %v2985
        %v3084 = vpop.f32.mrb[0].mxu0
        %v3085 = vadd.f32 0.0, %v3084
        %v3086 = vpop.f32.mrb[0].mxu0
        %3087 = vmatprep.mubr.f32.mxu0 0.0
        %3088 = vmatmul.mubr.f32.gmra.mrb[0].mxu0 %v2988
        %v3089 = vpop.f32.mrb[0].mxu0
        %v3090 = vadd.f32 0.0, %v3089
        %v3091 = vpop.f32.mrb[0].mxu0
        %3092 = vmatprep.mubr.f32.mxu0 0.0
        %3093 = vmatmul.mubr.f32.gmra.mrb[0].mxu0 %v2991
        %v3094 = vpop.f32.mrb[0].mxu0
        %v3095 = vadd.f32 0.0, %v3094
        %v3096 = vpop.f32.mrb[0].mxu0
        %3097 = vdwg.mxu0
        %v3098 = vmul.f32 %v3060, 0.5
        %v3099 = vmul.f32 %v3065, 0.5
        %v3100 = vmul.f32 %v3070, 0.5
        %v3101 = vmul.f32 %v3075, 0.5
        %v3102 = vmul.f32 %v3080, 0.5
        %v3103 = vmul.f32 %v3085, 0.5
        %v3104 = vmul.f32 %v3090, 0.5
        %v3105 = vmul.f32 %v3095, 0.5
        %v3106 = vsel %vm433, %v3098, -inf
        %3107 = vmax.xlane.f32.xlu0 %v3106
        %v3108 = vpop.xlane.xlu0 %3107
        %v3109 = vsel %vm433, %v3099, -inf
        %3110 = vmax.xlane.f32.xlu0 %v3109
        %v3111 = vpop.xlane.xlu0 %3110
        %v3112 = vsel %vm433, %v3100, -inf
        %3113 = vmax.xlane.f32.xlu0 %v3112
        %v3114 = vpop.xlane.xlu0 %3113
        %v3115 = vsel %vm433, %v3101, -inf
        %3116 = vmax.xlane.f32.xlu0 %v3115
        %v3117 = vpop.xlane.xlu0 %3116
        %v3118 = vsel %vm433, %v3102, -inf
        %3119 = vmax.xlane.f32.xlu0 %v3118
        %v3120 = vpop.xlane.xlu0 %3119
        %v3121 = vsel %vm433, %v3103, -inf
        %3122 = vmax.xlane.f32.xlu0 %v3121
        %v3123 = vpop.xlane.xlu0 %3122
        %v3124 = vsel %vm433, %v3104, -inf
        %3125 = vmax.xlane.f32.xlu0 %v3124
        %v3126 = vpop.xlane.xlu0 %3125
        %v3127 = vsel %vm433, %v3105, -inf
        %3128 = vmax.xlane.f32.xlu0 %v3127
        %v3129 = vpop.xlane.xlu0 %3128
        %v3130 = vsub.f32 %v3098, %v3108
        %v3131 = vsub.f32 %v3099, %v3111
        %v3132 = vsub.f32 %v3100, %v3114
        %v3133 = vsub.f32 %v3101, %v3117
        %v3134 = vsub.f32 %v3102, %v3120
        %v3135 = vsub.f32 %v3103, %v3123
        %v3136 = vsub.f32 %v3104, %v3126
        %v3137 = vsub.f32 %v3105, %v3129
        %v3138 = vmul.f32 %v3130, 1.442695
        %v3139 = vpow.pop %v3138
        %v3140 = vmul.f32 %v3131, 1.442695
        %v3141 = vpow.pop %v3140
        %v3142 = vmul.f32 %v3132, 1.442695
        %v3143 = vpow.pop %v3142
        %v3144 = vmul.f32 %v3133, 1.442695
        %v3145 = vpow.pop %v3144
        %v3146 = vmul.f32 %v3134, 1.442695
        %v3147 = vpow.pop %v3146
        %v3148 = vmul.f32 %v3135, 1.442695
        %v3149 = vpow.pop %v3148
        %v3150 = vmul.f32 %v3136, 1.442695
        %v3151 = vpow.pop %v3150
        %v3152 = vmul.f32 %v3137, 1.442695
        %v3153 = vpow.pop %v3152
        %v3154 = vsel %vm433, %v3139, 0.0
        %3155 = vadd.xlane.f32.xlu0 %v3154
        %v3156 = vpop.xlane.xlu0 %3155
        %v3157 = vsel %vm433, %v3141, 0.0
        %3158 = vadd.xlane.f32.xlu0 %v3157
        %v3159 = vpop.xlane.xlu0 %3158
        %v3160 = vsel %vm433, %v3143, 0.0
        %3161 = vadd.xlane.f32.xlu0 %v3160
        %v3162 = vpop.xlane.xlu0 %3161
        %v3163 = vsel %vm433, %v3145, 0.0
        %3164 = vadd.xlane.f32.xlu0 %v3163
        %v3165 = vpop.xlane.xlu0 %3164
        %v3166 = vsel %vm433, %v3147, 0.0
        %3167 = vadd.xlane.f32.xlu0 %v3166
        %v3168 = vpop.xlane.xlu0 %3167
        %v3169 = vsel %vm433, %v3149, 0.0
        %3170 = vadd.xlane.f32.xlu0 %v3169
        %v3171 = vpop.xlane.xlu0 %3170
        %v3172 = vsel %vm433, %v3151, 0.0
        %3173 = vadd.xlane.f32.xlu0 %v3172
        %v3174 = vpop.xlane.xlu0 %3173
        %v3175 = vsel %vm433, %v3153, 0.0
        %3176 = vadd.xlane.f32.xlu0 %v3175
        %v3177 = vpop.xlane.xlu0 %3176
        %v3178 = vrcp.pop %v3156
        %v3179 = vmul.f32 1.0, %v3178
        %v3180 = vrcp.pop %v3159
        %v3181 = vmul.f32 1.0, %v3180
        %v3182 = vrcp.pop %v3162
        %v3183 = vmul.f32 1.0, %v3182
        %v3184 = vrcp.pop %v3165
        %v3185 = vmul.f32 1.0, %v3184
        %v3186 = vrcp.pop %v3168
        %v3187 = vmul.f32 1.0, %v3186
        %v3188 = vrcp.pop %v3171
        %v3189 = vmul.f32 1.0, %v3188
        %v3190 = vrcp.pop %v3174
        %v3191 = vmul.f32 1.0, %v3190
        %v3192 = vrcp.pop %v3177
        %v3193 = vmul.f32 1.0, %v3192
        %v3194 = vmul.f32 %v3139, %v3179
        %v3195 = vmul.f32 %v3141, %v3181
        %v3196 = vmul.f32 %v3143, %v3183
        %v3197 = vmul.f32 %v3145, %v3185
        %v3198 = vmul.f32 %v3147, %v3187
        %v3199 = vmul.f32 %v3149, %v3189
        %v3200 = vmul.f32 %v3151, %v3191
        %v3201 = vmul.f32 %v3153, %v3193
        %s3202 = scalar_lea.vmem %s9, 48
        %v3203 = vld [vmem:[%s3202] sm:$0xff]
        %v3204 = vld [vmem:[%s3202 + $0x8] sm:$0xff]
        %3206 = vset.pattern.permute.xlu0 0
        %3207 = vperm.xlu0 %3206, %v3203
        %v3208 = vpop.permute.xlu0 %3207
        %3211 = vset.pattern.permute.xlu0 0
        %3212 = vperm.xlu0 %3211, %v3204
        %v3213 = vpop.permute.xlu0 %3212
        %v3215 = vmul.f32 %v1415, %v3208
        %v3216 = vmul.f32 %v1420, %v3213
        %v3218 = vsel %vm433, %v3215, 0
        %v3221 = vsel %vm433, %v3216, 0
        %v3224 = vsel %vm433, %v3194, 0
        %v3227 = vsel %vm433, %v3195, 0
        %v3230 = vsel %vm433, %v3196, 0
        %v3233 = vsel %vm433, %v3197, 0
        %v3236 = vsel %vm433, %v3198, 0
        %v3239 = vsel %vm433, %v3199, 0
        %v3242 = vsel %vm433, %v3200, 0
        %v3245 = vsel %vm433, %v3201, 0
        %3247 = vmatprep.subr.mxu0 0.0
        %3248 = vmatpush1.xpose.msra.mxu0 %v3224
        %3249 = vmatprep.subr.mxu0 0.0
        %3250 = vmatpush1.xpose.msra.mxu0 %v3227
        %3251 = vmatprep.subr.mxu0 0.0
        %3252 = vmatpush1.xpose.msra.mxu0 %v3230
        %3253 = vmatprep.subr.mxu0 0.0
        %3254 = vmatpush1.xpose.msra.mxu0 %v3233
        %3255 = vmatprep.subr.mxu0 0.0
        %3256 = vmatpush1.xpose.msra.mxu0 %v3236
        %3257 = vmatprep.subr.mxu0 0.0
        %3258 = vmatpush1.xpose.msra.mxu0 %v3239
        %3259 = vmatprep.subr.mxu0 0.0
        %3260 = vmatpush1.xpose.msra.mxu0 %v3242
        %3261 = vmatprep.subr.mxu0 0.0
        %3262 = vmatpush1.xpose.msra.mxu0 %v3245
        %3263 = vmatprep.subr.mxu0 0.0
        %3264 = vmatpush1.xpose.msra.mxu0 0.0
        %3265 = vmatprep.subr.mxu0 0.0
        %3266 = vmatpush1.xpose.msra.mxu0 0.0
        %3267 = vmatprep.subr.mxu0 0.0
        %3268 = vmatpush1.xpose.msra.mxu0 0.0
        %3269 = vmatprep.subr.mxu0 0.0
        %3270 = vmatpush1.xpose.msra.mxu0 0.0
        %3271 = vmatprep.subr.mxu0 0.0
        %3272 = vmatpush1.xpose.msra.mxu0 0.0
        %3273 = vmatprep.subr.mxu0 0.0
        %3274 = vmatpush1.xpose.msra.mxu0 0.0
        %3275 = vmatprep.subr.mxu0 0.0
        %3276 = vmatpush1.xpose.msra.mxu0 0.0
        %3277 = vmatprep.subr.mxu0 0.0
        %3278 = vmatpush1.xpose.msra.mxu0 0.0
        %3279 = vmatprep.subr.mxu0 0.0
        %3280 = vmatpush1.xpose.msra.mxu0 0.0
        %3281 = vmatprep.subr.mxu0 0.0
        %3282 = vmatpush1.xpose.msra.mxu0 0.0
        %3283 = vmatprep.subr.mxu0 0.0
        %3284 = vmatpush1.xpose.msra.mxu0 0.0
        %3285 = vmatprep.subr.mxu0 0.0
        %3286 = vmatpush1.xpose.msra.mxu0 0.0
        %3287 = vmatprep.subr.mxu0 0.0
        %3288 = vmatpush1.xpose.msra.mxu0 0.0
        %3289 = vmatprep.subr.mxu0 0.0
        %3290 = vmatpush1.xpose.msra.mxu0 0.0
        %3291 = vmatprep.subr.mxu0 0.0
        %3292 = vmatpush1.xpose.msra.mxu0 0.0
        %3293 = vmatprep.subr.mxu0 0.0
        %3294 = vmatpush1.xpose.msra.mxu0 0.0
        %3295 = vmatprep.subr.mxu0 0.0
        %3296 = vmatpush1.xpose.msra.mxu0 0.0
        %3297 = vmatprep.subr.mxu0 0.0
        %3298 = vmatpush1.xpose.msra.mxu0 0.0
        %3299 = vmatprep.subr.mxu0 0.0
        %3300 = vmatpush1.xpose.msra.mxu0 0.0
        %3301 = vmatprep.subr.mxu0 0.0
        %3302 = vmatpush1.xpose.msra.mxu0 0.0
        %3303 = vmatprep.subr.mxu0 0.0
        %3304 = vmatpush1.xpose.msra.mxu0 0.0
        %3305 = vmatprep.subr.mxu0 0.0
        %3306 = vmatpush1.xpose.msra.mxu0 0.0
        %3307 = vmatprep.subr.mxu0 0.0
        %3308 = vmatpush1.xpose.msra.mxu0 0.0
        %3309 = vmatprep.subr.mxu0 0.0
        %3310 = vmatpush1.xpose.msra.mxu0 0.0
        %3311 = vmatprep.mubr.f32.mxu0 0.0
        %3312 = vmatmul.mubr.f32.gmra.mrb[0].mxu0 %v3218
        %v3313 = vpop.f32.mrb[0].mxu0
        %v3314 = vadd.f32 0.0, %v3313
        %v3315 = vpop.f32.mrb[0].mxu0
        %3316 = vmatprep.mubr.f32.mxu0 0.0
        %3317 = vmatmul.mubr.f32.gmra.mrb[0].mxu0 %v3221
        %v3318 = vpop.f32.mrb[0].mxu0
        %v3319 = vadd.f32 0.0, %v3318
        %v3320 = vpop.f32.mrb[0].mxu0
        %3321 = vdwg.mxu0
        %v3322 = vadd.f32 %v2951, %v3314
        %v3323 = vadd.f32 %v2952, %v3319
        %v3324 = vsel %vm433, %v3322, 0.0
        %3325 = vadd.xlane.f32.xlu0 %v3324
        %v3326 = vpop.xlane.xlu0 %3325
        %v3327 = vsel %vm433, %v3323, 0.0
        %3328 = vadd.xlane.f32.xlu0 %v3327
        %v3329 = vpop.xlane.xlu0 %3328
        %v3330 = vmul.f32 %v3326, 0.015625
        %v3331 = vmul.f32 %v3329, 0.015625
        %v3332 = vsub.f32 %v3322, %v3330
        %v3333 = vsub.f32 %v3323, %v3331
        %v3334 = vmul.f32 %v3332, %v3332
        %v3335 = vmul.f32 %v3333, %v3333
        %v3336 = vsel %vm433, %v3334, 0.0
        %3337 = vadd.xlane.f32.xlu0 %v3336
        %v3338 = vpop.xlane.xlu0 %3337
        %v3339 = vsel %vm433, %v3335, 0.0
        %3340 = vadd.xlane.f32.xlu0 %v3339
        %v3341 = vpop.xlane.xlu0 %3340
        %v3342 = vmul.f32 %v3338, 0.015873017
        %v3343 = vmul.f32 %v3341, 0.015873017
        %v3344 = vrsqrt.pop %v3342
        %v3345 = vmul.f32 %v3342, %v3344
        %vm3346 = vcmp.eq.f32.partialorder %v3342, inf
        %v3347 = vsel %vm3346, %v3342, %v3345
        %vm3348 = vcmp.eq.f32.partialorder %v3342, 0.0
        %v3349 = vand.u32 %v3342, 2147483648
        %v3350 = vsel %vm3348, %v3349, %v3347
        %v3351 = vrsqrt.pop %v3343
        %v3352 = vmul.f32 %v3343, %v3351
        %vm3353 = vcmp.eq.f32.partialorder %v3343, inf
        %v3354 = vsel %vm3353, %v3343, %v3352
        %vm3355 = vcmp.eq.f32.partialorder %v3343, 0.0
        %v3356 = vand.u32 %v3343, 2147483648
        %v3357 = vsel %vm3355, %v3356, %v3354
        %v3358 = vadd.f32 %v3350, 1e-05
        %v3359 = vadd.f32 %v3357, 1e-05
        %v3360 = vrcp.pop %v3358
        %v3361 = vmul.f32 1.0, %v3360
        %v3362 = vrcp.pop %v3359
        %v3363 = vmul.f32 1.0, %v3362
        %v3364 = vmul.f32 %v3332, %v3361
        %v3365 = vmul.f32 %v3333, %v3363
        %v3366 = vadd.f32 %v1133, %v3364
        %v3367 = vadd.f32 %v1134, %v3365
        %3368 = vst.msk [vmem:[%s423] sm:$0xff] %vm433, %v3366
        %3369 = vst.msk [vmem:[%s423 + $0x8] sm:$0xff] %vm433, %v3367
        %s3370 = sand.u32 %s271, 1
        %s3371 = scalar_lea.sflag [#allocation5], %s3370
        %s3372 = sand.u32 %s271, 1
        %s3373 = smul.addr %s3372, 16
        %s3374 = scalar_lea.vmem [#allocation9], %s3373
        // Predicated region
        $region77: #{tpu_custom_call.1} parent=63 // pred_check
          %p3375 = pneg %p281
        $region78: #{tpu_custom_call.1} parent=63 // pred_check_branch
          %3377 = sbr.rel (%p3375) target = $region80
        $region79: #{tpu_custom_call.1} parent=63 // pred_region
          %s3379 = ssub.s32 256, 256
          %3380 = vsyncadd %s3371, %s3379
          %s3381 = smul.addr %s27, 2
          %s3382 = smul.addr %s3381, 128
          %s3383 = scalar_lea.hbm %s11, %s3382
          %s3384 = sshll.u32 %s3374, 4
          %s3385 = int_to_ptr.vmem [resolvable:$true] %s3384
          %3390 = dma.vmem_to_hbm [thread:$0]  %s3385, 256, %s3383, %s3371, 128, 128, 8
        $region80: #{tpu_custom_call.1} parent=63 // pred_fallthru
          _
      $region64: #{tpu_custom_call.1} parent=5 // pred_fallthru
        _
      %p3391 = scmp.le.s32.totalorder 2, %s22
      // Predicated region
      $region81: #{tpu_custom_call.1} parent=5 // pred_check
        %p3392 = pneg %p3391
      $region82: #{tpu_custom_call.1} parent=5 // pred_check_branch
        %3394 = sbr.rel (%p3392) target = $region84
      $region83: #{tpu_custom_call.1} parent=5 // pred_region
        %s3395 = ssub.s32 %s22, 2
        // Predicated region
        $region85: #{tpu_custom_call.1} parent=83 // pred_check
          %p3396 = pneg %p287
        $region86: #{tpu_custom_call.1} parent=83 // pred_check_branch
          %3398 = sbr.rel (%p3396) target = $region88
        $region87: #{tpu_custom_call.1} parent=83 // pred_region
          %s3399 = sand.u32 %s272, 1
          %s3400 = scalar_lea.sflag [#allocation5], %s3399
          %s3401 = sand.u32 %s272, 1
          %s3402 = smul.addr %s3401, 16
          %s3403 = scalar_lea.vmem [#allocation9], %s3402
          %3404 = dma.done %s3400, 256
        $region88: #{tpu_custom_call.1} parent=83 // pred_fallthru
          _
      $region84: #{tpu_custom_call.1} parent=5 // pred_fallthru
        _
    $region6: #{tpu_custom_call.1} parent=1 // loop_footer
      %s26 = sadd.s32 1, %s22
    $region7: #{tpu_custom_call.1} parent=1 // loop_footer_branch
      %21 = sbr.rel target = $region3
    $region8: #{tpu_custom_call.1} parent=1 // loop_exit
      _
    %3405 = vsyncpa [#allocation4], 1
    %s3406 = scalar_lea.sflag [#allocation4], 1
    %3407 = vsyncpa %s3406, 1
    %3408 = vsyncpa [#allocation7], 1
    %3409 = vsyncpa [#allocation5], 1
    %s3410 = scalar_lea.sflag [#allocation5], 1
    %3411 = vsyncpa %s3410, 1

</llo_original>
